<compile_context>
chip_gen: v7x
topology: tpu7x:2x2x1
jax: 0.10.0
libtpu: 0.0.40
codegen_flags: <defaults>
</compile_context>

<pallas_src>
import jax
import jax.numpy as jnp
import numpy as np
from jax.experimental import pallas as pl
from jax.experimental.pallas import tpu as pltpu

DIMS = [2, 50, 50, 50, 50, 50, 1]
N_HIDDEN_LAYERS = len(DIMS) - 2   # 5 hidden blocks (Linear + LayerNorm + Tanh)
FEAT = 50
LN_EPS = 1e-5

# Column layout of the packed parameter slab (shape (FEAT, 19)):
#   0: W1'[x-row]   1: W1'[t-row]   2: b1'   3: gamma1   4: beta1
#   5 + 3*l .. 7 + 3*l  (l = 0..3): b, gamma, beta of hidden layers 2..5
#   17: w_out       18: b_out (broadcast down the column)
_N_SLAB_COLS = 19


# ------------------------------------------------------------------ kernel ---
def _layernorm_tanh(z, g, be, inv_n):
    # One-pass LayerNorm over the feature (sublane) axis; the two reduces are
    # independent so they can overlap.  Activations here are O(1) post-matmul,
    # so the E[z^2]-E[z]^2 form is numerically safe (validated vs reference).
    s1 = jnp.sum(z, axis=0, keepdims=True)          # (1, tm)
    s2 = jnp.sum(z * z, axis=0, keepdims=True)      # (1, tm)
    mean = s1 * inv_n
    var = jnp.maximum(s2 * inv_n - mean * mean, 0.0)
    zn = (z - mean) * jax.lax.rsqrt(var + LN_EPS)
    return jnp.tanh(zn * g + be)


def _pinn_mlp_kernel(x_ref, t_ref, wh_ref, slab_ref, o_ref):
    inv_n = jnp.float32(1.0 / FEAT)

    x = x_ref[...]            # (1, tm)   batch lane-dense
    t = t_ref[...]            # (1, tm)
    slab = slab_ref[...]      # (FEAT, 19) packed per-feature parameter columns

    def col(k):               # static lane slice -> (FEAT, 1) column
        return slab[:, k:k + 1]

    # Layer 1 (input scaling already folded into W1'/b1'): rank-1 broadcasts.
    z = col(0) * x + col(1) * t + col(2)              # (FEAT, tm)
    z = _layernorm_tanh(z, col(3), col(4), inv_n)

    # Hidden layers 2..5: (50,50) @ (50,tm) MXU matmuls with pre-transposed W.
    for li in range(N_HIDDEN_LAYERS - 1):
        base = 5 + 3 * li
        z = jnp.dot(wh_ref[li], z, preferred_element_type=jnp.float32) + col(base)
        z = _layernorm_tanh(z, col(base + 1), col(base + 2), inv_n)

    # Output layer: weighted feature-sum -> already lane-dense (1, tm).
    out = jnp.sum(z * col(17), axis=0, keepdims=True) + slab[0:1, 18:19]
    o_ref[...] = out


# ------------------------------------------------------ parameter packing ----
def pack_params(params, lb, ub, *, scale=True):
    """Fold the affine input scaling into layer 1 and pack the 22 parameter
    arrays into (w_hidden: (4,50,50) transposed weights, slab: (50,19))."""
    lb = jnp.asarray(lb, jnp.float32).reshape(2)
    ub = jnp.asarray(ub, jnp.float32).reshape(2)

    W1 = jnp.asarray(params[0], jnp.float32)               # (2, 50)
    b1 = jnp.asarray(params[1], jnp.float32).reshape(-1)   # (50,)
    if scale:
        s = 2.0 / (ub - lb)                  # per-input-column scale
        o = -1.0 - 2.0 * lb / (ub - lb)      # per-input-column offset
        b1 = b1 + o @ W1                     # uses the ORIGINAL W1
        W1 = W1 * s[:, None]

    cols = [W1[0, :], W1[1, :], b1,
            jnp.asarray(params[2], jnp.float32).reshape(-1),   # gamma1
            jnp.asarray(params[3], jnp.float32).reshape(-1)]   # beta1

    w_hidden = []
    idx = 4
    for _ in range(N_HIDDEN_LAYERS - 1):                       # layers 2..5
        W, b, g, be = params[idx], params[idx + 1], params[idx + 2], params[idx + 3]
        idx += 4
        w_hidden.append(jnp.asarray(W, jnp.float32).T)         # (50, 50)
        cols += [jnp.asarray(b, jnp.float32).reshape(-1),
                 jnp.asarray(g, jnp.float32).reshape(-1),
                 jnp.asarray(be, jnp.float32).reshape(-1)]

    w_out = jnp.asarray(params[idx], jnp.float32).reshape(-1)        # (50,)
    b_out = jnp.asarray(params[idx + 1], jnp.float32).reshape(())    # scalar
    cols.append(w_out)
    cols.append(jnp.full((FEAT,), b_out, jnp.float32))

    w_hidden = jnp.stack(w_hidden, axis=0)        # (4, 50, 50)
    slab = jnp.stack(cols, axis=1)                # (50, 19)
    assert slab.shape == (FEAT, _N_SLAB_COLS)
    return w_hidden, slab


# ----------------------------------------------------------------- wrapper ---
def robust_pinn_forward(x, t, params, lb, ub, *, scale=True, tm=512):
    """x, t: (N, 1) float32.  Returns uf: (N, 1) float32."""
    x = jnp.asarray(x, jnp.float32).reshape(-1)
    t = jnp.asarray(t, jnp.float32).reshape(-1)
    N = x.shape[0]

    w_hidden, slab = pack_params(params, lb, ub, scale=scale)

    n_tiles = pl.cdiv(N, tm)          # padded cdiv grid; no divisibility assert
    n_pad = n_tiles * tm
    xr = jnp.zeros((1, n_pad), jnp.float32).at[0, :N].set(x)
    tr = jnp.zeros((1, n_pad), jnp.float32).at[0, :N].set(t)

    out = pl.pallas_call(
        _pinn_mlp_kernel,
        out_shape=jax.ShapeDtypeStruct((1, n_pad), jnp.float32),
        grid_spec=pltpu.PrefetchScalarGridSpec(
            num_scalar_prefetch=0,
            grid=(n_tiles,),
            in_specs=[
                pl.BlockSpec((1, tm), lambda i: (0, i)),            # x (lane-dense)
                pl.BlockSpec((1, tm), lambda i: (0, i)),            # t (lane-dense)
                pl.BlockSpec(w_hidden.shape, lambda i: (0, 0, 0)),  # hidden weights
                pl.BlockSpec(slab.shape, lambda i: (0, 0)),         # param slab
            ],
            out_specs=pl.BlockSpec((1, tm), lambda i: (0, i)),      # lane-dense out
        ),
        compiler_params=pltpu.CompilerParams(
            dimension_semantics=("parallel",)),                     # splits over v7x TCs
    )(xr, tr, w_hidden, slab)

    return out[0, :N].reshape(N, 1)


# ------------------------------------------------------ parameter creation ---
def init_params(key):
    """Deterministic init mirroring RobustPINN.xavier_init:
    Linear weights ~ xavier_uniform, biases = 0.01, LayerNorm gamma=1 beta=0."""
    params = []
    for li in range(len(DIMS) - 1):
        d_in, d_out = DIMS[li], DIMS[li + 1]
        key, wk = jax.random.split(key)
        bound = float(np.sqrt(6.0 / (d_in + d_out)))
        w = jax.random.uniform(wk, (d_in, d_out), jnp.float32, -bound, bound)
        b = jnp.full((1, d_out), 0.01, jnp.float32)
        params.append(w)
        params.append(b)
        if li < len(DIMS) - 2:  # hidden layers get LayerNorm (+Tanh)
            params.append(jnp.ones((1, d_out), jnp.float32))   # gamma
            params.append(jnp.zeros((1, d_out), jnp.float32))  # beta
    return params


# -------------------------------------------------------- pure-JAX reference -
def reference_forward(x, t, params, lb, ub, scale=True):
    """Mirrors the PyTorch semantics (explicit scale, two-pass LayerNorm)."""
    z = jnp.concatenate([x, t], axis=1)
    if scale:
        z = -1.0 + 2.0 * (z - lb.reshape(1, 2)) / (ub.reshape(1, 2) - lb.reshape(1, 2))
    idx = 0
    for _ in range(N_HIDDEN_LAYERS):
        w, b, g, be = params[idx], params[idx + 1], params[idx + 2], params[idx + 3]
        idx += 4
        z = z @ w + b
        mean = jnp.mean(z, axis=-1, keepdims=True)
        var = jnp.mean(jnp.square(z - mean), axis=-1, keepdims=True)
        z = (z - mean) * jax.lax.rsqrt(var + LN_EPS) * g + be
        z = jnp.tanh(z)
    return z @ params[idx] + params[idx + 1]


# TODO(synk): the .loss()/.grads_dict() paths (autograd u_x/u_t/u_xx..., FFT
# denoising, RobustPCANN) are training-time machinery, not the module's forward
# pass, and are intentionally not translated here.

if __name__ == "__main__":
    key = jax.random.PRNGKey(0)
    kx, kt, kp = jax.random.split(key, 3)

    N = 1000  # deliberately NOT a multiple of the tile size (exercises padding)
    x = jax.random.uniform(kx, (N, 1), jnp.float32, -1.0, 1.0)
    t = jax.random.uniform(kt, (N, 1), jnp.float32, 0.0, 1.0)

    lb = jnp.array([-1.0, 0.0], jnp.float32)  # scaling_factor * lb
    ub = jnp.array([1.0, 1.0], jnp.float32)   # scaling_factor * ub

    params = init_params(kp)

    uf = robust_pinn_forward(x, t, params, lb, ub, scale=True, tm=512)
    uf = jax.block_until_ready(uf)

    uf_ref = reference_forward(x, t, params, lb, ub, scale=True)
    assert uf.shape == (N, 1)
    # Slightly relaxed tolerance: one-pass LN variance + folded input scaling
    # differ from the reference only by f32 rounding.
    np.testing.assert_allclose(np.asarray(uf), np.asarray(uf_ref),
                               rtol=5e-4, atol=5e-5)

    print("KERNEL_OK")
</pallas_src>

<mosaic_0001>
module attributes {stable_mosaic.version = 11 : i64} {
  func.func @_pinn_mlp_kernel(%arg0: i32, %arg1: memref<1x512xf32, #tpu.memory_space<vmem>>, %arg2: memref<1x512xf32, #tpu.memory_space<vmem>>, %arg3: memref<4x50x50xf32, #tpu.memory_space<vmem>>, %arg4: memref<50x19xf32, #tpu.memory_space<vmem>>, %arg5: memref<1x512xf32, #tpu.memory_space<vmem>>) attributes {dimension_semantics = [#tpu.dimension_semantics<parallel>], iteration_bounds = array<i64: 2>, scalar_prefetch = 0 : i64, scratch_operands = 0 : i64, tpu.core_type = #tpu.core_type<tc>, window_params = [{transform_indices = @transform_0, window_bounds = array<i64: 1, 512>}, {transform_indices = @transform_1, window_bounds = array<i64: 1, 512>}, {pipeline_mode = #tpu.pipeline_mode<synchronous>, transform_indices = @transform_2, window_bounds = array<i64: 4, 50, 50>}, {pipeline_mode = #tpu.pipeline_mode<synchronous>, transform_indices = @transform_3, window_bounds = array<i64: 50, 19>}, {transform_indices = @transform_4, window_bounds = array<i64: 1, 512>}]} {
    %c0 = arith.constant 0 : index
    %c0_0 = arith.constant 0 : index
    %0 = vector.load %arg1[%c0, %c0_0] : memref<1x512xf32, #tpu.memory_space<vmem>>, vector<1x512xf32>
    %c0_1 = arith.constant 0 : index
    %c0_2 = arith.constant 0 : index
    %1 = vector.load %arg2[%c0_1, %c0_2] : memref<1x512xf32, #tpu.memory_space<vmem>>, vector<1x512xf32>
    %c0_3 = arith.constant 0 : index
    %c0_4 = arith.constant 0 : index
    %2 = vector.load %arg4[%c0_3, %c0_4] : memref<50x19xf32, #tpu.memory_space<vmem>>, vector<50x19xf32>
    %3 = vector.extract_strided_slice %2 {offsets = [0, 0], sizes = [50, 1], strides = [1, 1]} : vector<50x19xf32> to vector<50x1xf32>
    %4 = vector.broadcast %3 : vector<50x1xf32> to vector<50x512xf32>
    %5 = vector.broadcast %0 : vector<1x512xf32> to vector<50x512xf32>
    %6 = arith.mulf %4, %5 : vector<50x512xf32>
    %7 = vector.extract_strided_slice %2 {offsets = [0, 1], sizes = [50, 1], strides = [1, 1]} : vector<50x19xf32> to vector<50x1xf32>
    %8 = vector.broadcast %7 : vector<50x1xf32> to vector<50x512xf32>
    %9 = vector.broadcast %1 : vector<1x512xf32> to vector<50x512xf32>
    %10 = arith.mulf %8, %9 : vector<50x512xf32>
    %11 = arith.addf %6, %10 : vector<50x512xf32>
    %12 = vector.extract_strided_slice %2 {offsets = [0, 2], sizes = [50, 1], strides = [1, 1]} : vector<50x19xf32> to vector<50x1xf32>
    %13 = vector.broadcast %12 : vector<50x1xf32> to vector<50x512xf32>
    %14 = arith.addf %11, %13 : vector<50x512xf32>
    %15 = vector.extract_strided_slice %2 {offsets = [0, 3], sizes = [50, 1], strides = [1, 1]} : vector<50x19xf32> to vector<50x1xf32>
    %16 = vector.extract_strided_slice %2 {offsets = [0, 4], sizes = [50, 1], strides = [1, 1]} : vector<50x19xf32> to vector<50x1xf32>
    %cst = arith.constant dense<0.000000e+00> : vector<512xf32>
    %17 = vector.multi_reduction <add>, %14, %cst [0] : vector<50x512xf32> to vector<512xf32>
    %18 = vector.shape_cast %17 : vector<512xf32> to vector<1x512xf32>
    %19 = arith.mulf %14, %14 : vector<50x512xf32>
    %cst_5 = arith.constant dense<0.000000e+00> : vector<512xf32>
    %20 = vector.multi_reduction <add>, %19, %cst_5 [0] : vector<50x512xf32> to vector<512xf32>
    %21 = vector.shape_cast %20 : vector<512xf32> to vector<1x512xf32>
    %cst_6 = arith.constant 2.000000e-02 : f32
    %22 = vector.broadcast %cst_6 : f32 to vector<1x512xf32>
    %23 = arith.mulf %18, %22 : vector<1x512xf32>
    %cst_7 = arith.constant 2.000000e-02 : f32
    %24 = vector.broadcast %cst_7 : f32 to vector<1x512xf32>
    %25 = arith.mulf %21, %24 : vector<1x512xf32>
    %26 = arith.mulf %23, %23 : vector<1x512xf32>
    %27 = arith.subf %25, %26 : vector<1x512xf32>
    %cst_8 = arith.constant 0.000000e+00 : f32
    %28 = vector.broadcast %cst_8 : f32 to vector<1x512xf32>
    %29 = arith.maximumf %27, %28 : vector<1x512xf32>
    %30 = vector.broadcast %23 : vector<1x512xf32> to vector<50x512xf32>
    %31 = arith.subf %14, %30 : vector<50x512xf32>
    %cst_9 = arith.constant 9.99999974E-6 : f32
    %32 = vector.broadcast %cst_9 : f32 to vector<1x512xf32>
    %33 = arith.addf %29, %32 : vector<1x512xf32>
    %34 = math.rsqrt %33 : vector<1x512xf32>
    %35 = vector.broadcast %34 : vector<1x512xf32> to vector<50x512xf32>
    %36 = arith.mulf %31, %35 : vector<50x512xf32>
    %37 = vector.broadcast %15 : vector<50x1xf32> to vector<50x512xf32>
    %38 = arith.mulf %36, %37 : vector<50x512xf32>
    %39 = vector.broadcast %16 : vector<50x1xf32> to vector<50x512xf32>
    %40 = arith.addf %38, %39 : vector<50x512xf32>
    %41 = math.tanh %40 : vector<50x512xf32>
    %c0_10 = arith.constant 0 : index
    %c0_11 = arith.constant 0 : index
    %c0_12 = arith.constant 0 : index
    %42 = vector.load %arg3[%c0_10, %c0_11, %c0_12] : memref<4x50x50xf32, #tpu.memory_space<vmem>>, vector<1x50x50xf32>
    %43 = vector.shape_cast %42 : vector<1x50x50xf32> to vector<50x50xf32>
    %cst_13 = arith.constant dense<0.000000e+00> : vector<50x512xf32>
    %44 = tpu.matmul %43, %41, %cst_13 {dimension_numbers = #tpu.dot_dimension_numbers<[1], [0], [0], [1], [0, 0, 1, 1], [], []>} : vector<50x50xf32>, vector<50x512xf32>, vector<50x512xf32> -> vector<50x512xf32>
    %45 = vector.extract_strided_slice %2 {offsets = [0, 5], sizes = [50, 1], strides = [1, 1]} : vector<50x19xf32> to vector<50x1xf32>
    %46 = vector.broadcast %45 : vector<50x1xf32> to vector<50x512xf32>
    %47 = arith.addf %44, %46 : vector<50x512xf32>
    %48 = vector.extract_strided_slice %2 {offsets = [0, 6], sizes = [50, 1], strides = [1, 1]} : vector<50x19xf32> to vector<50x1xf32>
    %49 = vector.extract_strided_slice %2 {offsets = [0, 7], sizes = [50, 1], strides = [1, 1]} : vector<50x19xf32> to vector<50x1xf32>
    %cst_14 = arith.constant dense<0.000000e+00> : vector<512xf32>
    %50 = vector.multi_reduction <add>, %47, %cst_14 [0] : vector<50x512xf32> to vector<512xf32>
    %51 = vector.shape_cast %50 : vector<512xf32> to vector<1x512xf32>
    %52 = arith.mulf %47, %47 : vector<50x512xf32>
    %cst_15 = arith.constant dense<0.000000e+00> : vector<512xf32>
    %53 = vector.multi_reduction <add>, %52, %cst_15 [0] : vector<50x512xf32> to vector<512xf32>
    %54 = vector.shape_cast %53 : vector<512xf32> to vector<1x512xf32>
    %cst_16 = arith.constant 2.000000e-02 : f32
    %55 = vector.broadcast %cst_16 : f32 to vector<1x512xf32>
    %56 = arith.mulf %51, %55 : vector<1x512xf32>
    %cst_17 = arith.constant 2.000000e-02 : f32
    %57 = vector.broadcast %cst_17 : f32 to vector<1x512xf32>
    %58 = arith.mulf %54, %57 : vector<1x512xf32>
    %59 = arith.mulf %56, %56 : vector<1x512xf32>
    %60 = arith.subf %58, %59 : vector<1x512xf32>
    %cst_18 = arith.constant 0.000000e+00 : f32
    %61 = vector.broadcast %cst_18 : f32 to vector<1x512xf32>
    %62 = arith.maximumf %60, %61 : vector<1x512xf32>
    %63 = vector.broadcast %56 : vector<1x512xf32> to vector<50x512xf32>
    %64 = arith.subf %47, %63 : vector<50x512xf32>
    %cst_19 = arith.constant 9.99999974E-6 : f32
    %65 = vector.broadcast %cst_19 : f32 to vector<1x512xf32>
    %66 = arith.addf %62, %65 : vector<1x512xf32>
    %67 = math.rsqrt %66 : vector<1x512xf32>
    %68 = vector.broadcast %67 : vector<1x512xf32> to vector<50x512xf32>
    %69 = arith.mulf %64, %68 : vector<50x512xf32>
    %70 = vector.broadcast %48 : vector<50x1xf32> to vector<50x512xf32>
    %71 = arith.mulf %69, %70 : vector<50x512xf32>
    %72 = vector.broadcast %49 : vector<50x1xf32> to vector<50x512xf32>
    %73 = arith.addf %71, %72 : vector<50x512xf32>
    %74 = math.tanh %73 : vector<50x512xf32>
    %c1 = arith.constant 1 : index
    %c0_20 = arith.constant 0 : index
    %c0_21 = arith.constant 0 : index
    %75 = vector.load %arg3[%c1, %c0_20, %c0_21] : memref<4x50x50xf32, #tpu.memory_space<vmem>>, vector<1x50x50xf32>
    %76 = vector.shape_cast %75 : vector<1x50x50xf32> to vector<50x50xf32>
    %cst_22 = arith.constant dense<0.000000e+00> : vector<50x512xf32>
    %77 = tpu.matmul %76, %74, %cst_22 {dimension_numbers = #tpu.dot_dimension_numbers<[1], [0], [0], [1], [0, 0, 1, 1], [], []>} : vector<50x50xf32>, vector<50x512xf32>, vector<50x512xf32> -> vector<50x512xf32>
    %78 = vector.extract_strided_slice %2 {offsets = [0, 8], sizes = [50, 1], strides = [1, 1]} : vector<50x19xf32> to vector<50x1xf32>
    %79 = vector.broadcast %78 : vector<50x1xf32> to vector<50x512xf32>
    %80 = arith.addf %77, %79 : vector<50x512xf32>
    %81 = vector.extract_strided_slice %2 {offsets = [0, 9], sizes = [50, 1], strides = [1, 1]} : vector<50x19xf32> to vector<50x1xf32>
    %82 = vector.extract_strided_slice %2 {offsets = [0, 10], sizes = [50, 1], strides = [1, 1]} : vector<50x19xf32> to vector<50x1xf32>
    %cst_23 = arith.constant dense<0.000000e+00> : vector<512xf32>
    %83 = vector.multi_reduction <add>, %80, %cst_23 [0] : vector<50x512xf32> to vector<512xf32>
    %84 = vector.shape_cast %83 : vector<512xf32> to vector<1x512xf32>
    %85 = arith.mulf %80, %80 : vector<50x512xf32>
    %cst_24 = arith.constant dense<0.000000e+00> : vector<512xf32>
    %86 = vector.multi_reduction <add>, %85, %cst_24 [0] : vector<50x512xf32> to vector<512xf32>
    %87 = vector.shape_cast %86 : vector<512xf32> to vector<1x512xf32>
    %cst_25 = arith.constant 2.000000e-02 : f32
    %88 = vector.broadcast %cst_25 : f32 to vector<1x512xf32>
    %89 = arith.mulf %84, %88 : vector<1x512xf32>
    %cst_26 = arith.constant 2.000000e-02 : f32
    %90 = vector.broadcast %cst_26 : f32 to vector<1x512xf32>
    %91 = arith.mulf %87, %90 : vector<1x512xf32>
    %92 = arith.mulf %89, %89 : vector<1x512xf32>
    %93 = arith.subf %91, %92 : vector<1x512xf32>
    %cst_27 = arith.constant 0.000000e+00 : f32
    %94 = vector.broadcast %cst_27 : f32 to vector<1x512xf32>
    %95 = arith.maximumf %93, %94 : vector<1x512xf32>
    %96 = vector.broadcast %89 : vector<1x512xf32> to vector<50x512xf32>
    %97 = arith.subf %80, %96 : vector<50x512xf32>
    %cst_28 = arith.constant 9.99999974E-6 : f32
    %98 = vector.broadcast %cst_28 : f32 to vector<1x512xf32>
    %99 = arith.addf %95, %98 : vector<1x512xf32>
    %100 = math.rsqrt %99 : vector<1x512xf32>
    %101 = vector.broadcast %100 : vector<1x512xf32> to vector<50x512xf32>
    %102 = arith.mulf %97, %101 : vector<50x512xf32>
    %103 = vector.broadcast %81 : vector<50x1xf32> to vector<50x512xf32>
    %104 = arith.mulf %102, %103 : vector<50x512xf32>
    %105 = vector.broadcast %82 : vector<50x1xf32> to vector<50x512xf32>
    %106 = arith.addf %104, %105 : vector<50x512xf32>
    %107 = math.tanh %106 : vector<50x512xf32>
    %c2 = arith.constant 2 : index
    %c0_29 = arith.constant 0 : index
    %c0_30 = arith.constant 0 : index
    %108 = vector.load %arg3[%c2, %c0_29, %c0_30] : memref<4x50x50xf32, #tpu.memory_space<vmem>>, vector<1x50x50xf32>
    %109 = vector.shape_cast %108 : vector<1x50x50xf32> to vector<50x50xf32>
    %cst_31 = arith.constant dense<0.000000e+00> : vector<50x512xf32>
    %110 = tpu.matmul %109, %107, %cst_31 {dimension_numbers = #tpu.dot_dimension_numbers<[1], [0], [0], [1], [0, 0, 1, 1], [], []>} : vector<50x50xf32>, vector<50x512xf32>, vector<50x512xf32> -> vector<50x512xf32>
    %111 = vector.extract_strided_slice %2 {offsets = [0, 11], sizes = [50, 1], strides = [1, 1]} : vector<50x19xf32> to vector<50x1xf32>
    %112 = vector.broadcast %111 : vector<50x1xf32> to vector<50x512xf32>
    %113 = arith.addf %110, %112 : vector<50x512xf32>
    %114 = vector.extract_strided_slice %2 {offsets = [0, 12], sizes = [50, 1], strides = [1, 1]} : vector<50x19xf32> to vector<50x1xf32>
    %115 = vector.extract_strided_slice %2 {offsets = [0, 13], sizes = [50, 1], strides = [1, 1]} : vector<50x19xf32> to vector<50x1xf32>
    %cst_32 = arith.constant dense<0.000000e+00> : vector<512xf32>
    %116 = vector.multi_reduction <add>, %113, %cst_32 [0] : vector<50x512xf32> to vector<512xf32>
    %117 = vector.shape_cast %116 : vector<512xf32> to vector<1x512xf32>
    %118 = arith.mulf %113, %113 : vector<50x512xf32>
    %cst_33 = arith.constant dense<0.000000e+00> : vector<512xf32>
    %119 = vector.multi_reduction <add>, %118, %cst_33 [0] : vector<50x512xf32> to vector<512xf32>
    %120 = vector.shape_cast %119 : vector<512xf32> to vector<1x512xf32>
    %cst_34 = arith.constant 2.000000e-02 : f32
    %121 = vector.broadcast %cst_34 : f32 to vector<1x512xf32>
    %122 = arith.mulf %117, %121 : vector<1x512xf32>
    %cst_35 = arith.constant 2.000000e-02 : f32
    %123 = vector.broadcast %cst_35 : f32 to vector<1x512xf32>
    %124 = arith.mulf %120, %123 : vector<1x512xf32>
    %125 = arith.mulf %122, %122 : vector<1x512xf32>
    %126 = arith.subf %124, %125 : vector<1x512xf32>
    %cst_36 = arith.constant 0.000000e+00 : f32
    %127 = vector.broadcast %cst_36 : f32 to vector<1x512xf32>
    %128 = arith.maximumf %126, %127 : vector<1x512xf32>
    %129 = vector.broadcast %122 : vector<1x512xf32> to vector<50x512xf32>
    %130 = arith.subf %113, %129 : vector<50x512xf32>
    %cst_37 = arith.constant 9.99999974E-6 : f32
    %131 = vector.broadcast %cst_37 : f32 to vector<1x512xf32>
    %132 = arith.addf %128, %131 : vector<1x512xf32>
    %133 = math.rsqrt %132 : vector<1x512xf32>
    %134 = vector.broadcast %133 : vector<1x512xf32> to vector<50x512xf32>
    %135 = arith.mulf %130, %134 : vector<50x512xf32>
    %136 = vector.broadcast %114 : vector<50x1xf32> to vector<50x512xf32>
    %137 = arith.mulf %135, %136 : vector<50x512xf32>
    %138 = vector.broadcast %115 : vector<50x1xf32> to vector<50x512xf32>
    %139 = arith.addf %137, %138 : vector<50x512xf32>
    %140 = math.tanh %139 : vector<50x512xf32>
    %c3 = arith.constant 3 : index
    %c0_38 = arith.constant 0 : index
    %c0_39 = arith.constant 0 : index
    %141 = vector.load %arg3[%c3, %c0_38, %c0_39] : memref<4x50x50xf32, #tpu.memory_space<vmem>>, vector<1x50x50xf32>
    %142 = vector.shape_cast %141 : vector<1x50x50xf32> to vector<50x50xf32>
    %cst_40 = arith.constant dense<0.000000e+00> : vector<50x512xf32>
    %143 = tpu.matmul %142, %140, %cst_40 {dimension_numbers = #tpu.dot_dimension_numbers<[1], [0], [0], [1], [0, 0, 1, 1], [], []>} : vector<50x50xf32>, vector<50x512xf32>, vector<50x512xf32> -> vector<50x512xf32>
    %144 = vector.extract_strided_slice %2 {offsets = [0, 14], sizes = [50, 1], strides = [1, 1]} : vector<50x19xf32> to vector<50x1xf32>
    %145 = vector.broadcast %144 : vector<50x1xf32> to vector<50x512xf32>
    %146 = arith.addf %143, %145 : vector<50x512xf32>
    %147 = vector.extract_strided_slice %2 {offsets = [0, 15], sizes = [50, 1], strides = [1, 1]} : vector<50x19xf32> to vector<50x1xf32>
    %148 = vector.extract_strided_slice %2 {offsets = [0, 16], sizes = [50, 1], strides = [1, 1]} : vector<50x19xf32> to vector<50x1xf32>
    %cst_41 = arith.constant dense<0.000000e+00> : vector<512xf32>
    %149 = vector.multi_reduction <add>, %146, %cst_41 [0] : vector<50x512xf32> to vector<512xf32>
    %150 = vector.shape_cast %149 : vector<512xf32> to vector<1x512xf32>
    %151 = arith.mulf %146, %146 : vector<50x512xf32>
    %cst_42 = arith.constant dense<0.000000e+00> : vector<512xf32>
    %152 = vector.multi_reduction <add>, %151, %cst_42 [0] : vector<50x512xf32> to vector<512xf32>
    %153 = vector.shape_cast %152 : vector<512xf32> to vector<1x512xf32>
    %cst_43 = arith.constant 2.000000e-02 : f32
    %154 = vector.broadcast %cst_43 : f32 to vector<1x512xf32>
    %155 = arith.mulf %150, %154 : vector<1x512xf32>
    %cst_44 = arith.constant 2.000000e-02 : f32
    %156 = vector.broadcast %cst_44 : f32 to vector<1x512xf32>
    %157 = arith.mulf %153, %156 : vector<1x512xf32>
    %158 = arith.mulf %155, %155 : vector<1x512xf32>
    %159 = arith.subf %157, %158 : vector<1x512xf32>
    %cst_45 = arith.constant 0.000000e+00 : f32
    %160 = vector.broadcast %cst_45 : f32 to vector<1x512xf32>
    %161 = arith.maximumf %159, %160 : vector<1x512xf32>
    %162 = vector.broadcast %155 : vector<1x512xf32> to vector<50x512xf32>
    %163 = arith.subf %146, %162 : vector<50x512xf32>
    %cst_46 = arith.constant 9.99999974E-6 : f32
    %164 = vector.broadcast %cst_46 : f32 to vector<1x512xf32>
    %165 = arith.addf %161, %164 : vector<1x512xf32>
    %166 = math.rsqrt %165 : vector<1x512xf32>
    %167 = vector.broadcast %166 : vector<1x512xf32> to vector<50x512xf32>
    %168 = arith.mulf %163, %167 : vector<50x512xf32>
    %169 = vector.broadcast %147 : vector<50x1xf32> to vector<50x512xf32>
    %170 = arith.mulf %168, %169 : vector<50x512xf32>
    %171 = vector.broadcast %148 : vector<50x1xf32> to vector<50x512xf32>
    %172 = arith.addf %170, %171 : vector<50x512xf32>
    %173 = math.tanh %172 : vector<50x512xf32>
    %174 = vector.extract_strided_slice %2 {offsets = [0, 17], sizes = [50, 1], strides = [1, 1]} : vector<50x19xf32> to vector<50x1xf32>
    %175 = vector.broadcast %174 : vector<50x1xf32> to vector<50x512xf32>
    %176 = arith.mulf %173, %175 : vector<50x512xf32>
    %cst_47 = arith.constant dense<0.000000e+00> : vector<512xf32>
    %177 = vector.multi_reduction <add>, %176, %cst_47 [0] : vector<50x512xf32> to vector<512xf32>
    %178 = vector.shape_cast %177 : vector<512xf32> to vector<1x512xf32>
    %179 = vector.extract_strided_slice %2 {offsets = [0, 18], sizes = [1, 1], strides = [1, 1]} : vector<50x19xf32> to vector<1x1xf32>
    %180 = vector.broadcast %179 : vector<1x1xf32> to vector<1x512xf32>
    %181 = arith.addf %178, %180 : vector<1x512xf32>
    %c0_48 = arith.constant 0 : index
    %c0_49 = arith.constant 0 : index
    %182 = vector.load %arg5[%c0_48, %c0_49] : memref<1x512xf32, #tpu.memory_space<vmem>>, vector<1x512xf32>
    tpu.vector_store %arg5[%c0_48, %c0_49], %181 {strides = array<i32>} : memref<1x512xf32, #tpu.memory_space<vmem>>, vector<1x512xf32>,
    return
  }
  func.func @transform_0(%arg0: i32) -> (i32, i32) {
    %c0_i32 = arith.constant 0 : i32
    %c0_i32_0 = arith.constant 0 : i32
    return %c0_i32, %arg0 : i32, i32
  }
  func.func @transform_1(%arg0: i32) -> (i32, i32) {
    %c0_i32 = arith.constant 0 : i32
    %c0_i32_0 = arith.constant 0 : i32
    return %c0_i32, %arg0 : i32, i32
  }
  func.func @transform_2(%arg0: i32) -> (i32, i32, i32) {
    %c0_i32 = arith.constant 0 : i32
    %c0_i32_0 = arith.constant 0 : i32
    %c0_i32_1 = arith.constant 0 : i32
    %c0_i32_2 = arith.constant 0 : i32
    return %c0_i32, %c0_i32_0, %c0_i32_1 : i32, i32, i32
  }
  func.func @transform_3(%arg0: i32) -> (i32, i32) {
    %c0_i32 = arith.constant 0 : i32
    %c0_i32_0 = arith.constant 0 : i32
    %c0_i32_1 = arith.constant 0 : i32
    return %c0_i32, %c0_i32_0 : i32, i32
  }
  func.func @transform_4(%arg0: i32) -> (i32, i32) {
    %c0_i32 = arith.constant 0 : i32
    %c0_i32_0 = arith.constant 0 : i32
    return %c0_i32, %arg0 : i32, i32
  }
}

</mosaic_0001>

<llo_original>
// kernel: tpu_custom_call.1
$region0: #{tpu_custom_call.1}
  #allocation0 [shape = 'u32[]', space=smem, size = 0x4, offset = 0x4, fixed_abs, tag = 'smem constant byte address 0x4 - core index']
  #allocation1 [shape = 'u32[144,128]{1,0:T(1,128)}', space=vmem, size = 0x12000, scoped, tag = 'internal scratch']
  %s0 = inlined_call_operand.vmem [shape: f32[1,1024], index: 0, kind: input, shape index: {}]
  %s1 = inlined_call_operand.vmem [shape: f32[1,1024], index: 1, kind: input, shape index: {}]
  %s2 = inlined_call_operand.vmem [shape: f32[4,50,50], index: 2, kind: input, shape index: {}]
  %s3 = inlined_call_operand.vmem [shape: f32[50,19], index: 3, kind: input, shape index: {}]
  %s4 = inlined_call_operand.hbm [shape: f32[1,1024], index: 4, kind: output, shape index: {}]
  %s5 = sld [smem:[#allocation0]]
  $region49: #{tpu_custom_call.1} parent=0
    _
  %s7 = ssub.s32 1, %s5
  %s8 = scalar_select 0, %s7, %s5
  $region1: #{tpu_custom_call.1} parent=0
    #allocation2 [shape = 'u8[4096]{0}', space=vmem, size = 0x1000, scoped, tag = 'output window, operand 0']
    #allocation3 [shape = 's32[2]{0}', space=sflag, size = 0x8, scoped, tag = 'scoped memory for tpu_custom_call.1']
    %9 = vsyncpa [#allocation3], 0
    %s10 = scalar_lea.sflag [#allocation3], 1
    %11 = vsyncpa %s10, 0
    loop: start=0, step=1, limit=4
    $region2: #{tpu_custom_call.1} parent=1 // loop_pre_header
      _
    $region3: #{tpu_custom_call.1} parent=1 // loop_header
      %s13 = sphi 0, %s17
      %p14 = scmp.ge.s32.totalorder %s13, 4
      %s23 = sphi 0, %s25
      %s26 = sphi 0, %s23
      %s27 = sphi 0, %s26
      %s43 = sphi 0, %s27
      %s49 = sphi 0, %s51
      %s52 = sphi 0, %s49
      %s53 = sphi 0, %s52
      %s69 = sphi 0, %s53
      %s73 = sphi 0, %s73
      %s75 = sphi 0, %s73
      %s76 = sphi 0, %s75
      %s90 = sphi 0, %s76
      %s94 = sphi 0, %s94
      %s96 = sphi 0, %s94
      %s97 = sphi 0, %s96
      %s111 = sphi 0, %s97
      %s117 = sphi 0, %s119
      %s120 = sphi 0, %s117
      %s121 = sphi 0, %s120
      %s137 = sphi 0, %s121
    $region4: #{tpu_custom_call.1} parent=1 // loop_header_branch
      %16 = sbr.rel (%p14) target = $region8
    $region5: #{tpu_custom_call.1} parent=1 // loop_body
      %s18 = ssub.s32 %s13, 1
      %s19 = ssub.s32 %s13, 2
      %s20 = sadd.s32 %s13, 1
      %s21 = ssub.s32 %s13, %s20
      %p22 = scmp.eq.s32.totalorder %s21, 0
      %s24 = sadd.s32 %s23, 1
      %s25 = scalar_select %p22, %s23, %s24
      %p28 = pneg %p22
      %p29 = scmp.eq.s32.totalorder %s13, 1
      %p30 = por %p28, %p29
      %p31 = scmp.ne.s32.totalorder %s23, %s26
      %p32 = scmp.eq.s32.totalorder %s13, 0
      %p33 = por %p31, %p32
      %p34 = scmp.ne.s32.totalorder %s23, %s26
      %p35 = scmp.eq.s32.totalorder %s18, 1
      %p36 = por %p34, %p35
      %p37 = scmp.ne.s32.totalorder %s26, %s27
      %p38 = scmp.eq.s32.totalorder %s18, 0
      %p39 = por %p37, %p38
      %p40 = scmp.ne.s32.totalorder %s26, %s27
      %p41 = scmp.eq.s32.totalorder %s19, 1
      %p42 = por %p40, %p41
      %p44 = scmp.ne.s32.totalorder %s27, %s43
      %p45 = scmp.eq.s32.totalorder %s19, 0
      %p46 = por %p44, %p45
      %s47 = ssub.s32 %s13, %s20
      %p48 = scmp.eq.s32.totalorder %s47, 0
      %s50 = sadd.s32 %s49, 1
      %s51 = scalar_select %p48, %s49, %s50
      %p54 = pneg %p48
      %p55 = scmp.eq.s32.totalorder %s13, 1
      %p56 = por %p54, %p55
      %p57 = scmp.ne.s32.totalorder %s49, %s52
      %p58 = scmp.eq.s32.totalorder %s13, 0
      %p59 = por %p57, %p58
      %p60 = scmp.ne.s32.totalorder %s49, %s52
      %p61 = scmp.eq.s32.totalorder %s18, 1
      %p62 = por %p60, %p61
      %p63 = scmp.ne.s32.totalorder %s52, %s53
      %p64 = scmp.eq.s32.totalorder %s18, 0
      %p65 = por %p63, %p64
      %p66 = scmp.ne.s32.totalorder %s52, %s53
      %p67 = scmp.eq.s32.totalorder %s19, 1
      %p68 = por %p66, %p67
      %p70 = scmp.ne.s32.totalorder %s53, %s69
      %p71 = scmp.eq.s32.totalorder %s19, 0
      %p72 = por %p70, %p71
      %s74 = sadd.s32 %s73, 1
      %p77 = scmp.eq.s32.totalorder %s13, 1
      %p78 = scmp.ne.s32.totalorder %s73, %s75
      %p79 = scmp.eq.s32.totalorder %s13, 0
      %p80 = por %p78, %p79
      %p81 = scmp.ne.s32.totalorder %s73, %s75
      %p82 = scmp.eq.s32.totalorder %s18, 1
      %p83 = por %p81, %p82
      %p84 = scmp.ne.s32.totalorder %s75, %s76
      %p85 = scmp.eq.s32.totalorder %s18, 0
      %p86 = por %p84, %p85
      %p87 = scmp.ne.s32.totalorder %s75, %s76
      %p88 = scmp.eq.s32.totalorder %s19, 1
      %p89 = por %p87, %p88
      %p91 = scmp.ne.s32.totalorder %s76, %s90
      %p92 = scmp.eq.s32.totalorder %s19, 0
      %p93 = por %p91, %p92
      %s95 = sadd.s32 %s94, 1
      %p98 = scmp.eq.s32.totalorder %s13, 1
      %p99 = scmp.ne.s32.totalorder %s94, %s96
      %p100 = scmp.eq.s32.totalorder %s13, 0
      %p101 = por %p99, %p100
      %p102 = scmp.ne.s32.totalorder %s94, %s96
      %p103 = scmp.eq.s32.totalorder %s18, 1
      %p104 = por %p102, %p103
      %p105 = scmp.ne.s32.totalorder %s96, %s97
      %p106 = scmp.eq.s32.totalorder %s18, 0
      %p107 = por %p105, %p106
      %p108 = scmp.ne.s32.totalorder %s96, %s97
      %p109 = scmp.eq.s32.totalorder %s19, 1
      %p110 = por %p108, %p109
      %p112 = scmp.ne.s32.totalorder %s97, %s111
      %p113 = scmp.eq.s32.totalorder %s19, 0
      %p114 = por %p112, %p113
      %s115 = ssub.s32 %s13, %s20
      %p116 = scmp.eq.s32.totalorder %s115, 0
      %s118 = sadd.s32 %s117, 1
      %s119 = scalar_select %p116, %s117, %s118
      %p122 = pneg %p116
      %p123 = scmp.eq.s32.totalorder %s13, 1
      %p124 = por %p122, %p123
      %p125 = scmp.ne.s32.totalorder %s117, %s120
      %p126 = scmp.eq.s32.totalorder %s13, 0
      %p127 = por %p125, %p126
      %p128 = scmp.ne.s32.totalorder %s117, %s120
      %p129 = scmp.eq.s32.totalorder %s18, 1
      %p130 = por %p128, %p129
      %p131 = scmp.ne.s32.totalorder %s120, %s121
      %p132 = scmp.eq.s32.totalorder %s18, 0
      %p133 = por %p131, %p132
      %p134 = scmp.ne.s32.totalorder %s120, %s121
      %p135 = scmp.eq.s32.totalorder %s19, 1
      %p136 = por %p134, %p135
      %p138 = scmp.ne.s32.totalorder %s121, %s137
      %p139 = scmp.eq.s32.totalorder %s19, 0
      %p140 = por %p138, %p139
      %p141 = scmp.le.s32.totalorder 1, %s13
      %p142 = scmp.lt.s32.totalorder %s13, 3
      %p143 = pnand %p141, %p142
      %p144 = pneg %p143
      // Predicated region
      $region9: #{tpu_custom_call.1} parent=5 // pred_check
        _
      $region10: #{tpu_custom_call.1} parent=5 // pred_check_branch
        %146 = sbr.rel (%p143) target = $region12
      $region11: #{tpu_custom_call.1} parent=5 // pred_region
        %s147 = ssub.s32 %s13, 1
        // Predicated region
        $region13: #{tpu_custom_call.1} parent=11 // pred_check
          %p148 = pneg %p86
        $region14: #{tpu_custom_call.1} parent=11 // pred_check_branch
          %150 = sbr.rel (%p148) target = $region16
        $region15: #{tpu_custom_call.1} parent=11 // pred_region
          _
        $region16: #{tpu_custom_call.1} parent=11 // pred_fallthru
          _
        // Predicated region
        $region17: #{tpu_custom_call.1} parent=11 // pred_check
          %p151 = pneg %p107
        $region18: #{tpu_custom_call.1} parent=11 // pred_check_branch
          %153 = sbr.rel (%p151) target = $region20
        $region19: #{tpu_custom_call.1} parent=11 // pred_region
          _
        $region20: #{tpu_custom_call.1} parent=11 // pred_fallthru
          _
      $region12: #{tpu_custom_call.1} parent=5 // pred_fallthru
        _
      %p154 = scmp.lt.s32.totalorder %s13, 2
      // Predicated region
      $region21: #{tpu_custom_call.1} parent=5 // pred_check
        %p155 = pneg %p154
      $region22: #{tpu_custom_call.1} parent=5 // pred_check_branch
        %157 = sbr.rel (%p155) target = $region24
      $region23: #{tpu_custom_call.1} parent=5 // pred_region
        // Predicated region
        $region25: #{tpu_custom_call.1} parent=23 // pred_check
          %p158 = pneg %p33
        $region26: #{tpu_custom_call.1} parent=23 // pred_check_branch
          %160 = sbr.rel (%p158) target = $region28
        $region27: #{tpu_custom_call.1} parent=23 // pred_region
          %s161 = smul.u32 4, %s13
          %p162 = scmp.lt.s32.totalorder %s161, 7
          %s163 = scalar_select %p162, %s161, 7
          %s164 = scalar_lea.vmem %s0, %s163
          %s165 = smul.u32 4, %s13
        $region28: #{tpu_custom_call.1} parent=23 // pred_fallthru
          _
        // Predicated region
        $region29: #{tpu_custom_call.1} parent=23 // pred_check
          %p166 = pneg %p59
        $region30: #{tpu_custom_call.1} parent=23 // pred_check_branch
          %168 = sbr.rel (%p166) target = $region32
        $region31: #{tpu_custom_call.1} parent=23 // pred_region
          %s169 = smul.u32 4, %s13
          %p170 = scmp.lt.s32.totalorder %s169, 7
          %s171 = scalar_select %p170, %s169, 7
          %s172 = scalar_lea.vmem %s1, %s171
          %s173 = smul.u32 4, %s13
        $region32: #{tpu_custom_call.1} parent=23 // pred_fallthru
          _
      $region24: #{tpu_custom_call.1} parent=5 // pred_fallthru
        _
      %p174 = scmp.le.s32.totalorder 1, %s13
      %p175 = scmp.lt.s32.totalorder %s13, 3
      %p176 = pnand %p174, %p175
      %p177 = pneg %p176
      // Predicated region
      $region33: #{tpu_custom_call.1} parent=5 // pred_check
        _
      $region34: #{tpu_custom_call.1} parent=5 // pred_check_branch
        %179 = sbr.rel (%p176) target = $region36
      $region35: #{tpu_custom_call.1} parent=5 // pred_region
        %s180 = ssub.s32 %s13, 1
        %s181 = smul.u32 4, %s18
        %p182 = scmp.lt.s32.totalorder %s181, 7
        %s183 = scalar_select %p182, %s181, 7
        %s184 = scalar_lea.vmem %s0, %s183
        %p185 = pneg %p39
        %p186 = pneg %p36
        %s187 = smul.u32 4, %s18
        %p188 = scmp.lt.s32.totalorder %s187, 7
        %s189 = scalar_select %p188, %s187, 7
        %s190 = scalar_lea.vmem %s1, %s189
        %p191 = pneg %p65
        %p192 = pneg %p62
        %p193 = pneg %p86
        %p194 = pneg %p83
        %p195 = pneg %p107
        %p196 = pneg %p104
        %p197 = pneg %p133
        %p198 = pneg %p130
        %s199 = sand.u32 %s120, 1
        %s200 = scalar_lea.sflag [#allocation3], %s199
        %s201 = sand.u32 %s120, 1
        %s202 = smul.addr %s201, 4
        %s203 = scalar_lea.vmem [#allocation2], %s202
        %s204 = smul.u32 4, %s18
        %p205 = scmp.lt.s32.totalorder %s204, 7
        %s206 = scalar_select %p205, %s204, 7
        %s207 = scalar_lea.vmem %s0, %s206
        %s208 = smul.u32 4, %s18
        %s209 = smul.u32 4, %s18
        %p210 = scmp.lt.s32.totalorder %s209, 7
        %s211 = scalar_select %p210, %s209, 7
        %s212 = scalar_lea.vmem %s1, %s211
        %s213 = smul.u32 4, %s18
        %s214 = smul.u32 4, %s18
        %v215 = vld [vmem:[%s207] sm:$0xf]
        %v216 = vld [vmem:[%s212] sm:$0xf]
        %v217 = vld [vmem:[%s3] sm:$0xff]
        %v218 = vld [vmem:[%s3 + $0x8] sm:$0xff]
        %v219 = vld [vmem:[%s3 + $0x10] sm:$0xff]
        %v220 = vld [vmem:[%s3 + $0x18] sm:$0xff]
        %v221 = vld [vmem:[%s3 + $0x20] sm:$0xff]
        %v222 = vld [vmem:[%s3 + $0x28] sm:$0xff]
        %v223 = vld [vmem:[%s3 + $0x30] sm:$0x3]
        %225 = vset.pattern.permute.xlu0 0
        %226 = vperm.xlu0 %225, %v217
        %v227 = vpop.permute.xlu0 %226
        %230 = vset.pattern.permute.xlu0 0
        %231 = vperm.xlu0 %230, %v218
        %v232 = vpop.permute.xlu0 %231
        %235 = vset.pattern.permute.xlu0 0
        %236 = vperm.xlu0 %235, %v219
        %v237 = vpop.permute.xlu0 %236
        %240 = vset.pattern.permute.xlu0 0
        %241 = vperm.xlu0 %240, %v220
        %v242 = vpop.permute.xlu0 %241
        %245 = vset.pattern.permute.xlu0 0
        %246 = vperm.xlu0 %245, %v221
        %v247 = vpop.permute.xlu0 %246
        %250 = vset.pattern.permute.xlu0 0
        %251 = vperm.xlu0 %250, %v222
        %v252 = vpop.permute.xlu0 %251
        %255 = vset.pattern.permute.xlu0 0
        %256 = vperm.xlu0 %255, %v223
        %v257 = vpop.permute.xlu0 %256
        %v260 = vlaneseq
        %v261 = vshrl.u32 %v260, 7
        %v262 = vsub.s32 0, %v261
        %v263 = vrot.slane %v215, %v262
        %v264 = vlaneseq
        %v265 = vshrl.u32 %v264, 7
        %v266 = vsub.s32 1, %v265
        %v267 = vrot.slane %v215, %v266
        %v268 = vlaneseq
        %v269 = vshrl.u32 %v268, 7
        %v270 = vsub.s32 2, %v269
        %v271 = vrot.slane %v215, %v270
        %v272 = vlaneseq
        %v273 = vshrl.u32 %v272, 7
        %v274 = vsub.s32 3, %v273
        %v275 = vrot.slane %v215, %v274
        %v280 = vmul.f32 %v227, %v263
        %v281 = vmul.f32 %v227, %v267
        %v282 = vmul.f32 %v227, %v271
        %v283 = vmul.f32 %v227, %v275
        %v284 = vmul.f32 %v232, %v263
        %v285 = vmul.f32 %v232, %v267
        %v286 = vmul.f32 %v232, %v271
        %v287 = vmul.f32 %v232, %v275
        %v288 = vmul.f32 %v237, %v263
        %v289 = vmul.f32 %v237, %v267
        %v290 = vmul.f32 %v237, %v271
        %v291 = vmul.f32 %v237, %v275
        %v292 = vmul.f32 %v242, %v263
        %v293 = vmul.f32 %v242, %v267
        %v294 = vmul.f32 %v242, %v271
        %v295 = vmul.f32 %v242, %v275
        %v296 = vmul.f32 %v247, %v263
        %v297 = vmul.f32 %v247, %v267
        %v298 = vmul.f32 %v247, %v271
        %v299 = vmul.f32 %v247, %v275
        %v300 = vmul.f32 %v252, %v263
        %v301 = vmul.f32 %v252, %v267
        %v302 = vmul.f32 %v252, %v271
        %v303 = vmul.f32 %v252, %v275
        %v304 = vmul.f32 %v257, %v263
        %v305 = vmul.f32 %v257, %v267
        %v306 = vmul.f32 %v257, %v271
        %v307 = vmul.f32 %v257, %v275
        %308 = vset.pattern.permute.xlu0 1
        %309 = vperm.xlu0 %308, %v217
        %v310 = vpop.permute.xlu0 %309
        %312 = vset.pattern.permute.xlu0 1
        %313 = vperm.xlu0 %312, %v218
        %v314 = vpop.permute.xlu0 %313
        %316 = vset.pattern.permute.xlu0 1
        %317 = vperm.xlu0 %316, %v219
        %v318 = vpop.permute.xlu0 %317
        %320 = vset.pattern.permute.xlu0 1
        %321 = vperm.xlu0 %320, %v220
        %v322 = vpop.permute.xlu0 %321
        %324 = vset.pattern.permute.xlu0 1
        %325 = vperm.xlu0 %324, %v221
        %v326 = vpop.permute.xlu0 %325
        %328 = vset.pattern.permute.xlu0 1
        %329 = vperm.xlu0 %328, %v222
        %v330 = vpop.permute.xlu0 %329
        %332 = vset.pattern.permute.xlu0 1
        %333 = vperm.xlu0 %332, %v223
        %v334 = vpop.permute.xlu0 %333
        %v337 = vlaneseq
        %v338 = vshrl.u32 %v337, 7
        %v339 = vsub.s32 0, %v338
        %v340 = vrot.slane %v216, %v339
        %v341 = vlaneseq
        %v342 = vshrl.u32 %v341, 7
        %v343 = vsub.s32 1, %v342
        %v344 = vrot.slane %v216, %v343
        %v345 = vlaneseq
        %v346 = vshrl.u32 %v345, 7
        %v347 = vsub.s32 2, %v346
        %v348 = vrot.slane %v216, %v347
        %v349 = vlaneseq
        %v350 = vshrl.u32 %v349, 7
        %v351 = vsub.s32 3, %v350
        %v352 = vrot.slane %v216, %v351
        %v357 = vmul.f32 %v310, %v340
        %v358 = vmul.f32 %v310, %v344
        %v359 = vmul.f32 %v310, %v348
        %v360 = vmul.f32 %v310, %v352
        %v361 = vmul.f32 %v314, %v340
        %v362 = vmul.f32 %v314, %v344
        %v363 = vmul.f32 %v314, %v348
        %v364 = vmul.f32 %v314, %v352
        %v365 = vmul.f32 %v318, %v340
        %v366 = vmul.f32 %v318, %v344
        %v367 = vmul.f32 %v318, %v348
        %v368 = vmul.f32 %v318, %v352
        %v369 = vmul.f32 %v322, %v340
        %v370 = vmul.f32 %v322, %v344
        %v371 = vmul.f32 %v322, %v348
        %v372 = vmul.f32 %v322, %v352
        %v373 = vmul.f32 %v326, %v340
        %v374 = vmul.f32 %v326, %v344
        %v375 = vmul.f32 %v326, %v348
        %v376 = vmul.f32 %v326, %v352
        %v377 = vmul.f32 %v330, %v340
        %v378 = vmul.f32 %v330, %v344
        %v379 = vmul.f32 %v330, %v348
        %v380 = vmul.f32 %v330, %v352
        %v381 = vmul.f32 %v334, %v340
        %v382 = vmul.f32 %v334, %v344
        %v383 = vmul.f32 %v334, %v348
        %v384 = vmul.f32 %v334, %v352
        %v385 = vadd.f32 %v280, %v357
        %v386 = vadd.f32 %v281, %v358
        %v387 = vadd.f32 %v282, %v359
        %v388 = vadd.f32 %v283, %v360
        %v389 = vadd.f32 %v284, %v361
        %v390 = vadd.f32 %v285, %v362
        %v391 = vadd.f32 %v286, %v363
        %v392 = vadd.f32 %v287, %v364
        %v393 = vadd.f32 %v288, %v365
        %v394 = vadd.f32 %v289, %v366
        %v395 = vadd.f32 %v290, %v367
        %v396 = vadd.f32 %v291, %v368
        %v397 = vadd.f32 %v292, %v369
        %v398 = vadd.f32 %v293, %v370
        %v399 = vadd.f32 %v294, %v371
        %v400 = vadd.f32 %v295, %v372
        %v401 = vadd.f32 %v296, %v373
        %v402 = vadd.f32 %v297, %v374
        %v403 = vadd.f32 %v298, %v375
        %v404 = vadd.f32 %v299, %v376
        %v405 = vadd.f32 %v300, %v377
        %v406 = vadd.f32 %v301, %v378
        %v407 = vadd.f32 %v302, %v379
        %v408 = vadd.f32 %v303, %v380
        %v409 = vadd.f32 %v304, %v381
        %v410 = vadd.f32 %v305, %v382
        %v411 = vadd.f32 %v306, %v383
        %v412 = vadd.f32 %v307, %v384
        %413 = vset.pattern.permute.xlu0 2
        %414 = vperm.xlu0 %413, %v217
        %v415 = vpop.permute.xlu0 %414
        %417 = vset.pattern.permute.xlu0 2
        %418 = vperm.xlu0 %417, %v218
        %v419 = vpop.permute.xlu0 %418
        %421 = vset.pattern.permute.xlu0 2
        %422 = vperm.xlu0 %421, %v219
        %v423 = vpop.permute.xlu0 %422
        %425 = vset.pattern.permute.xlu0 2
        %426 = vperm.xlu0 %425, %v220
        %v427 = vpop.permute.xlu0 %426
        %429 = vset.pattern.permute.xlu0 2
        %430 = vperm.xlu0 %429, %v221
        %v431 = vpop.permute.xlu0 %430
        %433 = vset.pattern.permute.xlu0 2
        %434 = vperm.xlu0 %433, %v222
        %v435 = vpop.permute.xlu0 %434
        %437 = vset.pattern.permute.xlu0 2
        %438 = vperm.xlu0 %437, %v223
        %v439 = vpop.permute.xlu0 %438
        %v441 = vadd.f32 %v385, %v415
        %v442 = vadd.f32 %v386, %v415
        %v443 = vadd.f32 %v387, %v415
        %v444 = vadd.f32 %v388, %v415
        %v445 = vadd.f32 %v389, %v419
        %v446 = vadd.f32 %v390, %v419
        %v447 = vadd.f32 %v391, %v419
        %v448 = vadd.f32 %v392, %v419
        %v449 = vadd.f32 %v393, %v423
        %v450 = vadd.f32 %v394, %v423
        %v451 = vadd.f32 %v395, %v423
        %v452 = vadd.f32 %v396, %v423
        %v453 = vadd.f32 %v397, %v427
        %v454 = vadd.f32 %v398, %v427
        %v455 = vadd.f32 %v399, %v427
        %v456 = vadd.f32 %v400, %v427
        %v457 = vadd.f32 %v401, %v431
        %v458 = vadd.f32 %v402, %v431
        %v459 = vadd.f32 %v403, %v431
        %v460 = vadd.f32 %v404, %v431
        %v461 = vadd.f32 %v405, %v435
        %v462 = vadd.f32 %v406, %v435
        %v463 = vadd.f32 %v407, %v435
        %v464 = vadd.f32 %v408, %v435
        %v465 = vadd.f32 %v409, %v439
        %v466 = vadd.f32 %v410, %v439
        %v467 = vadd.f32 %v411, %v439
        %v468 = vadd.f32 %v412, %v439
        %v469 = vadd.f32 %v441, %v445
        %v470 = vadd.f32 %v469, %v449
        %v471 = vadd.f32 %v470, %v453
        %v472 = vadd.f32 %v471, %v457
        %v473 = vadd.f32 %v472, %v461
        %vm474 = vcmask 1041408
        %v475 = vsel %vm474, %v465, 0.0
        %v476 = vadd.f32 %v473, %v475
        %v477 = vrot.slane %v476, 4
        %v478 = vadd.f32 %v476, %v477
        %v479 = vrot.slane %v478, 2
        %v480 = vadd.f32 %v478, %v479
        %v481 = vrot.slane %v480, 1
        %v482 = vadd.f32 %v480, %v481
        %v483 = vadd.f32 %v442, %v446
        %v484 = vadd.f32 %v483, %v450
        %v485 = vadd.f32 %v484, %v454
        %v486 = vadd.f32 %v485, %v458
        %v487 = vadd.f32 %v486, %v462
        %v488 = vsel %vm474, %v466, 0.0
        %v489 = vadd.f32 %v487, %v488
        %v490 = vrot.slane %v489, 4
        %v491 = vadd.f32 %v489, %v490
        %v492 = vrot.slane %v491, 2
        %v493 = vadd.f32 %v491, %v492
        %v494 = vrot.slane %v493, 1
        %v495 = vadd.f32 %v493, %v494
        %v496 = vadd.f32 %v443, %v447
        %v497 = vadd.f32 %v496, %v451
        %v498 = vadd.f32 %v497, %v455
        %v499 = vadd.f32 %v498, %v459
        %v500 = vadd.f32 %v499, %v463
        %v501 = vsel %vm474, %v467, 0.0
        %v502 = vadd.f32 %v500, %v501
        %v503 = vrot.slane %v502, 4
        %v504 = vadd.f32 %v502, %v503
        %v505 = vrot.slane %v504, 2
        %v506 = vadd.f32 %v504, %v505
        %v507 = vrot.slane %v506, 1
        %v508 = vadd.f32 %v506, %v507
        %v509 = vadd.f32 %v444, %v448
        %v510 = vadd.f32 %v509, %v452
        %v511 = vadd.f32 %v510, %v456
        %v512 = vadd.f32 %v511, %v460
        %v513 = vadd.f32 %v512, %v464
        %v514 = vsel %vm474, %v468, 0.0
        %v515 = vadd.f32 %v513, %v514
        %v516 = vrot.slane %v515, 4
        %v517 = vadd.f32 %v515, %v516
        %v518 = vrot.slane %v517, 2
        %v519 = vadd.f32 %v517, %v518
        %v520 = vrot.slane %v519, 1
        %v521 = vadd.f32 %v519, %v520
        %v522 = vmul.f32 %v441, %v441
        %v523 = vmul.f32 %v442, %v442
        %v524 = vmul.f32 %v443, %v443
        %v525 = vmul.f32 %v444, %v444
        %v526 = vmul.f32 %v445, %v445
        %v527 = vmul.f32 %v446, %v446
        %v528 = vmul.f32 %v447, %v447
        %v529 = vmul.f32 %v448, %v448
        %v530 = vmul.f32 %v449, %v449
        %v531 = vmul.f32 %v450, %v450
        %v532 = vmul.f32 %v451, %v451
        %v533 = vmul.f32 %v452, %v452
        %v534 = vmul.f32 %v453, %v453
        %v535 = vmul.f32 %v454, %v454
        %v536 = vmul.f32 %v455, %v455
        %v537 = vmul.f32 %v456, %v456
        %v538 = vmul.f32 %v457, %v457
        %v539 = vmul.f32 %v458, %v458
        %v540 = vmul.f32 %v459, %v459
        %v541 = vmul.f32 %v460, %v460
        %v542 = vmul.f32 %v461, %v461
        %v543 = vmul.f32 %v462, %v462
        %v544 = vmul.f32 %v463, %v463
        %v545 = vmul.f32 %v464, %v464
        %v546 = vmul.f32 %v465, %v465
        %v547 = vmul.f32 %v466, %v466
        %v548 = vmul.f32 %v467, %v467
        %v549 = vmul.f32 %v468, %v468
        %v550 = vadd.f32 %v522, %v526
        %v551 = vadd.f32 %v550, %v530
        %v552 = vadd.f32 %v551, %v534
        %v553 = vadd.f32 %v552, %v538
        %v554 = vadd.f32 %v553, %v542
        %v555 = vsel %vm474, %v546, 0.0
        %v556 = vadd.f32 %v554, %v555
        %v557 = vrot.slane %v556, 4
        %v558 = vadd.f32 %v556, %v557
        %v559 = vrot.slane %v558, 2
        %v560 = vadd.f32 %v558, %v559
        %v561 = vrot.slane %v560, 1
        %v562 = vadd.f32 %v560, %v561
        %v563 = vadd.f32 %v523, %v527
        %v564 = vadd.f32 %v563, %v531
        %v565 = vadd.f32 %v564, %v535
        %v566 = vadd.f32 %v565, %v539
        %v567 = vadd.f32 %v566, %v543
        %v568 = vsel %vm474, %v547, 0.0
        %v569 = vadd.f32 %v567, %v568
        %v570 = vrot.slane %v569, 4
        %v571 = vadd.f32 %v569, %v570
        %v572 = vrot.slane %v571, 2
        %v573 = vadd.f32 %v571, %v572
        %v574 = vrot.slane %v573, 1
        %v575 = vadd.f32 %v573, %v574
        %v576 = vadd.f32 %v524, %v528
        %v577 = vadd.f32 %v576, %v532
        %v578 = vadd.f32 %v577, %v536
        %v579 = vadd.f32 %v578, %v540
        %v580 = vadd.f32 %v579, %v544
        %v581 = vsel %vm474, %v548, 0.0
        %v582 = vadd.f32 %v580, %v581
        %v583 = vrot.slane %v582, 4
        %v584 = vadd.f32 %v582, %v583
        %v585 = vrot.slane %v584, 2
        %v586 = vadd.f32 %v584, %v585
        %v587 = vrot.slane %v586, 1
        %v588 = vadd.f32 %v586, %v587
        %v589 = vadd.f32 %v525, %v529
        %v590 = vadd.f32 %v589, %v533
        %v591 = vadd.f32 %v590, %v537
        %v592 = vadd.f32 %v591, %v541
        %v593 = vadd.f32 %v592, %v545
        %v594 = vsel %vm474, %v549, 0.0
        %v595 = vadd.f32 %v593, %v594
        %v596 = vrot.slane %v595, 4
        %v597 = vadd.f32 %v595, %v596
        %v598 = vrot.slane %v597, 2
        %v599 = vadd.f32 %v597, %v598
        %v600 = vrot.slane %v599, 1
        %v601 = vadd.f32 %v599, %v600
        %v602 = vmul.f32 %v482, 0.02
        %v603 = vmul.f32 %v495, 0.02
        %v604 = vmul.f32 %v508, 0.02
        %v605 = vmul.f32 %v521, 0.02
        %v606 = vmul.f32 %v562, 0.02
        %v607 = vmul.f32 %v575, 0.02
        %v608 = vmul.f32 %v588, 0.02
        %v609 = vmul.f32 %v601, 0.02
        %v610 = vmul.f32 %v602, %v602
        %v611 = vmul.f32 %v603, %v603
        %v612 = vmul.f32 %v604, %v604
        %v613 = vmul.f32 %v605, %v605
        %v614 = vsub.f32 %v606, %v610
        %v615 = vsub.f32 %v607, %v611
        %v616 = vsub.f32 %v608, %v612
        %v617 = vsub.f32 %v609, %v613
        %v618 = vmax.f32 %v614, 0.0
        %v619 = vmax.f32 %v615, 0.0
        %v620 = vmax.f32 %v616, 0.0
        %v621 = vmax.f32 %v617, 0.0
        %v622 = vsub.f32 %v441, %v602
        %v623 = vsub.f32 %v442, %v603
        %v624 = vsub.f32 %v443, %v604
        %v625 = vsub.f32 %v444, %v605
        %v626 = vsub.f32 %v445, %v602
        %v627 = vsub.f32 %v446, %v603
        %v628 = vsub.f32 %v447, %v604
        %v629 = vsub.f32 %v448, %v605
        %v630 = vsub.f32 %v449, %v602
        %v631 = vsub.f32 %v450, %v603
        %v632 = vsub.f32 %v451, %v604
        %v633 = vsub.f32 %v452, %v605
        %v634 = vsub.f32 %v453, %v602
        %v635 = vsub.f32 %v454, %v603
        %v636 = vsub.f32 %v455, %v604
        %v637 = vsub.f32 %v456, %v605
        %v638 = vsub.f32 %v457, %v602
        %v639 = vsub.f32 %v458, %v603
        %v640 = vsub.f32 %v459, %v604
        %v641 = vsub.f32 %v460, %v605
        %v642 = vsub.f32 %v461, %v602
        %v643 = vsub.f32 %v462, %v603
        %v644 = vsub.f32 %v463, %v604
        %v645 = vsub.f32 %v464, %v605
        %v646 = vsub.f32 %v465, %v602
        %v647 = vsub.f32 %v466, %v603
        %v648 = vsub.f32 %v467, %v604
        %v649 = vsub.f32 %v468, %v605
        %v650 = vadd.f32 %v618, 1e-05
        %v651 = vadd.f32 %v619, 1e-05
        %v652 = vadd.f32 %v620, 1e-05
        %v653 = vadd.f32 %v621, 1e-05
        %v654 = vrsqrt.pop %v650
        %v655 = vrsqrt.pop %v651
        %v656 = vrsqrt.pop %v652
        %v657 = vrsqrt.pop %v653
        %v658 = vmul.f32 %v622, %v654
        %v659 = vmul.f32 %v623, %v655
        %v660 = vmul.f32 %v624, %v656
        %v661 = vmul.f32 %v625, %v657
        %v662 = vmul.f32 %v626, %v654
        %v663 = vmul.f32 %v627, %v655
        %v664 = vmul.f32 %v628, %v656
        %v665 = vmul.f32 %v629, %v657
        %v666 = vmul.f32 %v630, %v654
        %v667 = vmul.f32 %v631, %v655
        %v668 = vmul.f32 %v632, %v656
        %v669 = vmul.f32 %v633, %v657
        %v670 = vmul.f32 %v634, %v654
        %v671 = vmul.f32 %v635, %v655
        %v672 = vmul.f32 %v636, %v656
        %v673 = vmul.f32 %v637, %v657
        %v674 = vmul.f32 %v638, %v654
        %v675 = vmul.f32 %v639, %v655
        %v676 = vmul.f32 %v640, %v656
        %v677 = vmul.f32 %v641, %v657
        %v678 = vmul.f32 %v642, %v654
        %v679 = vmul.f32 %v643, %v655
        %v680 = vmul.f32 %v644, %v656
        %v681 = vmul.f32 %v645, %v657
        %v682 = vmul.f32 %v646, %v654
        %v683 = vmul.f32 %v647, %v655
        %v684 = vmul.f32 %v648, %v656
        %v685 = vmul.f32 %v649, %v657
        %686 = vset.pattern.permute.xlu0 3
        %687 = vperm.xlu0 %686, %v217
        %v688 = vpop.permute.xlu0 %687
        %690 = vset.pattern.permute.xlu0 3
        %691 = vperm.xlu0 %690, %v218
        %v692 = vpop.permute.xlu0 %691
        %694 = vset.pattern.permute.xlu0 3
        %695 = vperm.xlu0 %694, %v219
        %v696 = vpop.permute.xlu0 %695
        %698 = vset.pattern.permute.xlu0 3
        %699 = vperm.xlu0 %698, %v220
        %v700 = vpop.permute.xlu0 %699
        %702 = vset.pattern.permute.xlu0 3
        %703 = vperm.xlu0 %702, %v221
        %v704 = vpop.permute.xlu0 %703
        %706 = vset.pattern.permute.xlu0 3
        %707 = vperm.xlu0 %706, %v222
        %v708 = vpop.permute.xlu0 %707
        %710 = vset.pattern.permute.xlu0 3
        %711 = vperm.xlu0 %710, %v223
        %v712 = vpop.permute.xlu0 %711
        %v714 = vmul.f32 %v658, %v688
        %v715 = vmul.f32 %v659, %v688
        %v716 = vmul.f32 %v660, %v688
        %v717 = vmul.f32 %v661, %v688
        %v718 = vmul.f32 %v662, %v692
        %v719 = vmul.f32 %v663, %v692
        %v720 = vmul.f32 %v664, %v692
        %v721 = vmul.f32 %v665, %v692
        %v722 = vmul.f32 %v666, %v696
        %v723 = vmul.f32 %v667, %v696
        %v724 = vmul.f32 %v668, %v696
        %v725 = vmul.f32 %v669, %v696
        %v726 = vmul.f32 %v670, %v700
        %v727 = vmul.f32 %v671, %v700
        %v728 = vmul.f32 %v672, %v700
        %v729 = vmul.f32 %v673, %v700
        %v730 = vmul.f32 %v674, %v704
        %v731 = vmul.f32 %v675, %v704
        %v732 = vmul.f32 %v676, %v704
        %v733 = vmul.f32 %v677, %v704
        %v734 = vmul.f32 %v678, %v708
        %v735 = vmul.f32 %v679, %v708
        %v736 = vmul.f32 %v680, %v708
        %v737 = vmul.f32 %v681, %v708
        %v738 = vmul.f32 %v682, %v712
        %v739 = vmul.f32 %v683, %v712
        %v740 = vmul.f32 %v684, %v712
        %v741 = vmul.f32 %v685, %v712
        %742 = vset.pattern.permute.xlu0 4
        %743 = vperm.xlu0 %742, %v217
        %v744 = vpop.permute.xlu0 %743
        %746 = vset.pattern.permute.xlu0 4
        %747 = vperm.xlu0 %746, %v218
        %v748 = vpop.permute.xlu0 %747
        %750 = vset.pattern.permute.xlu0 4
        %751 = vperm.xlu0 %750, %v219
        %v752 = vpop.permute.xlu0 %751
        %754 = vset.pattern.permute.xlu0 4
        %755 = vperm.xlu0 %754, %v220
        %v756 = vpop.permute.xlu0 %755
        %758 = vset.pattern.permute.xlu0 4
        %759 = vperm.xlu0 %758, %v221
        %v760 = vpop.permute.xlu0 %759
        %762 = vset.pattern.permute.xlu0 4
        %763 = vperm.xlu0 %762, %v222
        %v764 = vpop.permute.xlu0 %763
        %766 = vset.pattern.permute.xlu0 4
        %767 = vperm.xlu0 %766, %v223
        %v768 = vpop.permute.xlu0 %767
        %v770 = vadd.f32 %v714, %v744
        %v771 = vadd.f32 %v715, %v744
        %v772 = vadd.f32 %v716, %v744
        %v773 = vadd.f32 %v717, %v744
        %v774 = vadd.f32 %v718, %v748
        %v775 = vadd.f32 %v719, %v748
        %v776 = vadd.f32 %v720, %v748
        %v777 = vadd.f32 %v721, %v748
        %v778 = vadd.f32 %v722, %v752
        %v779 = vadd.f32 %v723, %v752
        %v780 = vadd.f32 %v724, %v752
        %v781 = vadd.f32 %v725, %v752
        %v782 = vadd.f32 %v726, %v756
        %v783 = vadd.f32 %v727, %v756
        %v784 = vadd.f32 %v728, %v756
        %v785 = vadd.f32 %v729, %v756
        %v786 = vadd.f32 %v730, %v760
        %v787 = vadd.f32 %v731, %v760
        %v788 = vadd.f32 %v732, %v760
        %v789 = vadd.f32 %v733, %v760
        %v790 = vadd.f32 %v734, %v764
        %v791 = vadd.f32 %v735, %v764
        %v792 = vadd.f32 %v736, %v764
        %v793 = vadd.f32 %v737, %v764
        %v794 = vadd.f32 %v738, %v768
        %v795 = vadd.f32 %v739, %v768
        %v796 = vadd.f32 %v740, %v768
        %v797 = vadd.f32 %v741, %v768
        %v798 = vtanh.pop %v770
        %v799 = vtanh.pop %v771
        %v800 = vtanh.pop %v772
        %v801 = vtanh.pop %v773
        %v802 = vtanh.pop %v774
        %v803 = vtanh.pop %v775
        %v804 = vtanh.pop %v776
        %v805 = vtanh.pop %v777
        %v806 = vtanh.pop %v778
        %v807 = vtanh.pop %v779
        %v808 = vtanh.pop %v780
        %v809 = vtanh.pop %v781
        %v810 = vtanh.pop %v782
        %v811 = vtanh.pop %v783
        %v812 = vtanh.pop %v784
        %v813 = vtanh.pop %v785
        %v814 = vtanh.pop %v786
        %v815 = vtanh.pop %v787
        %v816 = vtanh.pop %v788
        %v817 = vtanh.pop %v789
        %v818 = vtanh.pop %v790
        %v819 = vtanh.pop %v791
        %v820 = vtanh.pop %v792
        %v821 = vtanh.pop %v793
        %v822 = vtanh.pop %v794
        %v823 = vtanh.pop %v795
        %v824 = vtanh.pop %v796
        %v825 = vtanh.pop %v797
        %v826 = vld [vmem:[%s2] sm:$0xff]
        %v827 = vld [vmem:[%s2 + $0x8] sm:$0xff]
        %v828 = vld [vmem:[%s2 + $0x10] sm:$0xff]
        %v829 = vld [vmem:[%s2 + $0x18] sm:$0xff]
        %v830 = vld [vmem:[%s2 + $0x20] sm:$0xff]
        %v831 = vld [vmem:[%s2 + $0x28] sm:$0xff]
        %v832 = vld [vmem:[%s2 + $0x30] sm:$0x3]
        %833 = vset.pattern.permute.xlu0 5
        %834 = vperm.xlu0 %833, %v217
        %v835 = vpop.permute.xlu0 %834
        %837 = vset.pattern.permute.xlu0 5
        %838 = vperm.xlu0 %837, %v218
        %v839 = vpop.permute.xlu0 %838
        %841 = vset.pattern.permute.xlu0 5
        %842 = vperm.xlu0 %841, %v219
        %v843 = vpop.permute.xlu0 %842
        %845 = vset.pattern.permute.xlu0 5
        %846 = vperm.xlu0 %845, %v220
        %v847 = vpop.permute.xlu0 %846
        %849 = vset.pattern.permute.xlu0 5
        %850 = vperm.xlu0 %849, %v221
        %v851 = vpop.permute.xlu0 %850
        %853 = vset.pattern.permute.xlu0 5
        %854 = vperm.xlu0 %853, %v222
        %v855 = vpop.permute.xlu0 %854
        %857 = vset.pattern.permute.xlu0 5
        %858 = vperm.xlu0 %857, %v223
        %v859 = vpop.permute.xlu0 %858
        %vm861 = vcmask 408576
        %v863 = vsel %vm861, %v826, 0
        %v866 = vsel %vm861, %v827, 0
        %v869 = vsel %vm861, %v828, 0
        %v872 = vsel %vm861, %v829, 0
        %v875 = vsel %vm861, %v830, 0
        %v878 = vsel %vm861, %v831, 0
        %v881 = vsel %vm861, %v832, 0
        %v884 = vsel %vm474, %v822, 0
        %v887 = vsel %vm474, %v823, 0
        %v890 = vsel %vm474, %v824, 0
        %v893 = vsel %vm474, %v825, 0
        %895 = vmatprep.subr.mxu0 %v799
        %896 = vmatpush1.msra.mxu0 %v798
        %897 = vmatprep.subr.mxu0 %v803
        %898 = vmatpush1.msra.mxu0 %v802
        %899 = vmatprep.subr.mxu0 %v807
        %900 = vmatpush1.msra.mxu0 %v806
        %901 = vmatprep.subr.mxu0 %v811
        %902 = vmatpush1.msra.mxu0 %v810
        %903 = vmatprep.subr.mxu0 %v815
        %904 = vmatpush1.msra.mxu0 %v814
        %905 = vmatprep.subr.mxu0 %v819
        %906 = vmatpush1.msra.mxu0 %v818
        %907 = vmatprep.subr.mxu0 %v887
        %908 = vmatpush1.msra.mxu0 %v884
        %909 = vmatprep.subr.mxu0 0.0
        %910 = vmatpush1.msra.mxu0 0.0
        %911 = vmatprep.subr.mxu0 0.0
        %912 = vmatpush1.msra.mxu0 0.0
        %913 = vmatprep.subr.mxu0 0.0
        %914 = vmatpush1.msra.mxu0 0.0
        %915 = vmatprep.subr.mxu0 0.0
        %916 = vmatpush1.msra.mxu0 0.0
        %917 = vmatprep.subr.mxu0 0.0
        %918 = vmatpush1.msra.mxu0 0.0
        %919 = vmatprep.subr.mxu0 0.0
        %920 = vmatpush1.msra.mxu0 0.0
        %921 = vmatprep.subr.mxu0 0.0
        %922 = vmatpush1.msra.mxu0 0.0
        %923 = vmatprep.subr.mxu0 0.0
        %924 = vmatpush1.msra.mxu0 0.0
        %925 = vmatprep.subr.mxu0 0.0
        %926 = vmatpush1.msra.mxu0 0.0
        %927 = vmatprep.subr.mxu0 0.0
        %928 = vmatpush1.msra.mxu0 0.0
        %929 = vmatprep.subr.mxu0 0.0
        %930 = vmatpush1.msra.mxu0 0.0
        %931 = vmatprep.subr.mxu0 0.0
        %932 = vmatpush1.msra.mxu0 0.0
        %933 = vmatprep.subr.mxu0 0.0
        %934 = vmatpush1.msra.mxu0 0.0
        %935 = vmatprep.subr.mxu0 0.0
        %936 = vmatpush1.msra.mxu0 0.0
        %937 = vmatprep.subr.mxu0 0.0
        %938 = vmatpush1.msra.mxu0 0.0
        %939 = vmatprep.subr.mxu0 0.0
        %940 = vmatpush1.msra.mxu0 0.0
        %941 = vmatprep.subr.mxu0 0.0
        %942 = vmatpush1.msra.mxu0 0.0
        %943 = vmatprep.subr.mxu0 0.0
        %944 = vmatpush1.msra.mxu0 0.0
        %945 = vmatprep.subr.mxu0 0.0
        %946 = vmatpush1.msra.mxu0 0.0
        %947 = vmatprep.subr.mxu0 0.0
        %948 = vmatpush1.msra.mxu0 0.0
        %949 = vmatprep.subr.mxu0 0.0
        %950 = vmatpush1.msra.mxu0 0.0
        %951 = vmatprep.subr.mxu0 0.0
        %952 = vmatpush1.msra.mxu0 0.0
        %953 = vmatprep.subr.mxu0 0.0
        %954 = vmatpush1.msra.mxu0 0.0
        %955 = vmatprep.subr.mxu0 0.0
        %956 = vmatpush1.msra.mxu0 0.0
        %957 = vmatprep.subr.mxu0 0.0
        %958 = vmatpush1.msra.mxu0 0.0
        %959 = vmatprep.mubr.f32.mxu0 0.0
        %960 = vmatmul.mubr.f32.gmra.mrb[0].mxu0 %v863
        %v961 = vpop.f32.mrb[0].mxu0
        %v962 = vadd.f32 %v835, %v961
        %v963 = vpop.f32.mrb[0].mxu0
        %v964 = vadd.f32 %v835, %v963
        %965 = vmatprep.mubr.f32.mxu0 0.0
        %966 = vmatmul.mubr.f32.gmra.mrb[0].mxu0 %v866
        %v967 = vpop.f32.mrb[0].mxu0
        %v968 = vadd.f32 %v839, %v967
        %v969 = vpop.f32.mrb[0].mxu0
        %v970 = vadd.f32 %v839, %v969
        %971 = vmatprep.mubr.f32.mxu0 0.0
        %972 = vmatmul.mubr.f32.gmra.mrb[0].mxu0 %v869
        %v973 = vpop.f32.mrb[0].mxu0
        %v974 = vadd.f32 %v843, %v973
        %v975 = vpop.f32.mrb[0].mxu0
        %v976 = vadd.f32 %v843, %v975
        %977 = vmatprep.mubr.f32.mxu0 0.0
        %978 = vmatmul.mubr.f32.gmra.mrb[0].mxu0 %v872
        %v979 = vpop.f32.mrb[0].mxu0
        %v980 = vadd.f32 %v847, %v979
        %v981 = vpop.f32.mrb[0].mxu0
        %v982 = vadd.f32 %v847, %v981
        %983 = vmatprep.mubr.f32.mxu0 0.0
        %984 = vmatmul.mubr.f32.gmra.mrb[0].mxu0 %v875
        %v985 = vpop.f32.mrb[0].mxu0
        %v986 = vadd.f32 %v851, %v985
        %v987 = vpop.f32.mrb[0].mxu0
        %v988 = vadd.f32 %v851, %v987
        %989 = vmatprep.mubr.f32.mxu0 0.0
        %990 = vmatmul.mubr.f32.gmra.mrb[0].mxu0 %v878
        %v991 = vpop.f32.mrb[0].mxu0
        %v992 = vadd.f32 %v855, %v991
        %v993 = vpop.f32.mrb[0].mxu0
        %v994 = vadd.f32 %v855, %v993
        %995 = vmatprep.mubr.f32.mxu0 0.0
        %996 = vmatmul.mubr.f32.gmra.mrb[0].mxu0 %v881
        %v997 = vpop.f32.mrb[0].mxu0
        %v998 = vadd.f32 %v859, %v997
        %v999 = vpop.f32.mrb[0].mxu0
        %v1000 = vadd.f32 %v859, %v999
        %1001 = vdwg.mxu0
        %1002 = vmatprep.subr.mxu0 %v801
        %1003 = vmatpush1.msra.mxu0 %v800
        %1004 = vmatprep.subr.mxu0 %v805
        %1005 = vmatpush1.msra.mxu0 %v804
        %1006 = vmatprep.subr.mxu0 %v809
        %1007 = vmatpush1.msra.mxu0 %v808
        %1008 = vmatprep.subr.mxu0 %v813
        %1009 = vmatpush1.msra.mxu0 %v812
        %1010 = vmatprep.subr.mxu0 %v817
        %1011 = vmatpush1.msra.mxu0 %v816
        %1012 = vmatprep.subr.mxu0 %v821
        %1013 = vmatpush1.msra.mxu0 %v820
        %1014 = vmatprep.subr.mxu0 %v893
        %1015 = vmatpush1.msra.mxu0 %v890
        %1016 = vmatprep.subr.mxu0 0.0
        %1017 = vmatpush1.msra.mxu0 0.0
        %1018 = vmatprep.subr.mxu0 0.0
        %1019 = vmatpush1.msra.mxu0 0.0
        %1020 = vmatprep.subr.mxu0 0.0
        %1021 = vmatpush1.msra.mxu0 0.0
        %1022 = vmatprep.subr.mxu0 0.0
        %1023 = vmatpush1.msra.mxu0 0.0
        %1024 = vmatprep.subr.mxu0 0.0
        %1025 = vmatpush1.msra.mxu0 0.0
        %1026 = vmatprep.subr.mxu0 0.0
        %1027 = vmatpush1.msra.mxu0 0.0
        %1028 = vmatprep.subr.mxu0 0.0
        %1029 = vmatpush1.msra.mxu0 0.0
        %1030 = vmatprep.subr.mxu0 0.0
        %1031 = vmatpush1.msra.mxu0 0.0
        %1032 = vmatprep.subr.mxu0 0.0
        %1033 = vmatpush1.msra.mxu0 0.0
        %1034 = vmatprep.subr.mxu0 0.0
        %1035 = vmatpush1.msra.mxu0 0.0
        %1036 = vmatprep.subr.mxu0 0.0
        %1037 = vmatpush1.msra.mxu0 0.0
        %1038 = vmatprep.subr.mxu0 0.0
        %1039 = vmatpush1.msra.mxu0 0.0
        %1040 = vmatprep.subr.mxu0 0.0
        %1041 = vmatpush1.msra.mxu0 0.0
        %1042 = vmatprep.subr.mxu0 0.0
        %1043 = vmatpush1.msra.mxu0 0.0
        %1044 = vmatprep.subr.mxu0 0.0
        %1045 = vmatpush1.msra.mxu0 0.0
        %1046 = vmatprep.subr.mxu0 0.0
        %1047 = vmatpush1.msra.mxu0 0.0
        %1048 = vmatprep.subr.mxu0 0.0
        %1049 = vmatpush1.msra.mxu0 0.0
        %1050 = vmatprep.subr.mxu0 0.0
        %1051 = vmatpush1.msra.mxu0 0.0
        %1052 = vmatprep.subr.mxu0 0.0
        %1053 = vmatpush1.msra.mxu0 0.0
        %1054 = vmatprep.subr.mxu0 0.0
        %1055 = vmatpush1.msra.mxu0 0.0
        %1056 = vmatprep.subr.mxu0 0.0
        %1057 = vmatpush1.msra.mxu0 0.0
        %1058 = vmatprep.subr.mxu0 0.0
        %1059 = vmatpush1.msra.mxu0 0.0
        %1060 = vmatprep.subr.mxu0 0.0
        %1061 = vmatpush1.msra.mxu0 0.0
        %1062 = vmatprep.subr.mxu0 0.0
        %1063 = vmatpush1.msra.mxu0 0.0
        %1064 = vmatprep.subr.mxu0 0.0
        %1065 = vmatpush1.msra.mxu0 0.0
        %1066 = vmatprep.mubr.f32.mxu0 0.0
        %1067 = vmatmul.mubr.f32.gmra.mrb[0].mxu0 %v863
        %v1068 = vpop.f32.mrb[0].mxu0
        %v1069 = vadd.f32 %v835, %v1068
        %v1070 = vpop.f32.mrb[0].mxu0
        %v1071 = vadd.f32 %v835, %v1070
        %1072 = vmatprep.mubr.f32.mxu0 0.0
        %1073 = vmatmul.mubr.f32.gmra.mrb[0].mxu0 %v866
        %v1074 = vpop.f32.mrb[0].mxu0
        %v1075 = vadd.f32 %v839, %v1074
        %v1076 = vpop.f32.mrb[0].mxu0
        %v1077 = vadd.f32 %v839, %v1076
        %1078 = vmatprep.mubr.f32.mxu0 0.0
        %1079 = vmatmul.mubr.f32.gmra.mrb[0].mxu0 %v869
        %v1080 = vpop.f32.mrb[0].mxu0
        %v1081 = vadd.f32 %v843, %v1080
        %v1082 = vpop.f32.mrb[0].mxu0
        %v1083 = vadd.f32 %v843, %v1082
        %1084 = vmatprep.mubr.f32.mxu0 0.0
        %1085 = vmatmul.mubr.f32.gmra.mrb[0].mxu0 %v872
        %v1086 = vpop.f32.mrb[0].mxu0
        %v1087 = vadd.f32 %v847, %v1086
        %v1088 = vpop.f32.mrb[0].mxu0
        %v1089 = vadd.f32 %v847, %v1088
        %1090 = vmatprep.mubr.f32.mxu0 0.0
        %1091 = vmatmul.mubr.f32.gmra.mrb[0].mxu0 %v875
        %v1092 = vpop.f32.mrb[0].mxu0
        %v1093 = vadd.f32 %v851, %v1092
        %v1094 = vpop.f32.mrb[0].mxu0
        %v1095 = vadd.f32 %v851, %v1094
        %1096 = vmatprep.mubr.f32.mxu0 0.0
        %1097 = vmatmul.mubr.f32.gmra.mrb[0].mxu0 %v878
        %v1098 = vpop.f32.mrb[0].mxu0
        %v1099 = vadd.f32 %v855, %v1098
        %v1100 = vpop.f32.mrb[0].mxu0
        %v1101 = vadd.f32 %v855, %v1100
        %1102 = vmatprep.mubr.f32.mxu0 0.0
        %1103 = vmatmul.mubr.f32.gmra.mrb[0].mxu0 %v881
        %v1104 = vpop.f32.mrb[0].mxu0
        %v1105 = vadd.f32 %v859, %v1104
        %v1106 = vpop.f32.mrb[0].mxu0
        %v1107 = vadd.f32 %v859, %v1106
        %1108 = vdwg.mxu0
        %v1109 = vadd.f32 %v962, %v968
        %v1110 = vadd.f32 %v1109, %v974
        %v1111 = vadd.f32 %v1110, %v980
        %v1112 = vadd.f32 %v1111, %v986
        %v1113 = vadd.f32 %v1112, %v992
        %v1114 = vsel %vm474, %v998, 0.0
        %v1115 = vadd.f32 %v1113, %v1114
        %v1116 = vrot.slane %v1115, 4
        %v1117 = vadd.f32 %v1115, %v1116
        %v1118 = vrot.slane %v1117, 2
        %v1119 = vadd.f32 %v1117, %v1118
        %v1120 = vrot.slane %v1119, 1
        %v1121 = vadd.f32 %v1119, %v1120
        %v1122 = vadd.f32 %v964, %v970
        %v1123 = vadd.f32 %v1122, %v976
        %v1124 = vadd.f32 %v1123, %v982
        %v1125 = vadd.f32 %v1124, %v988
        %v1126 = vadd.f32 %v1125, %v994
        %v1127 = vsel %vm474, %v1000, 0.0
        %v1128 = vadd.f32 %v1126, %v1127
        %v1129 = vrot.slane %v1128, 4
        %v1130 = vadd.f32 %v1128, %v1129
        %v1131 = vrot.slane %v1130, 2
        %v1132 = vadd.f32 %v1130, %v1131
        %v1133 = vrot.slane %v1132, 1
        %v1134 = vadd.f32 %v1132, %v1133
        %v1135 = vadd.f32 %v1069, %v1075
        %v1136 = vadd.f32 %v1135, %v1081
        %v1137 = vadd.f32 %v1136, %v1087
        %v1138 = vadd.f32 %v1137, %v1093
        %v1139 = vadd.f32 %v1138, %v1099
        %v1140 = vsel %vm474, %v1105, 0.0
        %v1141 = vadd.f32 %v1139, %v1140
        %v1142 = vrot.slane %v1141, 4
        %v1143 = vadd.f32 %v1141, %v1142
        %v1144 = vrot.slane %v1143, 2
        %v1145 = vadd.f32 %v1143, %v1144
        %v1146 = vrot.slane %v1145, 1
        %v1147 = vadd.f32 %v1145, %v1146
        %v1148 = vadd.f32 %v1071, %v1077
        %v1149 = vadd.f32 %v1148, %v1083
        %v1150 = vadd.f32 %v1149, %v1089
        %v1151 = vadd.f32 %v1150, %v1095
        %v1152 = vadd.f32 %v1151, %v1101
        %v1153 = vsel %vm474, %v1107, 0.0
        %v1154 = vadd.f32 %v1152, %v1153
        %v1155 = vrot.slane %v1154, 4
        %v1156 = vadd.f32 %v1154, %v1155
        %v1157 = vrot.slane %v1156, 2
        %v1158 = vadd.f32 %v1156, %v1157
        %v1159 = vrot.slane %v1158, 1
        %v1160 = vadd.f32 %v1158, %v1159
        %v1161 = vmul.f32 %v962, %v962
        %v1162 = vmul.f32 %v964, %v964
        %v1163 = vmul.f32 %v1069, %v1069
        %v1164 = vmul.f32 %v1071, %v1071
        %v1165 = vmul.f32 %v968, %v968
        %v1166 = vmul.f32 %v970, %v970
        %v1167 = vmul.f32 %v1075, %v1075
        %v1168 = vmul.f32 %v1077, %v1077
        %v1169 = vmul.f32 %v974, %v974
        %v1170 = vmul.f32 %v976, %v976
        %v1171 = vmul.f32 %v1081, %v1081
        %v1172 = vmul.f32 %v1083, %v1083
        %v1173 = vmul.f32 %v980, %v980
        %v1174 = vmul.f32 %v982, %v982
        %v1175 = vmul.f32 %v1087, %v1087
        %v1176 = vmul.f32 %v1089, %v1089
        %v1177 = vmul.f32 %v986, %v986
        %v1178 = vmul.f32 %v988, %v988
        %v1179 = vmul.f32 %v1093, %v1093
        %v1180 = vmul.f32 %v1095, %v1095
        %v1181 = vmul.f32 %v992, %v992
        %v1182 = vmul.f32 %v994, %v994
        %v1183 = vmul.f32 %v1099, %v1099
        %v1184 = vmul.f32 %v1101, %v1101
        %v1185 = vmul.f32 %v998, %v998
        %v1186 = vmul.f32 %v1000, %v1000
        %v1187 = vmul.f32 %v1105, %v1105
        %v1188 = vmul.f32 %v1107, %v1107
        %v1189 = vadd.f32 %v1161, %v1165
        %v1190 = vadd.f32 %v1189, %v1169
        %v1191 = vadd.f32 %v1190, %v1173
        %v1192 = vadd.f32 %v1191, %v1177
        %v1193 = vadd.f32 %v1192, %v1181
        %v1194 = vsel %vm474, %v1185, 0.0
        %v1195 = vadd.f32 %v1193, %v1194
        %v1196 = vrot.slane %v1195, 4
        %v1197 = vadd.f32 %v1195, %v1196
        %v1198 = vrot.slane %v1197, 2
        %v1199 = vadd.f32 %v1197, %v1198
        %v1200 = vrot.slane %v1199, 1
        %v1201 = vadd.f32 %v1199, %v1200
        %v1202 = vadd.f32 %v1162, %v1166
        %v1203 = vadd.f32 %v1202, %v1170
        %v1204 = vadd.f32 %v1203, %v1174
        %v1205 = vadd.f32 %v1204, %v1178
        %v1206 = vadd.f32 %v1205, %v1182
        %v1207 = vsel %vm474, %v1186, 0.0
        %v1208 = vadd.f32 %v1206, %v1207
        %v1209 = vrot.slane %v1208, 4
        %v1210 = vadd.f32 %v1208, %v1209
        %v1211 = vrot.slane %v1210, 2
        %v1212 = vadd.f32 %v1210, %v1211
        %v1213 = vrot.slane %v1212, 1
        %v1214 = vadd.f32 %v1212, %v1213
        %v1215 = vadd.f32 %v1163, %v1167
        %v1216 = vadd.f32 %v1215, %v1171
        %v1217 = vadd.f32 %v1216, %v1175
        %v1218 = vadd.f32 %v1217, %v1179
        %v1219 = vadd.f32 %v1218, %v1183
        %v1220 = vsel %vm474, %v1187, 0.0
        %v1221 = vadd.f32 %v1219, %v1220
        %v1222 = vrot.slane %v1221, 4
        %v1223 = vadd.f32 %v1221, %v1222
        %v1224 = vrot.slane %v1223, 2
        %v1225 = vadd.f32 %v1223, %v1224
        %v1226 = vrot.slane %v1225, 1
        %v1227 = vadd.f32 %v1225, %v1226
        %v1228 = vadd.f32 %v1164, %v1168
        %v1229 = vadd.f32 %v1228, %v1172
        %v1230 = vadd.f32 %v1229, %v1176
        %v1231 = vadd.f32 %v1230, %v1180
        %v1232 = vadd.f32 %v1231, %v1184
        %v1233 = vsel %vm474, %v1188, 0.0
        %v1234 = vadd.f32 %v1232, %v1233
        %v1235 = vrot.slane %v1234, 4
        %v1236 = vadd.f32 %v1234, %v1235
        %v1237 = vrot.slane %v1236, 2
        %v1238 = vadd.f32 %v1236, %v1237
        %v1239 = vrot.slane %v1238, 1
        %v1240 = vadd.f32 %v1238, %v1239
        %v1241 = vmul.f32 %v1121, 0.02
        %v1242 = vmul.f32 %v1134, 0.02
        %v1243 = vmul.f32 %v1147, 0.02
        %v1244 = vmul.f32 %v1160, 0.02
        %v1245 = vmul.f32 %v1201, 0.02
        %v1246 = vmul.f32 %v1214, 0.02
        %v1247 = vmul.f32 %v1227, 0.02
        %v1248 = vmul.f32 %v1240, 0.02
        %v1249 = vmul.f32 %v1241, %v1241
        %v1250 = vmul.f32 %v1242, %v1242
        %v1251 = vmul.f32 %v1243, %v1243
        %v1252 = vmul.f32 %v1244, %v1244
        %v1253 = vsub.f32 %v1245, %v1249
        %v1254 = vsub.f32 %v1246, %v1250
        %v1255 = vsub.f32 %v1247, %v1251
        %v1256 = vsub.f32 %v1248, %v1252
        %v1257 = vmax.f32 %v1253, 0.0
        %v1258 = vmax.f32 %v1254, 0.0
        %v1259 = vmax.f32 %v1255, 0.0
        %v1260 = vmax.f32 %v1256, 0.0
        %v1261 = vsub.f32 %v962, %v1241
        %v1262 = vsub.f32 %v964, %v1242
        %v1263 = vsub.f32 %v1069, %v1243
        %v1264 = vsub.f32 %v1071, %v1244
        %v1265 = vsub.f32 %v968, %v1241
        %v1266 = vsub.f32 %v970, %v1242
        %v1267 = vsub.f32 %v1075, %v1243
        %v1268 = vsub.f32 %v1077, %v1244
        %v1269 = vsub.f32 %v974, %v1241
        %v1270 = vsub.f32 %v976, %v1242
        %v1271 = vsub.f32 %v1081, %v1243
        %v1272 = vsub.f32 %v1083, %v1244
        %v1273 = vsub.f32 %v980, %v1241
        %v1274 = vsub.f32 %v982, %v1242
        %v1275 = vsub.f32 %v1087, %v1243
        %v1276 = vsub.f32 %v1089, %v1244
        %v1277 = vsub.f32 %v986, %v1241
        %v1278 = vsub.f32 %v988, %v1242
        %v1279 = vsub.f32 %v1093, %v1243
        %v1280 = vsub.f32 %v1095, %v1244
        %v1281 = vsub.f32 %v992, %v1241
        %v1282 = vsub.f32 %v994, %v1242
        %v1283 = vsub.f32 %v1099, %v1243
        %v1284 = vsub.f32 %v1101, %v1244
        %v1285 = vsub.f32 %v998, %v1241
        %v1286 = vsub.f32 %v1000, %v1242
        %v1287 = vsub.f32 %v1105, %v1243
        %v1288 = vsub.f32 %v1107, %v1244
        %v1289 = vadd.f32 %v1257, 1e-05
        %v1290 = vadd.f32 %v1258, 1e-05
        %v1291 = vadd.f32 %v1259, 1e-05
        %v1292 = vadd.f32 %v1260, 1e-05
        %v1293 = vrsqrt.pop %v1289
        %v1294 = vrsqrt.pop %v1290
        %v1295 = vrsqrt.pop %v1291
        %v1296 = vrsqrt.pop %v1292
        %v1297 = vmul.f32 %v1261, %v1293
        %v1298 = vmul.f32 %v1262, %v1294
        %v1299 = vmul.f32 %v1263, %v1295
        %v1300 = vmul.f32 %v1264, %v1296
        %v1301 = vmul.f32 %v1265, %v1293
        %v1302 = vmul.f32 %v1266, %v1294
        %v1303 = vmul.f32 %v1267, %v1295
        %v1304 = vmul.f32 %v1268, %v1296
        %v1305 = vmul.f32 %v1269, %v1293
        %v1306 = vmul.f32 %v1270, %v1294
        %v1307 = vmul.f32 %v1271, %v1295
        %v1308 = vmul.f32 %v1272, %v1296
        %v1309 = vmul.f32 %v1273, %v1293
        %v1310 = vmul.f32 %v1274, %v1294
        %v1311 = vmul.f32 %v1275, %v1295
        %v1312 = vmul.f32 %v1276, %v1296
        %v1313 = vmul.f32 %v1277, %v1293
        %v1314 = vmul.f32 %v1278, %v1294
        %v1315 = vmul.f32 %v1279, %v1295
        %v1316 = vmul.f32 %v1280, %v1296
        %v1317 = vmul.f32 %v1281, %v1293
        %v1318 = vmul.f32 %v1282, %v1294
        %v1319 = vmul.f32 %v1283, %v1295
        %v1320 = vmul.f32 %v1284, %v1296
        %v1321 = vmul.f32 %v1285, %v1293
        %v1322 = vmul.f32 %v1286, %v1294
        %v1323 = vmul.f32 %v1287, %v1295
        %v1324 = vmul.f32 %v1288, %v1296
        %1325 = vset.pattern.permute.xlu0 6
        %1326 = vperm.xlu0 %1325, %v217
        %v1327 = vpop.permute.xlu0 %1326
        %1329 = vset.pattern.permute.xlu0 6
        %1330 = vperm.xlu0 %1329, %v218
        %v1331 = vpop.permute.xlu0 %1330
        %1333 = vset.pattern.permute.xlu0 6
        %1334 = vperm.xlu0 %1333, %v219
        %v1335 = vpop.permute.xlu0 %1334
        %1337 = vset.pattern.permute.xlu0 6
        %1338 = vperm.xlu0 %1337, %v220
        %v1339 = vpop.permute.xlu0 %1338
        %1341 = vset.pattern.permute.xlu0 6
        %1342 = vperm.xlu0 %1341, %v221
        %v1343 = vpop.permute.xlu0 %1342
        %1345 = vset.pattern.permute.xlu0 6
        %1346 = vperm.xlu0 %1345, %v222
        %v1347 = vpop.permute.xlu0 %1346
        %1349 = vset.pattern.permute.xlu0 6
        %1350 = vperm.xlu0 %1349, %v223
        %v1351 = vpop.permute.xlu0 %1350
        %v1353 = vmul.f32 %v1297, %v1327
        %v1354 = vmul.f32 %v1298, %v1327
        %v1355 = vmul.f32 %v1299, %v1327
        %v1356 = vmul.f32 %v1300, %v1327
        %v1357 = vmul.f32 %v1301, %v1331
        %v1358 = vmul.f32 %v1302, %v1331
        %v1359 = vmul.f32 %v1303, %v1331
        %v1360 = vmul.f32 %v1304, %v1331
        %v1361 = vmul.f32 %v1305, %v1335
        %v1362 = vmul.f32 %v1306, %v1335
        %v1363 = vmul.f32 %v1307, %v1335
        %v1364 = vmul.f32 %v1308, %v1335
        %v1365 = vmul.f32 %v1309, %v1339
        %v1366 = vmul.f32 %v1310, %v1339
        %v1367 = vmul.f32 %v1311, %v1339
        %v1368 = vmul.f32 %v1312, %v1339
        %v1369 = vmul.f32 %v1313, %v1343
        %v1370 = vmul.f32 %v1314, %v1343
        %v1371 = vmul.f32 %v1315, %v1343
        %v1372 = vmul.f32 %v1316, %v1343
        %v1373 = vmul.f32 %v1317, %v1347
        %v1374 = vmul.f32 %v1318, %v1347
        %v1375 = vmul.f32 %v1319, %v1347
        %v1376 = vmul.f32 %v1320, %v1347
        %v1377 = vmul.f32 %v1321, %v1351
        %v1378 = vmul.f32 %v1322, %v1351
        %v1379 = vmul.f32 %v1323, %v1351
        %v1380 = vmul.f32 %v1324, %v1351
        %1381 = vset.pattern.permute.xlu0 7
        %1382 = vperm.xlu0 %1381, %v217
        %v1383 = vpop.permute.xlu0 %1382
        %1385 = vset.pattern.permute.xlu0 7
        %1386 = vperm.xlu0 %1385, %v218
        %v1387 = vpop.permute.xlu0 %1386
        %1389 = vset.pattern.permute.xlu0 7
        %1390 = vperm.xlu0 %1389, %v219
        %v1391 = vpop.permute.xlu0 %1390
        %1393 = vset.pattern.permute.xlu0 7
        %1394 = vperm.xlu0 %1393, %v220
        %v1395 = vpop.permute.xlu0 %1394
        %1397 = vset.pattern.permute.xlu0 7
        %1398 = vperm.xlu0 %1397, %v221
        %v1399 = vpop.permute.xlu0 %1398
        %1401 = vset.pattern.permute.xlu0 7
        %1402 = vperm.xlu0 %1401, %v222
        %v1403 = vpop.permute.xlu0 %1402
        %1405 = vset.pattern.permute.xlu0 7
        %1406 = vperm.xlu0 %1405, %v223
        %v1407 = vpop.permute.xlu0 %1406
        %v1409 = vadd.f32 %v1353, %v1383
        %v1410 = vadd.f32 %v1354, %v1383
        %v1411 = vadd.f32 %v1355, %v1383
        %v1412 = vadd.f32 %v1356, %v1383
        %v1413 = vadd.f32 %v1357, %v1387
        %v1414 = vadd.f32 %v1358, %v1387
        %v1415 = vadd.f32 %v1359, %v1387
        %v1416 = vadd.f32 %v1360, %v1387
        %v1417 = vadd.f32 %v1361, %v1391
        %v1418 = vadd.f32 %v1362, %v1391
        %v1419 = vadd.f32 %v1363, %v1391
        %v1420 = vadd.f32 %v1364, %v1391
        %v1421 = vadd.f32 %v1365, %v1395
        %v1422 = vadd.f32 %v1366, %v1395
        %v1423 = vadd.f32 %v1367, %v1395
        %v1424 = vadd.f32 %v1368, %v1395
        %v1425 = vadd.f32 %v1369, %v1399
        %v1426 = vadd.f32 %v1370, %v1399
        %v1427 = vadd.f32 %v1371, %v1399
        %v1428 = vadd.f32 %v1372, %v1399
        %v1429 = vadd.f32 %v1373, %v1403
        %v1430 = vadd.f32 %v1374, %v1403
        %v1431 = vadd.f32 %v1375, %v1403
        %v1432 = vadd.f32 %v1376, %v1403
        %v1433 = vadd.f32 %v1377, %v1407
        %v1434 = vadd.f32 %v1378, %v1407
        %v1435 = vadd.f32 %v1379, %v1407
        %v1436 = vadd.f32 %v1380, %v1407
        %v1437 = vtanh.pop %v1409
        %v1438 = vtanh.pop %v1410
        %v1439 = vtanh.pop %v1411
        %v1440 = vtanh.pop %v1412
        %v1441 = vtanh.pop %v1413
        %v1442 = vtanh.pop %v1414
        %v1443 = vtanh.pop %v1415
        %v1444 = vtanh.pop %v1416
        %v1445 = vtanh.pop %v1417
        %v1446 = vtanh.pop %v1418
        %v1447 = vtanh.pop %v1419
        %v1448 = vtanh.pop %v1420
        %v1449 = vtanh.pop %v1421
        %v1450 = vtanh.pop %v1422
        %v1451 = vtanh.pop %v1423
        %v1452 = vtanh.pop %v1424
        %v1453 = vtanh.pop %v1425
        %v1454 = vtanh.pop %v1426
        %v1455 = vtanh.pop %v1427
        %v1456 = vtanh.pop %v1428
        %v1457 = vtanh.pop %v1429
        %v1458 = vtanh.pop %v1430
        %v1459 = vtanh.pop %v1431
        %v1460 = vtanh.pop %v1432
        %v1461 = vtanh.pop %v1433
        %v1462 = vtanh.pop %v1434
        %v1463 = vtanh.pop %v1435
        %v1464 = vtanh.pop %v1436
        %s1465 = scalar_lea.vmem %s2, 56
        %v1466 = vld [vmem:[%s1465] sm:$0xff]
        %v1467 = vld [vmem:[%s1465 + $0x8] sm:$0xff]
        %v1468 = vld [vmem:[%s1465 + $0x10] sm:$0xff]
        %v1469 = vld [vmem:[%s1465 + $0x18] sm:$0xff]
        %v1470 = vld [vmem:[%s1465 + $0x20] sm:$0xff]
        %v1471 = vld [vmem:[%s1465 + $0x28] sm:$0xff]
        %v1472 = vld [vmem:[%s1465 + $0x30] sm:$0x3]
        %1473 = vset.pattern.permute.xlu0 8
        %1474 = vperm.xlu0 %1473, %v217
        %v1475 = vpop.permute.xlu0 %1474
        %1477 = vset.pattern.permute.xlu0 8
        %1478 = vperm.xlu0 %1477, %v218
        %v1479 = vpop.permute.xlu0 %1478
        %1481 = vset.pattern.permute.xlu0 8
        %1482 = vperm.xlu0 %1481, %v219
        %v1483 = vpop.permute.xlu0 %1482
        %1485 = vset.pattern.permute.xlu0 8
        %1486 = vperm.xlu0 %1485, %v220
        %v1487 = vpop.permute.xlu0 %1486
        %1489 = vset.pattern.permute.xlu0 8
        %1490 = vperm.xlu0 %1489, %v221
        %v1491 = vpop.permute.xlu0 %1490
        %1493 = vset.pattern.permute.xlu0 8
        %1494 = vperm.xlu0 %1493, %v222
        %v1495 = vpop.permute.xlu0 %1494
        %1497 = vset.pattern.permute.xlu0 8
        %1498 = vperm.xlu0 %1497, %v223
        %v1499 = vpop.permute.xlu0 %1498
        %v1502 = vsel %vm861, %v1466, 0
        %v1505 = vsel %vm861, %v1467, 0
        %v1508 = vsel %vm861, %v1468, 0
        %v1511 = vsel %vm861, %v1469, 0
        %v1514 = vsel %vm861, %v1470, 0
        %v1517 = vsel %vm861, %v1471, 0
        %v1520 = vsel %vm861, %v1472, 0
        %v1523 = vsel %vm474, %v1461, 0
        %v1526 = vsel %vm474, %v1462, 0
        %v1529 = vsel %vm474, %v1463, 0
        %v1532 = vsel %vm474, %v1464, 0
        %1534 = vmatprep.subr.mxu0 %v1438
        %1535 = vmatpush1.msra.mxu0 %v1437
        %1536 = vmatprep.subr.mxu0 %v1442
        %1537 = vmatpush1.msra.mxu0 %v1441
        %1538 = vmatprep.subr.mxu0 %v1446
        %1539 = vmatpush1.msra.mxu0 %v1445
        %1540 = vmatprep.subr.mxu0 %v1450
        %1541 = vmatpush1.msra.mxu0 %v1449
        %1542 = vmatprep.subr.mxu0 %v1454
        %1543 = vmatpush1.msra.mxu0 %v1453
        %1544 = vmatprep.subr.mxu0 %v1458
        %1545 = vmatpush1.msra.mxu0 %v1457
        %1546 = vmatprep.subr.mxu0 %v1526
        %1547 = vmatpush1.msra.mxu0 %v1523
        %1548 = vmatprep.subr.mxu0 0.0
        %1549 = vmatpush1.msra.mxu0 0.0
        %1550 = vmatprep.subr.mxu0 0.0
        %1551 = vmatpush1.msra.mxu0 0.0
        %1552 = vmatprep.subr.mxu0 0.0
        %1553 = vmatpush1.msra.mxu0 0.0
        %1554 = vmatprep.subr.mxu0 0.0
        %1555 = vmatpush1.msra.mxu0 0.0
        %1556 = vmatprep.subr.mxu0 0.0
        %1557 = vmatpush1.msra.mxu0 0.0
        %1558 = vmatprep.subr.mxu0 0.0
        %1559 = vmatpush1.msra.mxu0 0.0
        %1560 = vmatprep.subr.mxu0 0.0
        %1561 = vmatpush1.msra.mxu0 0.0
        %1562 = vmatprep.subr.mxu0 0.0
        %1563 = vmatpush1.msra.mxu0 0.0
        %1564 = vmatprep.subr.mxu0 0.0
        %1565 = vmatpush1.msra.mxu0 0.0
        %1566 = vmatprep.subr.mxu0 0.0
        %1567 = vmatpush1.msra.mxu0 0.0
        %1568 = vmatprep.subr.mxu0 0.0
        %1569 = vmatpush1.msra.mxu0 0.0
        %1570 = vmatprep.subr.mxu0 0.0
        %1571 = vmatpush1.msra.mxu0 0.0
        %1572 = vmatprep.subr.mxu0 0.0
        %1573 = vmatpush1.msra.mxu0 0.0
        %1574 = vmatprep.subr.mxu0 0.0
        %1575 = vmatpush1.msra.mxu0 0.0
        %1576 = vmatprep.subr.mxu0 0.0
        %1577 = vmatpush1.msra.mxu0 0.0
        %1578 = vmatprep.subr.mxu0 0.0
        %1579 = vmatpush1.msra.mxu0 0.0
        %1580 = vmatprep.subr.mxu0 0.0
        %1581 = vmatpush1.msra.mxu0 0.0
        %1582 = vmatprep.subr.mxu0 0.0
        %1583 = vmatpush1.msra.mxu0 0.0
        %1584 = vmatprep.subr.mxu0 0.0
        %1585 = vmatpush1.msra.mxu0 0.0
        %1586 = vmatprep.subr.mxu0 0.0
        %1587 = vmatpush1.msra.mxu0 0.0
        %1588 = vmatprep.subr.mxu0 0.0
        %1589 = vmatpush1.msra.mxu0 0.0
        %1590 = vmatprep.subr.mxu0 0.0
        %1591 = vmatpush1.msra.mxu0 0.0
        %1592 = vmatprep.subr.mxu0 0.0
        %1593 = vmatpush1.msra.mxu0 0.0
        %1594 = vmatprep.subr.mxu0 0.0
        %1595 = vmatpush1.msra.mxu0 0.0
        %1596 = vmatprep.subr.mxu0 0.0
        %1597 = vmatpush1.msra.mxu0 0.0
        %1598 = vmatprep.mubr.f32.mxu0 0.0
        %1599 = vmatmul.mubr.f32.gmra.mrb[0].mxu0 %v1502
        %v1600 = vpop.f32.mrb[0].mxu0
        %v1601 = vadd.f32 %v1475, %v1600
        %v1602 = vpop.f32.mrb[0].mxu0
        %v1603 = vadd.f32 %v1475, %v1602
        %1604 = vmatprep.mubr.f32.mxu0 0.0
        %1605 = vmatmul.mubr.f32.gmra.mrb[0].mxu0 %v1505
        %v1606 = vpop.f32.mrb[0].mxu0
        %v1607 = vadd.f32 %v1479, %v1606
        %v1608 = vpop.f32.mrb[0].mxu0
        %v1609 = vadd.f32 %v1479, %v1608
        %1610 = vmatprep.mubr.f32.mxu0 0.0
        %1611 = vmatmul.mubr.f32.gmra.mrb[0].mxu0 %v1508
        %v1612 = vpop.f32.mrb[0].mxu0
        %v1613 = vadd.f32 %v1483, %v1612
        %v1614 = vpop.f32.mrb[0].mxu0
        %v1615 = vadd.f32 %v1483, %v1614
        %1616 = vmatprep.mubr.f32.mxu0 0.0
        %1617 = vmatmul.mubr.f32.gmra.mrb[0].mxu0 %v1511
        %v1618 = vpop.f32.mrb[0].mxu0
        %v1619 = vadd.f32 %v1487, %v1618
        %v1620 = vpop.f32.mrb[0].mxu0
        %v1621 = vadd.f32 %v1487, %v1620
        %1622 = vmatprep.mubr.f32.mxu0 0.0
        %1623 = vmatmul.mubr.f32.gmra.mrb[0].mxu0 %v1514
        %v1624 = vpop.f32.mrb[0].mxu0
        %v1625 = vadd.f32 %v1491, %v1624
        %v1626 = vpop.f32.mrb[0].mxu0
        %v1627 = vadd.f32 %v1491, %v1626
        %1628 = vmatprep.mubr.f32.mxu0 0.0
        %1629 = vmatmul.mubr.f32.gmra.mrb[0].mxu0 %v1517
        %v1630 = vpop.f32.mrb[0].mxu0
        %v1631 = vadd.f32 %v1495, %v1630
        %v1632 = vpop.f32.mrb[0].mxu0
        %v1633 = vadd.f32 %v1495, %v1632
        %1634 = vmatprep.mubr.f32.mxu0 0.0
        %1635 = vmatmul.mubr.f32.gmra.mrb[0].mxu0 %v1520
        %v1636 = vpop.f32.mrb[0].mxu0
        %v1637 = vadd.f32 %v1499, %v1636
        %v1638 = vpop.f32.mrb[0].mxu0
        %v1639 = vadd.f32 %v1499, %v1638
        %1640 = vdwg.mxu0
        %1641 = vmatprep.subr.mxu0 %v1440
        %1642 = vmatpush1.msra.mxu0 %v1439
        %1643 = vmatprep.subr.mxu0 %v1444
        %1644 = vmatpush1.msra.mxu0 %v1443
        %1645 = vmatprep.subr.mxu0 %v1448
        %1646 = vmatpush1.msra.mxu0 %v1447
        %1647 = vmatprep.subr.mxu0 %v1452
        %1648 = vmatpush1.msra.mxu0 %v1451
        %1649 = vmatprep.subr.mxu0 %v1456
        %1650 = vmatpush1.msra.mxu0 %v1455
        %1651 = vmatprep.subr.mxu0 %v1460
        %1652 = vmatpush1.msra.mxu0 %v1459
        %1653 = vmatprep.subr.mxu0 %v1532
        %1654 = vmatpush1.msra.mxu0 %v1529
        %1655 = vmatprep.subr.mxu0 0.0
        %1656 = vmatpush1.msra.mxu0 0.0
        %1657 = vmatprep.subr.mxu0 0.0
        %1658 = vmatpush1.msra.mxu0 0.0
        %1659 = vmatprep.subr.mxu0 0.0
        %1660 = vmatpush1.msra.mxu0 0.0
        %1661 = vmatprep.subr.mxu0 0.0
        %1662 = vmatpush1.msra.mxu0 0.0
        %1663 = vmatprep.subr.mxu0 0.0
        %1664 = vmatpush1.msra.mxu0 0.0
        %1665 = vmatprep.subr.mxu0 0.0
        %1666 = vmatpush1.msra.mxu0 0.0
        %1667 = vmatprep.subr.mxu0 0.0
        %1668 = vmatpush1.msra.mxu0 0.0
        %1669 = vmatprep.subr.mxu0 0.0
        %1670 = vmatpush1.msra.mxu0 0.0
        %1671 = vmatprep.subr.mxu0 0.0
        %1672 = vmatpush1.msra.mxu0 0.0
        %1673 = vmatprep.subr.mxu0 0.0
        %1674 = vmatpush1.msra.mxu0 0.0
        %1675 = vmatprep.subr.mxu0 0.0
        %1676 = vmatpush1.msra.mxu0 0.0
        %1677 = vmatprep.subr.mxu0 0.0
        %1678 = vmatpush1.msra.mxu0 0.0
        %1679 = vmatprep.subr.mxu0 0.0
        %1680 = vmatpush1.msra.mxu0 0.0
        %1681 = vmatprep.subr.mxu0 0.0
        %1682 = vmatpush1.msra.mxu0 0.0
        %1683 = vmatprep.subr.mxu0 0.0
        %1684 = vmatpush1.msra.mxu0 0.0
        %1685 = vmatprep.subr.mxu0 0.0
        %1686 = vmatpush1.msra.mxu0 0.0
        %1687 = vmatprep.subr.mxu0 0.0
        %1688 = vmatpush1.msra.mxu0 0.0
        %1689 = vmatprep.subr.mxu0 0.0
        %1690 = vmatpush1.msra.mxu0 0.0
        %1691 = vmatprep.subr.mxu0 0.0
        %1692 = vmatpush1.msra.mxu0 0.0
        %1693 = vmatprep.subr.mxu0 0.0
        %1694 = vmatpush1.msra.mxu0 0.0
        %1695 = vmatprep.subr.mxu0 0.0
        %1696 = vmatpush1.msra.mxu0 0.0
        %1697 = vmatprep.subr.mxu0 0.0
        %1698 = vmatpush1.msra.mxu0 0.0
        %1699 = vmatprep.subr.mxu0 0.0
        %1700 = vmatpush1.msra.mxu0 0.0
        %1701 = vmatprep.subr.mxu0 0.0
        %1702 = vmatpush1.msra.mxu0 0.0
        %1703 = vmatprep.subr.mxu0 0.0
        %1704 = vmatpush1.msra.mxu0 0.0
        %1705 = vmatprep.mubr.f32.mxu0 0.0
        %1706 = vmatmul.mubr.f32.gmra.mrb[0].mxu0 %v1502
        %v1707 = vpop.f32.mrb[0].mxu0
        %v1708 = vadd.f32 %v1475, %v1707
        %v1709 = vpop.f32.mrb[0].mxu0
        %v1710 = vadd.f32 %v1475, %v1709
        %1711 = vmatprep.mubr.f32.mxu0 0.0
        %1712 = vmatmul.mubr.f32.gmra.mrb[0].mxu0 %v1505
        %v1713 = vpop.f32.mrb[0].mxu0
        %v1714 = vadd.f32 %v1479, %v1713
        %v1715 = vpop.f32.mrb[0].mxu0
        %v1716 = vadd.f32 %v1479, %v1715
        %1717 = vmatprep.mubr.f32.mxu0 0.0
        %1718 = vmatmul.mubr.f32.gmra.mrb[0].mxu0 %v1508
        %v1719 = vpop.f32.mrb[0].mxu0
        %v1720 = vadd.f32 %v1483, %v1719
        %v1721 = vpop.f32.mrb[0].mxu0
        %v1722 = vadd.f32 %v1483, %v1721
        %1723 = vmatprep.mubr.f32.mxu0 0.0
        %1724 = vmatmul.mubr.f32.gmra.mrb[0].mxu0 %v1511
        %v1725 = vpop.f32.mrb[0].mxu0
        %v1726 = vadd.f32 %v1487, %v1725
        %v1727 = vpop.f32.mrb[0].mxu0
        %v1728 = vadd.f32 %v1487, %v1727
        %1729 = vmatprep.mubr.f32.mxu0 0.0
        %1730 = vmatmul.mubr.f32.gmra.mrb[0].mxu0 %v1514
        %v1731 = vpop.f32.mrb[0].mxu0
        %v1732 = vadd.f32 %v1491, %v1731
        %v1733 = vpop.f32.mrb[0].mxu0
        %v1734 = vadd.f32 %v1491, %v1733
        %1735 = vmatprep.mubr.f32.mxu0 0.0
        %1736 = vmatmul.mubr.f32.gmra.mrb[0].mxu0 %v1517
        %v1737 = vpop.f32.mrb[0].mxu0
        %v1738 = vadd.f32 %v1495, %v1737
        %v1739 = vpop.f32.mrb[0].mxu0
        %v1740 = vadd.f32 %v1495, %v1739
        %1741 = vmatprep.mubr.f32.mxu0 0.0
        %1742 = vmatmul.mubr.f32.gmra.mrb[0].mxu0 %v1520
        %v1743 = vpop.f32.mrb[0].mxu0
        %v1744 = vadd.f32 %v1499, %v1743
        %v1745 = vpop.f32.mrb[0].mxu0
        %v1746 = vadd.f32 %v1499, %v1745
        %1747 = vdwg.mxu0
        %v1748 = vadd.f32 %v1601, %v1607
        %v1749 = vadd.f32 %v1748, %v1613
        %v1750 = vadd.f32 %v1749, %v1619
        %v1751 = vadd.f32 %v1750, %v1625
        %v1752 = vadd.f32 %v1751, %v1631
        %v1753 = vsel %vm474, %v1637, 0.0
        %v1754 = vadd.f32 %v1752, %v1753
        %v1755 = vrot.slane %v1754, 4
        %v1756 = vadd.f32 %v1754, %v1755
        %v1757 = vrot.slane %v1756, 2
        %v1758 = vadd.f32 %v1756, %v1757
        %v1759 = vrot.slane %v1758, 1
        %v1760 = vadd.f32 %v1758, %v1759
        %v1761 = vadd.f32 %v1603, %v1609
        %v1762 = vadd.f32 %v1761, %v1615
        %v1763 = vadd.f32 %v1762, %v1621
        %v1764 = vadd.f32 %v1763, %v1627
        %v1765 = vadd.f32 %v1764, %v1633
        %v1766 = vsel %vm474, %v1639, 0.0
        %v1767 = vadd.f32 %v1765, %v1766
        %v1768 = vrot.slane %v1767, 4
        %v1769 = vadd.f32 %v1767, %v1768
        %v1770 = vrot.slane %v1769, 2
        %v1771 = vadd.f32 %v1769, %v1770
        %v1772 = vrot.slane %v1771, 1
        %v1773 = vadd.f32 %v1771, %v1772
        %v1774 = vadd.f32 %v1708, %v1714
        %v1775 = vadd.f32 %v1774, %v1720
        %v1776 = vadd.f32 %v1775, %v1726
        %v1777 = vadd.f32 %v1776, %v1732
        %v1778 = vadd.f32 %v1777, %v1738
        %v1779 = vsel %vm474, %v1744, 0.0
        %v1780 = vadd.f32 %v1778, %v1779
        %v1781 = vrot.slane %v1780, 4
        %v1782 = vadd.f32 %v1780, %v1781
        %v1783 = vrot.slane %v1782, 2
        %v1784 = vadd.f32 %v1782, %v1783
        %v1785 = vrot.slane %v1784, 1
        %v1786 = vadd.f32 %v1784, %v1785
        %v1787 = vadd.f32 %v1710, %v1716
        %v1788 = vadd.f32 %v1787, %v1722
        %v1789 = vadd.f32 %v1788, %v1728
        %v1790 = vadd.f32 %v1789, %v1734
        %v1791 = vadd.f32 %v1790, %v1740
        %v1792 = vsel %vm474, %v1746, 0.0
        %v1793 = vadd.f32 %v1791, %v1792
        %v1794 = vrot.slane %v1793, 4
        %v1795 = vadd.f32 %v1793, %v1794
        %v1796 = vrot.slane %v1795, 2
        %v1797 = vadd.f32 %v1795, %v1796
        %v1798 = vrot.slane %v1797, 1
        %v1799 = vadd.f32 %v1797, %v1798
        %v1800 = vmul.f32 %v1601, %v1601
        %v1801 = vmul.f32 %v1603, %v1603
        %v1802 = vmul.f32 %v1708, %v1708
        %v1803 = vmul.f32 %v1710, %v1710
        %v1804 = vmul.f32 %v1607, %v1607
        %v1805 = vmul.f32 %v1609, %v1609
        %v1806 = vmul.f32 %v1714, %v1714
        %v1807 = vmul.f32 %v1716, %v1716
        %v1808 = vmul.f32 %v1613, %v1613
        %v1809 = vmul.f32 %v1615, %v1615
        %v1810 = vmul.f32 %v1720, %v1720
        %v1811 = vmul.f32 %v1722, %v1722
        %v1812 = vmul.f32 %v1619, %v1619
        %v1813 = vmul.f32 %v1621, %v1621
        %v1814 = vmul.f32 %v1726, %v1726
        %v1815 = vmul.f32 %v1728, %v1728
        %v1816 = vmul.f32 %v1625, %v1625
        %v1817 = vmul.f32 %v1627, %v1627
        %v1818 = vmul.f32 %v1732, %v1732
        %v1819 = vmul.f32 %v1734, %v1734
        %v1820 = vmul.f32 %v1631, %v1631
        %v1821 = vmul.f32 %v1633, %v1633
        %v1822 = vmul.f32 %v1738, %v1738
        %v1823 = vmul.f32 %v1740, %v1740
        %v1824 = vmul.f32 %v1637, %v1637
        %v1825 = vmul.f32 %v1639, %v1639
        %v1826 = vmul.f32 %v1744, %v1744
        %v1827 = vmul.f32 %v1746, %v1746
        %v1828 = vadd.f32 %v1800, %v1804
        %v1829 = vadd.f32 %v1828, %v1808
        %v1830 = vadd.f32 %v1829, %v1812
        %v1831 = vadd.f32 %v1830, %v1816
        %v1832 = vadd.f32 %v1831, %v1820
        %v1833 = vsel %vm474, %v1824, 0.0
        %v1834 = vadd.f32 %v1832, %v1833
        %v1835 = vrot.slane %v1834, 4
        %v1836 = vadd.f32 %v1834, %v1835
        %v1837 = vrot.slane %v1836, 2
        %v1838 = vadd.f32 %v1836, %v1837
        %v1839 = vrot.slane %v1838, 1
        %v1840 = vadd.f32 %v1838, %v1839
        %v1841 = vadd.f32 %v1801, %v1805
        %v1842 = vadd.f32 %v1841, %v1809
        %v1843 = vadd.f32 %v1842, %v1813
        %v1844 = vadd.f32 %v1843, %v1817
        %v1845 = vadd.f32 %v1844, %v1821
        %v1846 = vsel %vm474, %v1825, 0.0
        %v1847 = vadd.f32 %v1845, %v1846
        %v1848 = vrot.slane %v1847, 4
        %v1849 = vadd.f32 %v1847, %v1848
        %v1850 = vrot.slane %v1849, 2
        %v1851 = vadd.f32 %v1849, %v1850
        %v1852 = vrot.slane %v1851, 1
        %v1853 = vadd.f32 %v1851, %v1852
        %v1854 = vadd.f32 %v1802, %v1806
        %v1855 = vadd.f32 %v1854, %v1810
        %v1856 = vadd.f32 %v1855, %v1814
        %v1857 = vadd.f32 %v1856, %v1818
        %v1858 = vadd.f32 %v1857, %v1822
        %v1859 = vsel %vm474, %v1826, 0.0
        %v1860 = vadd.f32 %v1858, %v1859
        %v1861 = vrot.slane %v1860, 4
        %v1862 = vadd.f32 %v1860, %v1861
        %v1863 = vrot.slane %v1862, 2
        %v1864 = vadd.f32 %v1862, %v1863
        %v1865 = vrot.slane %v1864, 1
        %v1866 = vadd.f32 %v1864, %v1865
        %v1867 = vadd.f32 %v1803, %v1807
        %v1868 = vadd.f32 %v1867, %v1811
        %v1869 = vadd.f32 %v1868, %v1815
        %v1870 = vadd.f32 %v1869, %v1819
        %v1871 = vadd.f32 %v1870, %v1823
        %v1872 = vsel %vm474, %v1827, 0.0
        %v1873 = vadd.f32 %v1871, %v1872
        %v1874 = vrot.slane %v1873, 4
        %v1875 = vadd.f32 %v1873, %v1874
        %v1876 = vrot.slane %v1875, 2
        %v1877 = vadd.f32 %v1875, %v1876
        %v1878 = vrot.slane %v1877, 1
        %v1879 = vadd.f32 %v1877, %v1878
        %v1880 = vmul.f32 %v1760, 0.02
        %v1881 = vmul.f32 %v1773, 0.02
        %v1882 = vmul.f32 %v1786, 0.02
        %v1883 = vmul.f32 %v1799, 0.02
        %v1884 = vmul.f32 %v1840, 0.02
        %v1885 = vmul.f32 %v1853, 0.02
        %v1886 = vmul.f32 %v1866, 0.02
        %v1887 = vmul.f32 %v1879, 0.02
        %v1888 = vmul.f32 %v1880, %v1880
        %v1889 = vmul.f32 %v1881, %v1881
        %v1890 = vmul.f32 %v1882, %v1882
        %v1891 = vmul.f32 %v1883, %v1883
        %v1892 = vsub.f32 %v1884, %v1888
        %v1893 = vsub.f32 %v1885, %v1889
        %v1894 = vsub.f32 %v1886, %v1890
        %v1895 = vsub.f32 %v1887, %v1891
        %v1896 = vmax.f32 %v1892, 0.0
        %v1897 = vmax.f32 %v1893, 0.0
        %v1898 = vmax.f32 %v1894, 0.0
        %v1899 = vmax.f32 %v1895, 0.0
        %v1900 = vsub.f32 %v1601, %v1880
        %v1901 = vsub.f32 %v1603, %v1881
        %v1902 = vsub.f32 %v1708, %v1882
        %v1903 = vsub.f32 %v1710, %v1883
        %v1904 = vsub.f32 %v1607, %v1880
        %v1905 = vsub.f32 %v1609, %v1881
        %v1906 = vsub.f32 %v1714, %v1882
        %v1907 = vsub.f32 %v1716, %v1883
        %v1908 = vsub.f32 %v1613, %v1880
        %v1909 = vsub.f32 %v1615, %v1881
        %v1910 = vsub.f32 %v1720, %v1882
        %v1911 = vsub.f32 %v1722, %v1883
        %v1912 = vsub.f32 %v1619, %v1880
        %v1913 = vsub.f32 %v1621, %v1881
        %v1914 = vsub.f32 %v1726, %v1882
        %v1915 = vsub.f32 %v1728, %v1883
        %v1916 = vsub.f32 %v1625, %v1880
        %v1917 = vsub.f32 %v1627, %v1881
        %v1918 = vsub.f32 %v1732, %v1882
        %v1919 = vsub.f32 %v1734, %v1883
        %v1920 = vsub.f32 %v1631, %v1880
        %v1921 = vsub.f32 %v1633, %v1881
        %v1922 = vsub.f32 %v1738, %v1882
        %v1923 = vsub.f32 %v1740, %v1883
        %v1924 = vsub.f32 %v1637, %v1880
        %v1925 = vsub.f32 %v1639, %v1881
        %v1926 = vsub.f32 %v1744, %v1882
        %v1927 = vsub.f32 %v1746, %v1883
        %v1928 = vadd.f32 %v1896, 1e-05
        %v1929 = vadd.f32 %v1897, 1e-05
        %v1930 = vadd.f32 %v1898, 1e-05
        %v1931 = vadd.f32 %v1899, 1e-05
        %v1932 = vrsqrt.pop %v1928
        %v1933 = vrsqrt.pop %v1929
        %v1934 = vrsqrt.pop %v1930
        %v1935 = vrsqrt.pop %v1931
        %v1936 = vmul.f32 %v1900, %v1932
        %v1937 = vmul.f32 %v1901, %v1933
        %v1938 = vmul.f32 %v1902, %v1934
        %v1939 = vmul.f32 %v1903, %v1935
        %v1940 = vmul.f32 %v1904, %v1932
        %v1941 = vmul.f32 %v1905, %v1933
        %v1942 = vmul.f32 %v1906, %v1934
        %v1943 = vmul.f32 %v1907, %v1935
        %v1944 = vmul.f32 %v1908, %v1932
        %v1945 = vmul.f32 %v1909, %v1933
        %v1946 = vmul.f32 %v1910, %v1934
        %v1947 = vmul.f32 %v1911, %v1935
        %v1948 = vmul.f32 %v1912, %v1932
        %v1949 = vmul.f32 %v1913, %v1933
        %v1950 = vmul.f32 %v1914, %v1934
        %v1951 = vmul.f32 %v1915, %v1935
        %v1952 = vmul.f32 %v1916, %v1932
        %v1953 = vmul.f32 %v1917, %v1933
        %v1954 = vmul.f32 %v1918, %v1934
        %v1955 = vmul.f32 %v1919, %v1935
        %v1956 = vmul.f32 %v1920, %v1932
        %v1957 = vmul.f32 %v1921, %v1933
        %v1958 = vmul.f32 %v1922, %v1934
        %v1959 = vmul.f32 %v1923, %v1935
        %v1960 = vmul.f32 %v1924, %v1932
        %v1961 = vmul.f32 %v1925, %v1933
        %v1962 = vmul.f32 %v1926, %v1934
        %v1963 = vmul.f32 %v1927, %v1935
        %1964 = vset.pattern.permute.xlu0 9
        %1965 = vperm.xlu0 %1964, %v217
        %v1966 = vpop.permute.xlu0 %1965
        %1968 = vset.pattern.permute.xlu0 9
        %1969 = vperm.xlu0 %1968, %v218
        %v1970 = vpop.permute.xlu0 %1969
        %1972 = vset.pattern.permute.xlu0 9
        %1973 = vperm.xlu0 %1972, %v219
        %v1974 = vpop.permute.xlu0 %1973
        %1976 = vset.pattern.permute.xlu0 9
        %1977 = vperm.xlu0 %1976, %v220
        %v1978 = vpop.permute.xlu0 %1977
        %1980 = vset.pattern.permute.xlu0 9
        %1981 = vperm.xlu0 %1980, %v221
        %v1982 = vpop.permute.xlu0 %1981
        %1984 = vset.pattern.permute.xlu0 9
        %1985 = vperm.xlu0 %1984, %v222
        %v1986 = vpop.permute.xlu0 %1985
        %1988 = vset.pattern.permute.xlu0 9
        %1989 = vperm.xlu0 %1988, %v223
        %v1990 = vpop.permute.xlu0 %1989
        %v1992 = vmul.f32 %v1936, %v1966
        %v1993 = vmul.f32 %v1937, %v1966
        %v1994 = vmul.f32 %v1938, %v1966
        %v1995 = vmul.f32 %v1939, %v1966
        %v1996 = vmul.f32 %v1940, %v1970
        %v1997 = vmul.f32 %v1941, %v1970
        %v1998 = vmul.f32 %v1942, %v1970
        %v1999 = vmul.f32 %v1943, %v1970
        %v2000 = vmul.f32 %v1944, %v1974
        %v2001 = vmul.f32 %v1945, %v1974
        %v2002 = vmul.f32 %v1946, %v1974
        %v2003 = vmul.f32 %v1947, %v1974
        %v2004 = vmul.f32 %v1948, %v1978
        %v2005 = vmul.f32 %v1949, %v1978
        %v2006 = vmul.f32 %v1950, %v1978
        %v2007 = vmul.f32 %v1951, %v1978
        %v2008 = vmul.f32 %v1952, %v1982
        %v2009 = vmul.f32 %v1953, %v1982
        %v2010 = vmul.f32 %v1954, %v1982
        %v2011 = vmul.f32 %v1955, %v1982
        %v2012 = vmul.f32 %v1956, %v1986
        %v2013 = vmul.f32 %v1957, %v1986
        %v2014 = vmul.f32 %v1958, %v1986
        %v2015 = vmul.f32 %v1959, %v1986
        %v2016 = vmul.f32 %v1960, %v1990
        %v2017 = vmul.f32 %v1961, %v1990
        %v2018 = vmul.f32 %v1962, %v1990
        %v2019 = vmul.f32 %v1963, %v1990
        %2020 = vset.pattern.permute.xlu0 10
        %2021 = vperm.xlu0 %2020, %v217
        %v2022 = vpop.permute.xlu0 %2021
        %2024 = vset.pattern.permute.xlu0 10
        %2025 = vperm.xlu0 %2024, %v218
        %v2026 = vpop.permute.xlu0 %2025
        %2028 = vset.pattern.permute.xlu0 10
        %2029 = vperm.xlu0 %2028, %v219
        %v2030 = vpop.permute.xlu0 %2029
        %2032 = vset.pattern.permute.xlu0 10
        %2033 = vperm.xlu0 %2032, %v220
        %v2034 = vpop.permute.xlu0 %2033
        %2036 = vset.pattern.permute.xlu0 10
        %2037 = vperm.xlu0 %2036, %v221
        %v2038 = vpop.permute.xlu0 %2037
        %2040 = vset.pattern.permute.xlu0 10
        %2041 = vperm.xlu0 %2040, %v222
        %v2042 = vpop.permute.xlu0 %2041
        %2044 = vset.pattern.permute.xlu0 10
        %2045 = vperm.xlu0 %2044, %v223
        %v2046 = vpop.permute.xlu0 %2045
        %v2048 = vadd.f32 %v1992, %v2022
        %v2049 = vadd.f32 %v1993, %v2022
        %v2050 = vadd.f32 %v1994, %v2022
        %v2051 = vadd.f32 %v1995, %v2022
        %v2052 = vadd.f32 %v1996, %v2026
        %v2053 = vadd.f32 %v1997, %v2026
        %v2054 = vadd.f32 %v1998, %v2026
        %v2055 = vadd.f32 %v1999, %v2026
        %v2056 = vadd.f32 %v2000, %v2030
        %v2057 = vadd.f32 %v2001, %v2030
        %v2058 = vadd.f32 %v2002, %v2030
        %v2059 = vadd.f32 %v2003, %v2030
        %v2060 = vadd.f32 %v2004, %v2034
        %v2061 = vadd.f32 %v2005, %v2034
        %v2062 = vadd.f32 %v2006, %v2034
        %v2063 = vadd.f32 %v2007, %v2034
        %v2064 = vadd.f32 %v2008, %v2038
        %v2065 = vadd.f32 %v2009, %v2038
        %v2066 = vadd.f32 %v2010, %v2038
        %v2067 = vadd.f32 %v2011, %v2038
        %v2068 = vadd.f32 %v2012, %v2042
        %v2069 = vadd.f32 %v2013, %v2042
        %v2070 = vadd.f32 %v2014, %v2042
        %v2071 = vadd.f32 %v2015, %v2042
        %v2072 = vadd.f32 %v2016, %v2046
        %v2073 = vadd.f32 %v2017, %v2046
        %v2074 = vadd.f32 %v2018, %v2046
        %v2075 = vadd.f32 %v2019, %v2046
        %v2076 = vtanh.pop %v2048
        %v2077 = vtanh.pop %v2049
        %v2078 = vtanh.pop %v2050
        %v2079 = vtanh.pop %v2051
        %v2080 = vtanh.pop %v2052
        %v2081 = vtanh.pop %v2053
        %v2082 = vtanh.pop %v2054
        %v2083 = vtanh.pop %v2055
        %v2084 = vtanh.pop %v2056
        %v2085 = vtanh.pop %v2057
        %v2086 = vtanh.pop %v2058
        %v2087 = vtanh.pop %v2059
        %v2088 = vtanh.pop %v2060
        %v2089 = vtanh.pop %v2061
        %v2090 = vtanh.pop %v2062
        %v2091 = vtanh.pop %v2063
        %v2092 = vtanh.pop %v2064
        %v2093 = vtanh.pop %v2065
        %v2094 = vtanh.pop %v2066
        %v2095 = vtanh.pop %v2067
        %v2096 = vtanh.pop %v2068
        %v2097 = vtanh.pop %v2069
        %v2098 = vtanh.pop %v2070
        %v2099 = vtanh.pop %v2071
        %v2100 = vtanh.pop %v2072
        %v2101 = vtanh.pop %v2073
        %v2102 = vtanh.pop %v2074
        %v2103 = vtanh.pop %v2075
        %s2104 = scalar_lea.vmem %s2, 112
        %v2105 = vld [vmem:[%s2104] sm:$0xff]
        %v2106 = vld [vmem:[%s2104 + $0x8] sm:$0xff]
        %v2107 = vld [vmem:[%s2104 + $0x10] sm:$0xff]
        %v2108 = vld [vmem:[%s2104 + $0x18] sm:$0xff]
        %v2109 = vld [vmem:[%s2104 + $0x20] sm:$0xff]
        %v2110 = vld [vmem:[%s2104 + $0x28] sm:$0xff]
        %v2111 = vld [vmem:[%s2104 + $0x30] sm:$0x3]
        %2112 = vset.pattern.permute.xlu0 11
        %2113 = vperm.xlu0 %2112, %v217
        %v2114 = vpop.permute.xlu0 %2113
        %2116 = vset.pattern.permute.xlu0 11
        %2117 = vperm.xlu0 %2116, %v218
        %v2118 = vpop.permute.xlu0 %2117
        %2120 = vset.pattern.permute.xlu0 11
        %2121 = vperm.xlu0 %2120, %v219
        %v2122 = vpop.permute.xlu0 %2121
        %2124 = vset.pattern.permute.xlu0 11
        %2125 = vperm.xlu0 %2124, %v220
        %v2126 = vpop.permute.xlu0 %2125
        %2128 = vset.pattern.permute.xlu0 11
        %2129 = vperm.xlu0 %2128, %v221
        %v2130 = vpop.permute.xlu0 %2129
        %2132 = vset.pattern.permute.xlu0 11
        %2133 = vperm.xlu0 %2132, %v222
        %v2134 = vpop.permute.xlu0 %2133
        %2136 = vset.pattern.permute.xlu0 11
        %2137 = vperm.xlu0 %2136, %v223
        %v2138 = vpop.permute.xlu0 %2137
        %v2141 = vsel %vm861, %v2105, 0
        %v2144 = vsel %vm861, %v2106, 0
        %v2147 = vsel %vm861, %v2107, 0
        %v2150 = vsel %vm861, %v2108, 0
        %v2153 = vsel %vm861, %v2109, 0
        %v2156 = vsel %vm861, %v2110, 0
        %v2159 = vsel %vm861, %v2111, 0
        %v2162 = vsel %vm474, %v2100, 0
        %v2165 = vsel %vm474, %v2101, 0
        %v2168 = vsel %vm474, %v2102, 0
        %v2171 = vsel %vm474, %v2103, 0
        %2173 = vmatprep.subr.mxu0 %v2077
        %2174 = vmatpush1.msra.mxu0 %v2076
        %2175 = vmatprep.subr.mxu0 %v2081
        %2176 = vmatpush1.msra.mxu0 %v2080
        %2177 = vmatprep.subr.mxu0 %v2085
        %2178 = vmatpush1.msra.mxu0 %v2084
        %2179 = vmatprep.subr.mxu0 %v2089
        %2180 = vmatpush1.msra.mxu0 %v2088
        %2181 = vmatprep.subr.mxu0 %v2093
        %2182 = vmatpush1.msra.mxu0 %v2092
        %2183 = vmatprep.subr.mxu0 %v2097
        %2184 = vmatpush1.msra.mxu0 %v2096
        %2185 = vmatprep.subr.mxu0 %v2165
        %2186 = vmatpush1.msra.mxu0 %v2162
        %2187 = vmatprep.subr.mxu0 0.0
        %2188 = vmatpush1.msra.mxu0 0.0
        %2189 = vmatprep.subr.mxu0 0.0
        %2190 = vmatpush1.msra.mxu0 0.0
        %2191 = vmatprep.subr.mxu0 0.0
        %2192 = vmatpush1.msra.mxu0 0.0
        %2193 = vmatprep.subr.mxu0 0.0
        %2194 = vmatpush1.msra.mxu0 0.0
        %2195 = vmatprep.subr.mxu0 0.0
        %2196 = vmatpush1.msra.mxu0 0.0
        %2197 = vmatprep.subr.mxu0 0.0
        %2198 = vmatpush1.msra.mxu0 0.0
        %2199 = vmatprep.subr.mxu0 0.0
        %2200 = vmatpush1.msra.mxu0 0.0
        %2201 = vmatprep.subr.mxu0 0.0
        %2202 = vmatpush1.msra.mxu0 0.0
        %2203 = vmatprep.subr.mxu0 0.0
        %2204 = vmatpush1.msra.mxu0 0.0
        %2205 = vmatprep.subr.mxu0 0.0
        %2206 = vmatpush1.msra.mxu0 0.0
        %2207 = vmatprep.subr.mxu0 0.0
        %2208 = vmatpush1.msra.mxu0 0.0
        %2209 = vmatprep.subr.mxu0 0.0
        %2210 = vmatpush1.msra.mxu0 0.0
        %2211 = vmatprep.subr.mxu0 0.0
        %2212 = vmatpush1.msra.mxu0 0.0
        %2213 = vmatprep.subr.mxu0 0.0
        %2214 = vmatpush1.msra.mxu0 0.0
        %2215 = vmatprep.subr.mxu0 0.0
        %2216 = vmatpush1.msra.mxu0 0.0
        %2217 = vmatprep.subr.mxu0 0.0
        %2218 = vmatpush1.msra.mxu0 0.0
        %2219 = vmatprep.subr.mxu0 0.0
        %2220 = vmatpush1.msra.mxu0 0.0
        %2221 = vmatprep.subr.mxu0 0.0
        %2222 = vmatpush1.msra.mxu0 0.0
        %2223 = vmatprep.subr.mxu0 0.0
        %2224 = vmatpush1.msra.mxu0 0.0
        %2225 = vmatprep.subr.mxu0 0.0
        %2226 = vmatpush1.msra.mxu0 0.0
        %2227 = vmatprep.subr.mxu0 0.0
        %2228 = vmatpush1.msra.mxu0 0.0
        %2229 = vmatprep.subr.mxu0 0.0
        %2230 = vmatpush1.msra.mxu0 0.0
        %2231 = vmatprep.subr.mxu0 0.0
        %2232 = vmatpush1.msra.mxu0 0.0
        %2233 = vmatprep.subr.mxu0 0.0
        %2234 = vmatpush1.msra.mxu0 0.0
        %2235 = vmatprep.subr.mxu0 0.0
        %2236 = vmatpush1.msra.mxu0 0.0
        %2237 = vmatprep.mubr.f32.mxu0 0.0
        %2238 = vmatmul.mubr.f32.gmra.mrb[0].mxu0 %v2141
        %v2239 = vpop.f32.mrb[0].mxu0
        %v2240 = vadd.f32 %v2114, %v2239
        %v2241 = vpop.f32.mrb[0].mxu0
        %v2242 = vadd.f32 %v2114, %v2241
        %2243 = vmatprep.mubr.f32.mxu0 0.0
        %2244 = vmatmul.mubr.f32.gmra.mrb[0].mxu0 %v2144
        %v2245 = vpop.f32.mrb[0].mxu0
        %v2246 = vadd.f32 %v2118, %v2245
        %v2247 = vpop.f32.mrb[0].mxu0
        %v2248 = vadd.f32 %v2118, %v2247
        %2249 = vmatprep.mubr.f32.mxu0 0.0
        %2250 = vmatmul.mubr.f32.gmra.mrb[0].mxu0 %v2147
        %v2251 = vpop.f32.mrb[0].mxu0
        %v2252 = vadd.f32 %v2122, %v2251
        %v2253 = vpop.f32.mrb[0].mxu0
        %v2254 = vadd.f32 %v2122, %v2253
        %2255 = vmatprep.mubr.f32.mxu0 0.0
        %2256 = vmatmul.mubr.f32.gmra.mrb[0].mxu0 %v2150
        %v2257 = vpop.f32.mrb[0].mxu0
        %v2258 = vadd.f32 %v2126, %v2257
        %v2259 = vpop.f32.mrb[0].mxu0
        %v2260 = vadd.f32 %v2126, %v2259
        %2261 = vmatprep.mubr.f32.mxu0 0.0
        %2262 = vmatmul.mubr.f32.gmra.mrb[0].mxu0 %v2153
        %v2263 = vpop.f32.mrb[0].mxu0
        %v2264 = vadd.f32 %v2130, %v2263
        %v2265 = vpop.f32.mrb[0].mxu0
        %v2266 = vadd.f32 %v2130, %v2265
        %2267 = vmatprep.mubr.f32.mxu0 0.0
        %2268 = vmatmul.mubr.f32.gmra.mrb[0].mxu0 %v2156
        %v2269 = vpop.f32.mrb[0].mxu0
        %v2270 = vadd.f32 %v2134, %v2269
        %v2271 = vpop.f32.mrb[0].mxu0
        %v2272 = vadd.f32 %v2134, %v2271
        %2273 = vmatprep.mubr.f32.mxu0 0.0
        %2274 = vmatmul.mubr.f32.gmra.mrb[0].mxu0 %v2159
        %v2275 = vpop.f32.mrb[0].mxu0
        %v2276 = vadd.f32 %v2138, %v2275
        %v2277 = vpop.f32.mrb[0].mxu0
        %v2278 = vadd.f32 %v2138, %v2277
        %2279 = vdwg.mxu0
        %2280 = vmatprep.subr.mxu0 %v2079
        %2281 = vmatpush1.msra.mxu0 %v2078
        %2282 = vmatprep.subr.mxu0 %v2083
        %2283 = vmatpush1.msra.mxu0 %v2082
        %2284 = vmatprep.subr.mxu0 %v2087
        %2285 = vmatpush1.msra.mxu0 %v2086
        %2286 = vmatprep.subr.mxu0 %v2091
        %2287 = vmatpush1.msra.mxu0 %v2090
        %2288 = vmatprep.subr.mxu0 %v2095
        %2289 = vmatpush1.msra.mxu0 %v2094
        %2290 = vmatprep.subr.mxu0 %v2099
        %2291 = vmatpush1.msra.mxu0 %v2098
        %2292 = vmatprep.subr.mxu0 %v2171
        %2293 = vmatpush1.msra.mxu0 %v2168
        %2294 = vmatprep.subr.mxu0 0.0
        %2295 = vmatpush1.msra.mxu0 0.0
        %2296 = vmatprep.subr.mxu0 0.0
        %2297 = vmatpush1.msra.mxu0 0.0
        %2298 = vmatprep.subr.mxu0 0.0
        %2299 = vmatpush1.msra.mxu0 0.0
        %2300 = vmatprep.subr.mxu0 0.0
        %2301 = vmatpush1.msra.mxu0 0.0
        %2302 = vmatprep.subr.mxu0 0.0
        %2303 = vmatpush1.msra.mxu0 0.0
        %2304 = vmatprep.subr.mxu0 0.0
        %2305 = vmatpush1.msra.mxu0 0.0
        %2306 = vmatprep.subr.mxu0 0.0
        %2307 = vmatpush1.msra.mxu0 0.0
        %2308 = vmatprep.subr.mxu0 0.0
        %2309 = vmatpush1.msra.mxu0 0.0
        %2310 = vmatprep.subr.mxu0 0.0
        %2311 = vmatpush1.msra.mxu0 0.0
        %2312 = vmatprep.subr.mxu0 0.0
        %2313 = vmatpush1.msra.mxu0 0.0
        %2314 = vmatprep.subr.mxu0 0.0
        %2315 = vmatpush1.msra.mxu0 0.0
        %2316 = vmatprep.subr.mxu0 0.0
        %2317 = vmatpush1.msra.mxu0 0.0
        %2318 = vmatprep.subr.mxu0 0.0
        %2319 = vmatpush1.msra.mxu0 0.0
        %2320 = vmatprep.subr.mxu0 0.0
        %2321 = vmatpush1.msra.mxu0 0.0
        %2322 = vmatprep.subr.mxu0 0.0
        %2323 = vmatpush1.msra.mxu0 0.0
        %2324 = vmatprep.subr.mxu0 0.0
        %2325 = vmatpush1.msra.mxu0 0.0
        %2326 = vmatprep.subr.mxu0 0.0
        %2327 = vmatpush1.msra.mxu0 0.0
        %2328 = vmatprep.subr.mxu0 0.0
        %2329 = vmatpush1.msra.mxu0 0.0
        %2330 = vmatprep.subr.mxu0 0.0
        %2331 = vmatpush1.msra.mxu0 0.0
        %2332 = vmatprep.subr.mxu0 0.0
        %2333 = vmatpush1.msra.mxu0 0.0
        %2334 = vmatprep.subr.mxu0 0.0
        %2335 = vmatpush1.msra.mxu0 0.0
        %2336 = vmatprep.subr.mxu0 0.0
        %2337 = vmatpush1.msra.mxu0 0.0
        %2338 = vmatprep.subr.mxu0 0.0
        %2339 = vmatpush1.msra.mxu0 0.0
        %2340 = vmatprep.subr.mxu0 0.0
        %2341 = vmatpush1.msra.mxu0 0.0
        %2342 = vmatprep.subr.mxu0 0.0
        %2343 = vmatpush1.msra.mxu0 0.0
        %2344 = vmatprep.mubr.f32.mxu0 0.0
        %2345 = vmatmul.mubr.f32.gmra.mrb[0].mxu0 %v2141
        %v2346 = vpop.f32.mrb[0].mxu0
        %v2347 = vadd.f32 %v2114, %v2346
        %v2348 = vpop.f32.mrb[0].mxu0
        %v2349 = vadd.f32 %v2114, %v2348
        %2350 = vmatprep.mubr.f32.mxu0 0.0
        %2351 = vmatmul.mubr.f32.gmra.mrb[0].mxu0 %v2144
        %v2352 = vpop.f32.mrb[0].mxu0
        %v2353 = vadd.f32 %v2118, %v2352
        %v2354 = vpop.f32.mrb[0].mxu0
        %v2355 = vadd.f32 %v2118, %v2354
        %2356 = vmatprep.mubr.f32.mxu0 0.0
        %2357 = vmatmul.mubr.f32.gmra.mrb[0].mxu0 %v2147
        %v2358 = vpop.f32.mrb[0].mxu0
        %v2359 = vadd.f32 %v2122, %v2358
        %v2360 = vpop.f32.mrb[0].mxu0
        %v2361 = vadd.f32 %v2122, %v2360
        %2362 = vmatprep.mubr.f32.mxu0 0.0
        %2363 = vmatmul.mubr.f32.gmra.mrb[0].mxu0 %v2150
        %v2364 = vpop.f32.mrb[0].mxu0
        %v2365 = vadd.f32 %v2126, %v2364
        %v2366 = vpop.f32.mrb[0].mxu0
        %v2367 = vadd.f32 %v2126, %v2366
        %2368 = vmatprep.mubr.f32.mxu0 0.0
        %2369 = vmatmul.mubr.f32.gmra.mrb[0].mxu0 %v2153
        %v2370 = vpop.f32.mrb[0].mxu0
        %v2371 = vadd.f32 %v2130, %v2370
        %v2372 = vpop.f32.mrb[0].mxu0
        %v2373 = vadd.f32 %v2130, %v2372
        %2374 = vmatprep.mubr.f32.mxu0 0.0
        %2375 = vmatmul.mubr.f32.gmra.mrb[0].mxu0 %v2156
        %v2376 = vpop.f32.mrb[0].mxu0
        %v2377 = vadd.f32 %v2134, %v2376
        %v2378 = vpop.f32.mrb[0].mxu0
        %v2379 = vadd.f32 %v2134, %v2378
        %2380 = vmatprep.mubr.f32.mxu0 0.0
        %2381 = vmatmul.mubr.f32.gmra.mrb[0].mxu0 %v2159
        %v2382 = vpop.f32.mrb[0].mxu0
        %v2383 = vadd.f32 %v2138, %v2382
        %v2384 = vpop.f32.mrb[0].mxu0
        %v2385 = vadd.f32 %v2138, %v2384
        %2386 = vdwg.mxu0
        %v2387 = vadd.f32 %v2240, %v2246
        %v2388 = vadd.f32 %v2387, %v2252
        %v2389 = vadd.f32 %v2388, %v2258
        %v2390 = vadd.f32 %v2389, %v2264
        %v2391 = vadd.f32 %v2390, %v2270
        %v2392 = vsel %vm474, %v2276, 0.0
        %v2393 = vadd.f32 %v2391, %v2392
        %v2394 = vrot.slane %v2393, 4
        %v2395 = vadd.f32 %v2393, %v2394
        %v2396 = vrot.slane %v2395, 2
        %v2397 = vadd.f32 %v2395, %v2396
        %v2398 = vrot.slane %v2397, 1
        %v2399 = vadd.f32 %v2397, %v2398
        %v2400 = vadd.f32 %v2242, %v2248
        %v2401 = vadd.f32 %v2400, %v2254
        %v2402 = vadd.f32 %v2401, %v2260
        %v2403 = vadd.f32 %v2402, %v2266
        %v2404 = vadd.f32 %v2403, %v2272
        %v2405 = vsel %vm474, %v2278, 0.0
        %v2406 = vadd.f32 %v2404, %v2405
        %v2407 = vrot.slane %v2406, 4
        %v2408 = vadd.f32 %v2406, %v2407
        %v2409 = vrot.slane %v2408, 2
        %v2410 = vadd.f32 %v2408, %v2409
        %v2411 = vrot.slane %v2410, 1
        %v2412 = vadd.f32 %v2410, %v2411
        %v2413 = vadd.f32 %v2347, %v2353
        %v2414 = vadd.f32 %v2413, %v2359
        %v2415 = vadd.f32 %v2414, %v2365
        %v2416 = vadd.f32 %v2415, %v2371
        %v2417 = vadd.f32 %v2416, %v2377
        %v2418 = vsel %vm474, %v2383, 0.0
        %v2419 = vadd.f32 %v2417, %v2418
        %v2420 = vrot.slane %v2419, 4
        %v2421 = vadd.f32 %v2419, %v2420
        %v2422 = vrot.slane %v2421, 2
        %v2423 = vadd.f32 %v2421, %v2422
        %v2424 = vrot.slane %v2423, 1
        %v2425 = vadd.f32 %v2423, %v2424
        %v2426 = vadd.f32 %v2349, %v2355
        %v2427 = vadd.f32 %v2426, %v2361
        %v2428 = vadd.f32 %v2427, %v2367
        %v2429 = vadd.f32 %v2428, %v2373
        %v2430 = vadd.f32 %v2429, %v2379
        %v2431 = vsel %vm474, %v2385, 0.0
        %v2432 = vadd.f32 %v2430, %v2431
        %v2433 = vrot.slane %v2432, 4
        %v2434 = vadd.f32 %v2432, %v2433
        %v2435 = vrot.slane %v2434, 2
        %v2436 = vadd.f32 %v2434, %v2435
        %v2437 = vrot.slane %v2436, 1
        %v2438 = vadd.f32 %v2436, %v2437
        %v2439 = vmul.f32 %v2240, %v2240
        %v2440 = vmul.f32 %v2242, %v2242
        %v2441 = vmul.f32 %v2347, %v2347
        %v2442 = vmul.f32 %v2349, %v2349
        %v2443 = vmul.f32 %v2246, %v2246
        %v2444 = vmul.f32 %v2248, %v2248
        %v2445 = vmul.f32 %v2353, %v2353
        %v2446 = vmul.f32 %v2355, %v2355
        %v2447 = vmul.f32 %v2252, %v2252
        %v2448 = vmul.f32 %v2254, %v2254
        %v2449 = vmul.f32 %v2359, %v2359
        %v2450 = vmul.f32 %v2361, %v2361
        %v2451 = vmul.f32 %v2258, %v2258
        %v2452 = vmul.f32 %v2260, %v2260
        %v2453 = vmul.f32 %v2365, %v2365
        %v2454 = vmul.f32 %v2367, %v2367
        %v2455 = vmul.f32 %v2264, %v2264
        %v2456 = vmul.f32 %v2266, %v2266
        %v2457 = vmul.f32 %v2371, %v2371
        %v2458 = vmul.f32 %v2373, %v2373
        %v2459 = vmul.f32 %v2270, %v2270
        %v2460 = vmul.f32 %v2272, %v2272
        %v2461 = vmul.f32 %v2377, %v2377
        %v2462 = vmul.f32 %v2379, %v2379
        %v2463 = vmul.f32 %v2276, %v2276
        %v2464 = vmul.f32 %v2278, %v2278
        %v2465 = vmul.f32 %v2383, %v2383
        %v2466 = vmul.f32 %v2385, %v2385
        %v2467 = vadd.f32 %v2439, %v2443
        %v2468 = vadd.f32 %v2467, %v2447
        %v2469 = vadd.f32 %v2468, %v2451
        %v2470 = vadd.f32 %v2469, %v2455
        %v2471 = vadd.f32 %v2470, %v2459
        %v2472 = vsel %vm474, %v2463, 0.0
        %v2473 = vadd.f32 %v2471, %v2472
        %v2474 = vrot.slane %v2473, 4
        %v2475 = vadd.f32 %v2473, %v2474
        %v2476 = vrot.slane %v2475, 2
        %v2477 = vadd.f32 %v2475, %v2476
        %v2478 = vrot.slane %v2477, 1
        %v2479 = vadd.f32 %v2477, %v2478
        %v2480 = vadd.f32 %v2440, %v2444
        %v2481 = vadd.f32 %v2480, %v2448
        %v2482 = vadd.f32 %v2481, %v2452
        %v2483 = vadd.f32 %v2482, %v2456
        %v2484 = vadd.f32 %v2483, %v2460
        %v2485 = vsel %vm474, %v2464, 0.0
        %v2486 = vadd.f32 %v2484, %v2485
        %v2487 = vrot.slane %v2486, 4
        %v2488 = vadd.f32 %v2486, %v2487
        %v2489 = vrot.slane %v2488, 2
        %v2490 = vadd.f32 %v2488, %v2489
        %v2491 = vrot.slane %v2490, 1
        %v2492 = vadd.f32 %v2490, %v2491
        %v2493 = vadd.f32 %v2441, %v2445
        %v2494 = vadd.f32 %v2493, %v2449
        %v2495 = vadd.f32 %v2494, %v2453
        %v2496 = vadd.f32 %v2495, %v2457
        %v2497 = vadd.f32 %v2496, %v2461
        %v2498 = vsel %vm474, %v2465, 0.0
        %v2499 = vadd.f32 %v2497, %v2498
        %v2500 = vrot.slane %v2499, 4
        %v2501 = vadd.f32 %v2499, %v2500
        %v2502 = vrot.slane %v2501, 2
        %v2503 = vadd.f32 %v2501, %v2502
        %v2504 = vrot.slane %v2503, 1
        %v2505 = vadd.f32 %v2503, %v2504
        %v2506 = vadd.f32 %v2442, %v2446
        %v2507 = vadd.f32 %v2506, %v2450
        %v2508 = vadd.f32 %v2507, %v2454
        %v2509 = vadd.f32 %v2508, %v2458
        %v2510 = vadd.f32 %v2509, %v2462
        %v2511 = vsel %vm474, %v2466, 0.0
        %v2512 = vadd.f32 %v2510, %v2511
        %v2513 = vrot.slane %v2512, 4
        %v2514 = vadd.f32 %v2512, %v2513
        %v2515 = vrot.slane %v2514, 2
        %v2516 = vadd.f32 %v2514, %v2515
        %v2517 = vrot.slane %v2516, 1
        %v2518 = vadd.f32 %v2516, %v2517
        %v2519 = vmul.f32 %v2399, 0.02
        %v2520 = vmul.f32 %v2412, 0.02
        %v2521 = vmul.f32 %v2425, 0.02
        %v2522 = vmul.f32 %v2438, 0.02
        %v2523 = vmul.f32 %v2479, 0.02
        %v2524 = vmul.f32 %v2492, 0.02
        %v2525 = vmul.f32 %v2505, 0.02
        %v2526 = vmul.f32 %v2518, 0.02
        %v2527 = vmul.f32 %v2519, %v2519
        %v2528 = vmul.f32 %v2520, %v2520
        %v2529 = vmul.f32 %v2521, %v2521
        %v2530 = vmul.f32 %v2522, %v2522
        %v2531 = vsub.f32 %v2523, %v2527
        %v2532 = vsub.f32 %v2524, %v2528
        %v2533 = vsub.f32 %v2525, %v2529
        %v2534 = vsub.f32 %v2526, %v2530
        %v2535 = vmax.f32 %v2531, 0.0
        %v2536 = vmax.f32 %v2532, 0.0
        %v2537 = vmax.f32 %v2533, 0.0
        %v2538 = vmax.f32 %v2534, 0.0
        %v2539 = vsub.f32 %v2240, %v2519
        %v2540 = vsub.f32 %v2242, %v2520
        %v2541 = vsub.f32 %v2347, %v2521
        %v2542 = vsub.f32 %v2349, %v2522
        %v2543 = vsub.f32 %v2246, %v2519
        %v2544 = vsub.f32 %v2248, %v2520
        %v2545 = vsub.f32 %v2353, %v2521
        %v2546 = vsub.f32 %v2355, %v2522
        %v2547 = vsub.f32 %v2252, %v2519
        %v2548 = vsub.f32 %v2254, %v2520
        %v2549 = vsub.f32 %v2359, %v2521
        %v2550 = vsub.f32 %v2361, %v2522
        %v2551 = vsub.f32 %v2258, %v2519
        %v2552 = vsub.f32 %v2260, %v2520
        %v2553 = vsub.f32 %v2365, %v2521
        %v2554 = vsub.f32 %v2367, %v2522
        %v2555 = vsub.f32 %v2264, %v2519
        %v2556 = vsub.f32 %v2266, %v2520
        %v2557 = vsub.f32 %v2371, %v2521
        %v2558 = vsub.f32 %v2373, %v2522
        %v2559 = vsub.f32 %v2270, %v2519
        %v2560 = vsub.f32 %v2272, %v2520
        %v2561 = vsub.f32 %v2377, %v2521
        %v2562 = vsub.f32 %v2379, %v2522
        %v2563 = vsub.f32 %v2276, %v2519
        %v2564 = vsub.f32 %v2278, %v2520
        %v2565 = vsub.f32 %v2383, %v2521
        %v2566 = vsub.f32 %v2385, %v2522
        %v2567 = vadd.f32 %v2535, 1e-05
        %v2568 = vadd.f32 %v2536, 1e-05
        %v2569 = vadd.f32 %v2537, 1e-05
        %v2570 = vadd.f32 %v2538, 1e-05
        %v2571 = vrsqrt.pop %v2567
        %v2572 = vrsqrt.pop %v2568
        %v2573 = vrsqrt.pop %v2569
        %v2574 = vrsqrt.pop %v2570
        %v2575 = vmul.f32 %v2539, %v2571
        %v2576 = vmul.f32 %v2540, %v2572
        %v2577 = vmul.f32 %v2541, %v2573
        %v2578 = vmul.f32 %v2542, %v2574
        %v2579 = vmul.f32 %v2543, %v2571
        %v2580 = vmul.f32 %v2544, %v2572
        %v2581 = vmul.f32 %v2545, %v2573
        %v2582 = vmul.f32 %v2546, %v2574
        %v2583 = vmul.f32 %v2547, %v2571
        %v2584 = vmul.f32 %v2548, %v2572
        %v2585 = vmul.f32 %v2549, %v2573
        %v2586 = vmul.f32 %v2550, %v2574
        %v2587 = vmul.f32 %v2551, %v2571
        %v2588 = vmul.f32 %v2552, %v2572
        %v2589 = vmul.f32 %v2553, %v2573
        %v2590 = vmul.f32 %v2554, %v2574
        %v2591 = vmul.f32 %v2555, %v2571
        %v2592 = vmul.f32 %v2556, %v2572
        %v2593 = vmul.f32 %v2557, %v2573
        %v2594 = vmul.f32 %v2558, %v2574
        %v2595 = vmul.f32 %v2559, %v2571
        %v2596 = vmul.f32 %v2560, %v2572
        %v2597 = vmul.f32 %v2561, %v2573
        %v2598 = vmul.f32 %v2562, %v2574
        %v2599 = vmul.f32 %v2563, %v2571
        %v2600 = vmul.f32 %v2564, %v2572
        %v2601 = vmul.f32 %v2565, %v2573
        %v2602 = vmul.f32 %v2566, %v2574
        %2603 = vset.pattern.permute.xlu0 12
        %2604 = vperm.xlu0 %2603, %v217
        %v2605 = vpop.permute.xlu0 %2604
        %2607 = vset.pattern.permute.xlu0 12
        %2608 = vperm.xlu0 %2607, %v218
        %v2609 = vpop.permute.xlu0 %2608
        %2611 = vset.pattern.permute.xlu0 12
        %2612 = vperm.xlu0 %2611, %v219
        %v2613 = vpop.permute.xlu0 %2612
        %2615 = vset.pattern.permute.xlu0 12
        %2616 = vperm.xlu0 %2615, %v220
        %v2617 = vpop.permute.xlu0 %2616
        %2619 = vset.pattern.permute.xlu0 12
        %2620 = vperm.xlu0 %2619, %v221
        %v2621 = vpop.permute.xlu0 %2620
        %2623 = vset.pattern.permute.xlu0 12
        %2624 = vperm.xlu0 %2623, %v222
        %v2625 = vpop.permute.xlu0 %2624
        %2627 = vset.pattern.permute.xlu0 12
        %2628 = vperm.xlu0 %2627, %v223
        %v2629 = vpop.permute.xlu0 %2628
        %v2631 = vmul.f32 %v2575, %v2605
        %v2632 = vmul.f32 %v2576, %v2605
        %v2633 = vmul.f32 %v2577, %v2605
        %v2634 = vmul.f32 %v2578, %v2605
        %v2635 = vmul.f32 %v2579, %v2609
        %v2636 = vmul.f32 %v2580, %v2609
        %v2637 = vmul.f32 %v2581, %v2609
        %v2638 = vmul.f32 %v2582, %v2609
        %v2639 = vmul.f32 %v2583, %v2613
        %v2640 = vmul.f32 %v2584, %v2613
        %v2641 = vmul.f32 %v2585, %v2613
        %v2642 = vmul.f32 %v2586, %v2613
        %v2643 = vmul.f32 %v2587, %v2617
        %v2644 = vmul.f32 %v2588, %v2617
        %v2645 = vmul.f32 %v2589, %v2617
        %v2646 = vmul.f32 %v2590, %v2617
        %v2647 = vmul.f32 %v2591, %v2621
        %v2648 = vmul.f32 %v2592, %v2621
        %v2649 = vmul.f32 %v2593, %v2621
        %v2650 = vmul.f32 %v2594, %v2621
        %v2651 = vmul.f32 %v2595, %v2625
        %v2652 = vmul.f32 %v2596, %v2625
        %v2653 = vmul.f32 %v2597, %v2625
        %v2654 = vmul.f32 %v2598, %v2625
        %v2655 = vmul.f32 %v2599, %v2629
        %v2656 = vmul.f32 %v2600, %v2629
        %v2657 = vmul.f32 %v2601, %v2629
        %v2658 = vmul.f32 %v2602, %v2629
        %2659 = vset.pattern.permute.xlu0 13
        %2660 = vperm.xlu0 %2659, %v217
        %v2661 = vpop.permute.xlu0 %2660
        %2663 = vset.pattern.permute.xlu0 13
        %2664 = vperm.xlu0 %2663, %v218
        %v2665 = vpop.permute.xlu0 %2664
        %2667 = vset.pattern.permute.xlu0 13
        %2668 = vperm.xlu0 %2667, %v219
        %v2669 = vpop.permute.xlu0 %2668
        %2671 = vset.pattern.permute.xlu0 13
        %2672 = vperm.xlu0 %2671, %v220
        %v2673 = vpop.permute.xlu0 %2672
        %2675 = vset.pattern.permute.xlu0 13
        %2676 = vperm.xlu0 %2675, %v221
        %v2677 = vpop.permute.xlu0 %2676
        %2679 = vset.pattern.permute.xlu0 13
        %2680 = vperm.xlu0 %2679, %v222
        %v2681 = vpop.permute.xlu0 %2680
        %2683 = vset.pattern.permute.xlu0 13
        %2684 = vperm.xlu0 %2683, %v223
        %v2685 = vpop.permute.xlu0 %2684
        %v2687 = vadd.f32 %v2631, %v2661
        %v2688 = vadd.f32 %v2632, %v2661
        %v2689 = vadd.f32 %v2633, %v2661
        %v2690 = vadd.f32 %v2634, %v2661
        %v2691 = vadd.f32 %v2635, %v2665
        %v2692 = vadd.f32 %v2636, %v2665
        %v2693 = vadd.f32 %v2637, %v2665
        %v2694 = vadd.f32 %v2638, %v2665
        %v2695 = vadd.f32 %v2639, %v2669
        %v2696 = vadd.f32 %v2640, %v2669
        %v2697 = vadd.f32 %v2641, %v2669
        %v2698 = vadd.f32 %v2642, %v2669
        %v2699 = vadd.f32 %v2643, %v2673
        %v2700 = vadd.f32 %v2644, %v2673
        %v2701 = vadd.f32 %v2645, %v2673
        %v2702 = vadd.f32 %v2646, %v2673
        %v2703 = vadd.f32 %v2647, %v2677
        %v2704 = vadd.f32 %v2648, %v2677
        %v2705 = vadd.f32 %v2649, %v2677
        %v2706 = vadd.f32 %v2650, %v2677
        %v2707 = vadd.f32 %v2651, %v2681
        %v2708 = vadd.f32 %v2652, %v2681
        %v2709 = vadd.f32 %v2653, %v2681
        %v2710 = vadd.f32 %v2654, %v2681
        %v2711 = vadd.f32 %v2655, %v2685
        %v2712 = vadd.f32 %v2656, %v2685
        %v2713 = vadd.f32 %v2657, %v2685
        %v2714 = vadd.f32 %v2658, %v2685
        %v2715 = vtanh.pop %v2687
        %v2716 = vtanh.pop %v2688
        %v2717 = vtanh.pop %v2689
        %v2718 = vtanh.pop %v2690
        %v2719 = vtanh.pop %v2691
        %v2720 = vtanh.pop %v2692
        %v2721 = vtanh.pop %v2693
        %v2722 = vtanh.pop %v2694
        %v2723 = vtanh.pop %v2695
        %v2724 = vtanh.pop %v2696
        %v2725 = vtanh.pop %v2697
        %v2726 = vtanh.pop %v2698
        %v2727 = vtanh.pop %v2699
        %v2728 = vtanh.pop %v2700
        %v2729 = vtanh.pop %v2701
        %v2730 = vtanh.pop %v2702
        %v2731 = vtanh.pop %v2703
        %v2732 = vtanh.pop %v2704
        %v2733 = vtanh.pop %v2705
        %v2734 = vtanh.pop %v2706
        %v2735 = vtanh.pop %v2707
        %v2736 = vtanh.pop %v2708
        %v2737 = vtanh.pop %v2709
        %v2738 = vtanh.pop %v2710
        %v2739 = vtanh.pop %v2711
        %v2740 = vtanh.pop %v2712
        %v2741 = vtanh.pop %v2713
        %v2742 = vtanh.pop %v2714
        %s2743 = scalar_lea.vmem %s2, 168
        %v2744 = vld [vmem:[%s2743] sm:$0xff]
        %v2745 = vld [vmem:[%s2743 + $0x8] sm:$0xff]
        %v2746 = vld [vmem:[%s2743 + $0x10] sm:$0xff]
        %v2747 = vld [vmem:[%s2743 + $0x18] sm:$0xff]
        %v2748 = vld [vmem:[%s2743 + $0x20] sm:$0xff]
        %v2749 = vld [vmem:[%s2743 + $0x28] sm:$0xff]
        %v2750 = vld [vmem:[%s2743 + $0x30] sm:$0x3]
        %2751 = vset.pattern.permute.xlu0 14
        %2752 = vperm.xlu0 %2751, %v217
        %v2753 = vpop.permute.xlu0 %2752
        %2755 = vset.pattern.permute.xlu0 14
        %2756 = vperm.xlu0 %2755, %v218
        %v2757 = vpop.permute.xlu0 %2756
        %2759 = vset.pattern.permute.xlu0 14
        %2760 = vperm.xlu0 %2759, %v219
        %v2761 = vpop.permute.xlu0 %2760
        %2763 = vset.pattern.permute.xlu0 14
        %2764 = vperm.xlu0 %2763, %v220
        %v2765 = vpop.permute.xlu0 %2764
        %2767 = vset.pattern.permute.xlu0 14
        %2768 = vperm.xlu0 %2767, %v221
        %v2769 = vpop.permute.xlu0 %2768
        %2771 = vset.pattern.permute.xlu0 14
        %2772 = vperm.xlu0 %2771, %v222
        %v2773 = vpop.permute.xlu0 %2772
        %2775 = vset.pattern.permute.xlu0 14
        %2776 = vperm.xlu0 %2775, %v223
        %v2777 = vpop.permute.xlu0 %2776
        %v2780 = vsel %vm861, %v2744, 0
        %v2783 = vsel %vm861, %v2745, 0
        %v2786 = vsel %vm861, %v2746, 0
        %v2789 = vsel %vm861, %v2747, 0
        %v2792 = vsel %vm861, %v2748, 0
        %v2795 = vsel %vm861, %v2749, 0
        %v2798 = vsel %vm861, %v2750, 0
        %v2801 = vsel %vm474, %v2739, 0
        %v2804 = vsel %vm474, %v2740, 0
        %v2807 = vsel %vm474, %v2741, 0
        %v2810 = vsel %vm474, %v2742, 0
        %2812 = vmatprep.subr.mxu0 %v2716
        %2813 = vmatpush1.msra.mxu0 %v2715
        %2814 = vmatprep.subr.mxu0 %v2720
        %2815 = vmatpush1.msra.mxu0 %v2719
        %2816 = vmatprep.subr.mxu0 %v2724
        %2817 = vmatpush1.msra.mxu0 %v2723
        %2818 = vmatprep.subr.mxu0 %v2728
        %2819 = vmatpush1.msra.mxu0 %v2727
        %2820 = vmatprep.subr.mxu0 %v2732
        %2821 = vmatpush1.msra.mxu0 %v2731
        %2822 = vmatprep.subr.mxu0 %v2736
        %2823 = vmatpush1.msra.mxu0 %v2735
        %2824 = vmatprep.subr.mxu0 %v2804
        %2825 = vmatpush1.msra.mxu0 %v2801
        %2826 = vmatprep.subr.mxu0 0.0
        %2827 = vmatpush1.msra.mxu0 0.0
        %2828 = vmatprep.subr.mxu0 0.0
        %2829 = vmatpush1.msra.mxu0 0.0
        %2830 = vmatprep.subr.mxu0 0.0
        %2831 = vmatpush1.msra.mxu0 0.0
        %2832 = vmatprep.subr.mxu0 0.0
        %2833 = vmatpush1.msra.mxu0 0.0
        %2834 = vmatprep.subr.mxu0 0.0
        %2835 = vmatpush1.msra.mxu0 0.0
        %2836 = vmatprep.subr.mxu0 0.0
        %2837 = vmatpush1.msra.mxu0 0.0
        %2838 = vmatprep.subr.mxu0 0.0
        %2839 = vmatpush1.msra.mxu0 0.0
        %2840 = vmatprep.subr.mxu0 0.0
        %2841 = vmatpush1.msra.mxu0 0.0
        %2842 = vmatprep.subr.mxu0 0.0
        %2843 = vmatpush1.msra.mxu0 0.0
        %2844 = vmatprep.subr.mxu0 0.0
        %2845 = vmatpush1.msra.mxu0 0.0
        %2846 = vmatprep.subr.mxu0 0.0
        %2847 = vmatpush1.msra.mxu0 0.0
        %2848 = vmatprep.subr.mxu0 0.0
        %2849 = vmatpush1.msra.mxu0 0.0
        %2850 = vmatprep.subr.mxu0 0.0
        %2851 = vmatpush1.msra.mxu0 0.0
        %2852 = vmatprep.subr.mxu0 0.0
        %2853 = vmatpush1.msra.mxu0 0.0
        %2854 = vmatprep.subr.mxu0 0.0
        %2855 = vmatpush1.msra.mxu0 0.0
        %2856 = vmatprep.subr.mxu0 0.0
        %2857 = vmatpush1.msra.mxu0 0.0
        %2858 = vmatprep.subr.mxu0 0.0
        %2859 = vmatpush1.msra.mxu0 0.0
        %2860 = vmatprep.subr.mxu0 0.0
        %2861 = vmatpush1.msra.mxu0 0.0
        %2862 = vmatprep.subr.mxu0 0.0
        %2863 = vmatpush1.msra.mxu0 0.0
        %2864 = vmatprep.subr.mxu0 0.0
        %2865 = vmatpush1.msra.mxu0 0.0
        %2866 = vmatprep.subr.mxu0 0.0
        %2867 = vmatpush1.msra.mxu0 0.0
        %2868 = vmatprep.subr.mxu0 0.0
        %2869 = vmatpush1.msra.mxu0 0.0
        %2870 = vmatprep.subr.mxu0 0.0
        %2871 = vmatpush1.msra.mxu0 0.0
        %2872 = vmatprep.subr.mxu0 0.0
        %2873 = vmatpush1.msra.mxu0 0.0
        %2874 = vmatprep.subr.mxu0 0.0
        %2875 = vmatpush1.msra.mxu0 0.0
        %2876 = vmatprep.mubr.f32.mxu0 0.0
        %2877 = vmatmul.mubr.f32.gmra.mrb[0].mxu0 %v2780
        %v2878 = vpop.f32.mrb[0].mxu0
        %v2879 = vadd.f32 %v2753, %v2878
        %v2880 = vpop.f32.mrb[0].mxu0
        %v2881 = vadd.f32 %v2753, %v2880
        %2882 = vmatprep.mubr.f32.mxu0 0.0
        %2883 = vmatmul.mubr.f32.gmra.mrb[0].mxu0 %v2783
        %v2884 = vpop.f32.mrb[0].mxu0
        %v2885 = vadd.f32 %v2757, %v2884
        %v2886 = vpop.f32.mrb[0].mxu0
        %v2887 = vadd.f32 %v2757, %v2886
        %2888 = vmatprep.mubr.f32.mxu0 0.0
        %2889 = vmatmul.mubr.f32.gmra.mrb[0].mxu0 %v2786
        %v2890 = vpop.f32.mrb[0].mxu0
        %v2891 = vadd.f32 %v2761, %v2890
        %v2892 = vpop.f32.mrb[0].mxu0
        %v2893 = vadd.f32 %v2761, %v2892
        %2894 = vmatprep.mubr.f32.mxu0 0.0
        %2895 = vmatmul.mubr.f32.gmra.mrb[0].mxu0 %v2789
        %v2896 = vpop.f32.mrb[0].mxu0
        %v2897 = vadd.f32 %v2765, %v2896
        %v2898 = vpop.f32.mrb[0].mxu0
        %v2899 = vadd.f32 %v2765, %v2898
        %2900 = vmatprep.mubr.f32.mxu0 0.0
        %2901 = vmatmul.mubr.f32.gmra.mrb[0].mxu0 %v2792
        %v2902 = vpop.f32.mrb[0].mxu0
        %v2903 = vadd.f32 %v2769, %v2902
        %v2904 = vpop.f32.mrb[0].mxu0
        %v2905 = vadd.f32 %v2769, %v2904
        %2906 = vmatprep.mubr.f32.mxu0 0.0
        %2907 = vmatmul.mubr.f32.gmra.mrb[0].mxu0 %v2795
        %v2908 = vpop.f32.mrb[0].mxu0
        %v2909 = vadd.f32 %v2773, %v2908
        %v2910 = vpop.f32.mrb[0].mxu0
        %v2911 = vadd.f32 %v2773, %v2910
        %2912 = vmatprep.mubr.f32.mxu0 0.0
        %2913 = vmatmul.mubr.f32.gmra.mrb[0].mxu0 %v2798
        %v2914 = vpop.f32.mrb[0].mxu0
        %v2915 = vadd.f32 %v2777, %v2914
        %v2916 = vpop.f32.mrb[0].mxu0
        %v2917 = vadd.f32 %v2777, %v2916
        %2918 = vdwg.mxu0
        %2919 = vmatprep.subr.mxu0 %v2718
        %2920 = vmatpush1.msra.mxu0 %v2717
        %2921 = vmatprep.subr.mxu0 %v2722
        %2922 = vmatpush1.msra.mxu0 %v2721
        %2923 = vmatprep.subr.mxu0 %v2726
        %2924 = vmatpush1.msra.mxu0 %v2725
        %2925 = vmatprep.subr.mxu0 %v2730
        %2926 = vmatpush1.msra.mxu0 %v2729
        %2927 = vmatprep.subr.mxu0 %v2734
        %2928 = vmatpush1.msra.mxu0 %v2733
        %2929 = vmatprep.subr.mxu0 %v2738
        %2930 = vmatpush1.msra.mxu0 %v2737
        %2931 = vmatprep.subr.mxu0 %v2810
        %2932 = vmatpush1.msra.mxu0 %v2807
        %2933 = vmatprep.subr.mxu0 0.0
        %2934 = vmatpush1.msra.mxu0 0.0
        %2935 = vmatprep.subr.mxu0 0.0
        %2936 = vmatpush1.msra.mxu0 0.0
        %2937 = vmatprep.subr.mxu0 0.0
        %2938 = vmatpush1.msra.mxu0 0.0
        %2939 = vmatprep.subr.mxu0 0.0
        %2940 = vmatpush1.msra.mxu0 0.0
        %2941 = vmatprep.subr.mxu0 0.0
        %2942 = vmatpush1.msra.mxu0 0.0
        %2943 = vmatprep.subr.mxu0 0.0
        %2944 = vmatpush1.msra.mxu0 0.0
        %2945 = vmatprep.subr.mxu0 0.0
        %2946 = vmatpush1.msra.mxu0 0.0
        %2947 = vmatprep.subr.mxu0 0.0
        %2948 = vmatpush1.msra.mxu0 0.0
        %2949 = vmatprep.subr.mxu0 0.0
        %2950 = vmatpush1.msra.mxu0 0.0
        %2951 = vmatprep.subr.mxu0 0.0
        %2952 = vmatpush1.msra.mxu0 0.0
        %2953 = vmatprep.subr.mxu0 0.0
        %2954 = vmatpush1.msra.mxu0 0.0
        %2955 = vmatprep.subr.mxu0 0.0
        %2956 = vmatpush1.msra.mxu0 0.0
        %2957 = vmatprep.subr.mxu0 0.0
        %2958 = vmatpush1.msra.mxu0 0.0
        %2959 = vmatprep.subr.mxu0 0.0
        %2960 = vmatpush1.msra.mxu0 0.0
        %2961 = vmatprep.subr.mxu0 0.0
        %2962 = vmatpush1.msra.mxu0 0.0
        %2963 = vmatprep.subr.mxu0 0.0
        %2964 = vmatpush1.msra.mxu0 0.0
        %2965 = vmatprep.subr.mxu0 0.0
        %2966 = vmatpush1.msra.mxu0 0.0
        %2967 = vmatprep.subr.mxu0 0.0
        %2968 = vmatpush1.msra.mxu0 0.0
        %2969 = vmatprep.subr.mxu0 0.0
        %2970 = vmatpush1.msra.mxu0 0.0
        %2971 = vmatprep.subr.mxu0 0.0
        %2972 = vmatpush1.msra.mxu0 0.0
        %2973 = vmatprep.subr.mxu0 0.0
        %2974 = vmatpush1.msra.mxu0 0.0
        %2975 = vmatprep.subr.mxu0 0.0
        %2976 = vmatpush1.msra.mxu0 0.0
        %2977 = vmatprep.subr.mxu0 0.0
        %2978 = vmatpush1.msra.mxu0 0.0
        %2979 = vmatprep.subr.mxu0 0.0
        %2980 = vmatpush1.msra.mxu0 0.0
        %2981 = vmatprep.subr.mxu0 0.0
        %2982 = vmatpush1.msra.mxu0 0.0
        %2983 = vmatprep.mubr.f32.mxu0 0.0
        %2984 = vmatmul.mubr.f32.gmra.mrb[0].mxu0 %v2780
        %v2985 = vpop.f32.mrb[0].mxu0
        %v2986 = vadd.f32 %v2753, %v2985
        %v2987 = vpop.f32.mrb[0].mxu0
        %v2988 = vadd.f32 %v2753, %v2987
        %2989 = vmatprep.mubr.f32.mxu0 0.0
        %2990 = vmatmul.mubr.f32.gmra.mrb[0].mxu0 %v2783
        %v2991 = vpop.f32.mrb[0].mxu0
        %v2992 = vadd.f32 %v2757, %v2991
        %v2993 = vpop.f32.mrb[0].mxu0
        %v2994 = vadd.f32 %v2757, %v2993
        %2995 = vmatprep.mubr.f32.mxu0 0.0
        %2996 = vmatmul.mubr.f32.gmra.mrb[0].mxu0 %v2786
        %v2997 = vpop.f32.mrb[0].mxu0
        %v2998 = vadd.f32 %v2761, %v2997
        %v2999 = vpop.f32.mrb[0].mxu0
        %v3000 = vadd.f32 %v2761, %v2999
        %3001 = vmatprep.mubr.f32.mxu0 0.0
        %3002 = vmatmul.mubr.f32.gmra.mrb[0].mxu0 %v2789
        %v3003 = vpop.f32.mrb[0].mxu0
        %v3004 = vadd.f32 %v2765, %v3003
        %v3005 = vpop.f32.mrb[0].mxu0
        %v3006 = vadd.f32 %v2765, %v3005
        %3007 = vmatprep.mubr.f32.mxu0 0.0
        %3008 = vmatmul.mubr.f32.gmra.mrb[0].mxu0 %v2792
        %v3009 = vpop.f32.mrb[0].mxu0
        %v3010 = vadd.f32 %v2769, %v3009
        %v3011 = vpop.f32.mrb[0].mxu0
        %v3012 = vadd.f32 %v2769, %v3011
        %3013 = vmatprep.mubr.f32.mxu0 0.0
        %3014 = vmatmul.mubr.f32.gmra.mrb[0].mxu0 %v2795
        %v3015 = vpop.f32.mrb[0].mxu0
        %v3016 = vadd.f32 %v2773, %v3015
        %v3017 = vpop.f32.mrb[0].mxu0
        %v3018 = vadd.f32 %v2773, %v3017
        %3019 = vmatprep.mubr.f32.mxu0 0.0
        %3020 = vmatmul.mubr.f32.gmra.mrb[0].mxu0 %v2798
        %v3021 = vpop.f32.mrb[0].mxu0
        %v3022 = vadd.f32 %v2777, %v3021
        %v3023 = vpop.f32.mrb[0].mxu0
        %v3024 = vadd.f32 %v2777, %v3023
        %3025 = vdwg.mxu0
        %v3026 = vadd.f32 %v2879, %v2885
        %v3027 = vadd.f32 %v3026, %v2891
        %v3028 = vadd.f32 %v3027, %v2897
        %v3029 = vadd.f32 %v3028, %v2903
        %v3030 = vadd.f32 %v3029, %v2909
        %v3031 = vsel %vm474, %v2915, 0.0
        %v3032 = vadd.f32 %v3030, %v3031
        %v3033 = vrot.slane %v3032, 4
        %v3034 = vadd.f32 %v3032, %v3033
        %v3035 = vrot.slane %v3034, 2
        %v3036 = vadd.f32 %v3034, %v3035
        %v3037 = vrot.slane %v3036, 1
        %v3038 = vadd.f32 %v3036, %v3037
        %v3039 = vadd.f32 %v2881, %v2887
        %v3040 = vadd.f32 %v3039, %v2893
        %v3041 = vadd.f32 %v3040, %v2899
        %v3042 = vadd.f32 %v3041, %v2905
        %v3043 = vadd.f32 %v3042, %v2911
        %v3044 = vsel %vm474, %v2917, 0.0
        %v3045 = vadd.f32 %v3043, %v3044
        %v3046 = vrot.slane %v3045, 4
        %v3047 = vadd.f32 %v3045, %v3046
        %v3048 = vrot.slane %v3047, 2
        %v3049 = vadd.f32 %v3047, %v3048
        %v3050 = vrot.slane %v3049, 1
        %v3051 = vadd.f32 %v3049, %v3050
        %v3052 = vadd.f32 %v2986, %v2992
        %v3053 = vadd.f32 %v3052, %v2998
        %v3054 = vadd.f32 %v3053, %v3004
        %v3055 = vadd.f32 %v3054, %v3010
        %v3056 = vadd.f32 %v3055, %v3016
        %v3057 = vsel %vm474, %v3022, 0.0
        %v3058 = vadd.f32 %v3056, %v3057
        %v3059 = vrot.slane %v3058, 4
        %v3060 = vadd.f32 %v3058, %v3059
        %v3061 = vrot.slane %v3060, 2
        %v3062 = vadd.f32 %v3060, %v3061
        %v3063 = vrot.slane %v3062, 1
        %v3064 = vadd.f32 %v3062, %v3063
        %v3065 = vadd.f32 %v2988, %v2994
        %v3066 = vadd.f32 %v3065, %v3000
        %v3067 = vadd.f32 %v3066, %v3006
        %v3068 = vadd.f32 %v3067, %v3012
        %v3069 = vadd.f32 %v3068, %v3018
        %v3070 = vsel %vm474, %v3024, 0.0
        %v3071 = vadd.f32 %v3069, %v3070
        %v3072 = vrot.slane %v3071, 4
        %v3073 = vadd.f32 %v3071, %v3072
        %v3074 = vrot.slane %v3073, 2
        %v3075 = vadd.f32 %v3073, %v3074
        %v3076 = vrot.slane %v3075, 1
        %v3077 = vadd.f32 %v3075, %v3076
        %v3078 = vmul.f32 %v2879, %v2879
        %v3079 = vmul.f32 %v2881, %v2881
        %v3080 = vmul.f32 %v2986, %v2986
        %v3081 = vmul.f32 %v2988, %v2988
        %v3082 = vmul.f32 %v2885, %v2885
        %v3083 = vmul.f32 %v2887, %v2887
        %v3084 = vmul.f32 %v2992, %v2992
        %v3085 = vmul.f32 %v2994, %v2994
        %v3086 = vmul.f32 %v2891, %v2891
        %v3087 = vmul.f32 %v2893, %v2893
        %v3088 = vmul.f32 %v2998, %v2998
        %v3089 = vmul.f32 %v3000, %v3000
        %v3090 = vmul.f32 %v2897, %v2897
        %v3091 = vmul.f32 %v2899, %v2899
        %v3092 = vmul.f32 %v3004, %v3004
        %v3093 = vmul.f32 %v3006, %v3006
        %v3094 = vmul.f32 %v2903, %v2903
        %v3095 = vmul.f32 %v2905, %v2905
        %v3096 = vmul.f32 %v3010, %v3010
        %v3097 = vmul.f32 %v3012, %v3012
        %v3098 = vmul.f32 %v2909, %v2909
        %v3099 = vmul.f32 %v2911, %v2911
        %v3100 = vmul.f32 %v3016, %v3016
        %v3101 = vmul.f32 %v3018, %v3018
        %v3102 = vmul.f32 %v2915, %v2915
        %v3103 = vmul.f32 %v2917, %v2917
        %v3104 = vmul.f32 %v3022, %v3022
        %v3105 = vmul.f32 %v3024, %v3024
        %v3106 = vadd.f32 %v3078, %v3082
        %v3107 = vadd.f32 %v3106, %v3086
        %v3108 = vadd.f32 %v3107, %v3090
        %v3109 = vadd.f32 %v3108, %v3094
        %v3110 = vadd.f32 %v3109, %v3098
        %v3111 = vsel %vm474, %v3102, 0.0
        %v3112 = vadd.f32 %v3110, %v3111
        %v3113 = vrot.slane %v3112, 4
        %v3114 = vadd.f32 %v3112, %v3113
        %v3115 = vrot.slane %v3114, 2
        %v3116 = vadd.f32 %v3114, %v3115
        %v3117 = vrot.slane %v3116, 1
        %v3118 = vadd.f32 %v3116, %v3117
        %v3119 = vadd.f32 %v3079, %v3083
        %v3120 = vadd.f32 %v3119, %v3087
        %v3121 = vadd.f32 %v3120, %v3091
        %v3122 = vadd.f32 %v3121, %v3095
        %v3123 = vadd.f32 %v3122, %v3099
        %v3124 = vsel %vm474, %v3103, 0.0
        %v3125 = vadd.f32 %v3123, %v3124
        %v3126 = vrot.slane %v3125, 4
        %v3127 = vadd.f32 %v3125, %v3126
        %v3128 = vrot.slane %v3127, 2
        %v3129 = vadd.f32 %v3127, %v3128
        %v3130 = vrot.slane %v3129, 1
        %v3131 = vadd.f32 %v3129, %v3130
        %v3132 = vadd.f32 %v3080, %v3084
        %v3133 = vadd.f32 %v3132, %v3088
        %v3134 = vadd.f32 %v3133, %v3092
        %v3135 = vadd.f32 %v3134, %v3096
        %v3136 = vadd.f32 %v3135, %v3100
        %v3137 = vsel %vm474, %v3104, 0.0
        %v3138 = vadd.f32 %v3136, %v3137
        %v3139 = vrot.slane %v3138, 4
        %v3140 = vadd.f32 %v3138, %v3139
        %v3141 = vrot.slane %v3140, 2
        %v3142 = vadd.f32 %v3140, %v3141
        %v3143 = vrot.slane %v3142, 1
        %v3144 = vadd.f32 %v3142, %v3143
        %v3145 = vadd.f32 %v3081, %v3085
        %v3146 = vadd.f32 %v3145, %v3089
        %v3147 = vadd.f32 %v3146, %v3093
        %v3148 = vadd.f32 %v3147, %v3097
        %v3149 = vadd.f32 %v3148, %v3101
        %v3150 = vsel %vm474, %v3105, 0.0
        %v3151 = vadd.f32 %v3149, %v3150
        %v3152 = vrot.slane %v3151, 4
        %v3153 = vadd.f32 %v3151, %v3152
        %v3154 = vrot.slane %v3153, 2
        %v3155 = vadd.f32 %v3153, %v3154
        %v3156 = vrot.slane %v3155, 1
        %v3157 = vadd.f32 %v3155, %v3156
        %v3158 = vmul.f32 %v3038, 0.02
        %v3159 = vmul.f32 %v3051, 0.02
        %v3160 = vmul.f32 %v3064, 0.02
        %v3161 = vmul.f32 %v3077, 0.02
        %v3162 = vmul.f32 %v3118, 0.02
        %v3163 = vmul.f32 %v3131, 0.02
        %v3164 = vmul.f32 %v3144, 0.02
        %v3165 = vmul.f32 %v3157, 0.02
        %v3166 = vmul.f32 %v3158, %v3158
        %v3167 = vmul.f32 %v3159, %v3159
        %v3168 = vmul.f32 %v3160, %v3160
        %v3169 = vmul.f32 %v3161, %v3161
        %v3170 = vsub.f32 %v3162, %v3166
        %v3171 = vsub.f32 %v3163, %v3167
        %v3172 = vsub.f32 %v3164, %v3168
        %v3173 = vsub.f32 %v3165, %v3169
        %v3174 = vmax.f32 %v3170, 0.0
        %v3175 = vmax.f32 %v3171, 0.0
        %v3176 = vmax.f32 %v3172, 0.0
        %v3177 = vmax.f32 %v3173, 0.0
        %v3178 = vsub.f32 %v2879, %v3158
        %v3179 = vsub.f32 %v2881, %v3159
        %v3180 = vsub.f32 %v2986, %v3160
        %v3181 = vsub.f32 %v2988, %v3161
        %v3182 = vsub.f32 %v2885, %v3158
        %v3183 = vsub.f32 %v2887, %v3159
        %v3184 = vsub.f32 %v2992, %v3160
        %v3185 = vsub.f32 %v2994, %v3161
        %v3186 = vsub.f32 %v2891, %v3158
        %v3187 = vsub.f32 %v2893, %v3159
        %v3188 = vsub.f32 %v2998, %v3160
        %v3189 = vsub.f32 %v3000, %v3161
        %v3190 = vsub.f32 %v2897, %v3158
        %v3191 = vsub.f32 %v2899, %v3159
        %v3192 = vsub.f32 %v3004, %v3160
        %v3193 = vsub.f32 %v3006, %v3161
        %v3194 = vsub.f32 %v2903, %v3158
        %v3195 = vsub.f32 %v2905, %v3159
        %v3196 = vsub.f32 %v3010, %v3160
        %v3197 = vsub.f32 %v3012, %v3161
        %v3198 = vsub.f32 %v2909, %v3158
        %v3199 = vsub.f32 %v2911, %v3159
        %v3200 = vsub.f32 %v3016, %v3160
        %v3201 = vsub.f32 %v3018, %v3161
        %v3202 = vsub.f32 %v2915, %v3158
        %v3203 = vsub.f32 %v2917, %v3159
        %v3204 = vsub.f32 %v3022, %v3160
        %v3205 = vsub.f32 %v3024, %v3161
        %v3206 = vadd.f32 %v3174, 1e-05
        %v3207 = vadd.f32 %v3175, 1e-05
        %v3208 = vadd.f32 %v3176, 1e-05
        %v3209 = vadd.f32 %v3177, 1e-05
        %v3210 = vrsqrt.pop %v3206
        %v3211 = vrsqrt.pop %v3207
        %v3212 = vrsqrt.pop %v3208
        %v3213 = vrsqrt.pop %v3209
        %v3214 = vmul.f32 %v3178, %v3210
        %v3215 = vmul.f32 %v3179, %v3211
        %v3216 = vmul.f32 %v3180, %v3212
        %v3217 = vmul.f32 %v3181, %v3213
        %v3218 = vmul.f32 %v3182, %v3210
        %v3219 = vmul.f32 %v3183, %v3211
        %v3220 = vmul.f32 %v3184, %v3212
        %v3221 = vmul.f32 %v3185, %v3213
        %v3222 = vmul.f32 %v3186, %v3210
        %v3223 = vmul.f32 %v3187, %v3211
        %v3224 = vmul.f32 %v3188, %v3212
        %v3225 = vmul.f32 %v3189, %v3213
        %v3226 = vmul.f32 %v3190, %v3210
        %v3227 = vmul.f32 %v3191, %v3211
        %v3228 = vmul.f32 %v3192, %v3212
        %v3229 = vmul.f32 %v3193, %v3213
        %v3230 = vmul.f32 %v3194, %v3210
        %v3231 = vmul.f32 %v3195, %v3211
        %v3232 = vmul.f32 %v3196, %v3212
        %v3233 = vmul.f32 %v3197, %v3213
        %v3234 = vmul.f32 %v3198, %v3210
        %v3235 = vmul.f32 %v3199, %v3211
        %v3236 = vmul.f32 %v3200, %v3212
        %v3237 = vmul.f32 %v3201, %v3213
        %v3238 = vmul.f32 %v3202, %v3210
        %v3239 = vmul.f32 %v3203, %v3211
        %v3240 = vmul.f32 %v3204, %v3212
        %v3241 = vmul.f32 %v3205, %v3213
        %3242 = vset.pattern.permute.xlu0 15
        %3243 = vperm.xlu0 %3242, %v217
        %v3244 = vpop.permute.xlu0 %3243
        %3246 = vset.pattern.permute.xlu0 15
        %3247 = vperm.xlu0 %3246, %v218
        %v3248 = vpop.permute.xlu0 %3247
        %3250 = vset.pattern.permute.xlu0 15
        %3251 = vperm.xlu0 %3250, %v219
        %v3252 = vpop.permute.xlu0 %3251
        %3254 = vset.pattern.permute.xlu0 15
        %3255 = vperm.xlu0 %3254, %v220
        %v3256 = vpop.permute.xlu0 %3255
        %3258 = vset.pattern.permute.xlu0 15
        %3259 = vperm.xlu0 %3258, %v221
        %v3260 = vpop.permute.xlu0 %3259
        %3262 = vset.pattern.permute.xlu0 15
        %3263 = vperm.xlu0 %3262, %v222
        %v3264 = vpop.permute.xlu0 %3263
        %3266 = vset.pattern.permute.xlu0 15
        %3267 = vperm.xlu0 %3266, %v223
        %v3268 = vpop.permute.xlu0 %3267
        %v3270 = vmul.f32 %v3214, %v3244
        %v3271 = vmul.f32 %v3215, %v3244
        %v3272 = vmul.f32 %v3216, %v3244
        %v3273 = vmul.f32 %v3217, %v3244
        %v3274 = vmul.f32 %v3218, %v3248
        %v3275 = vmul.f32 %v3219, %v3248
        %v3276 = vmul.f32 %v3220, %v3248
        %v3277 = vmul.f32 %v3221, %v3248
        %v3278 = vmul.f32 %v3222, %v3252
        %v3279 = vmul.f32 %v3223, %v3252
        %v3280 = vmul.f32 %v3224, %v3252
        %v3281 = vmul.f32 %v3225, %v3252
        %v3282 = vmul.f32 %v3226, %v3256
        %v3283 = vmul.f32 %v3227, %v3256
        %v3284 = vmul.f32 %v3228, %v3256
        %v3285 = vmul.f32 %v3229, %v3256
        %v3286 = vmul.f32 %v3230, %v3260
        %v3287 = vmul.f32 %v3231, %v3260
        %v3288 = vmul.f32 %v3232, %v3260
        %v3289 = vmul.f32 %v3233, %v3260
        %v3290 = vmul.f32 %v3234, %v3264
        %v3291 = vmul.f32 %v3235, %v3264
        %v3292 = vmul.f32 %v3236, %v3264
        %v3293 = vmul.f32 %v3237, %v3264
        %v3294 = vmul.f32 %v3238, %v3268
        %v3295 = vmul.f32 %v3239, %v3268
        %v3296 = vmul.f32 %v3240, %v3268
        %v3297 = vmul.f32 %v3241, %v3268
        %3298 = vset.pattern.permute.xlu0 16
        %3299 = vperm.xlu0 %3298, %v217
        %v3300 = vpop.permute.xlu0 %3299
        %3302 = vset.pattern.permute.xlu0 16
        %3303 = vperm.xlu0 %3302, %v218
        %v3304 = vpop.permute.xlu0 %3303
        %3306 = vset.pattern.permute.xlu0 16
        %3307 = vperm.xlu0 %3306, %v219
        %v3308 = vpop.permute.xlu0 %3307
        %3310 = vset.pattern.permute.xlu0 16
        %3311 = vperm.xlu0 %3310, %v220
        %v3312 = vpop.permute.xlu0 %3311
        %3314 = vset.pattern.permute.xlu0 16
        %3315 = vperm.xlu0 %3314, %v221
        %v3316 = vpop.permute.xlu0 %3315
        %3318 = vset.pattern.permute.xlu0 16
        %3319 = vperm.xlu0 %3318, %v222
        %v3320 = vpop.permute.xlu0 %3319
        %3322 = vset.pattern.permute.xlu0 16
        %3323 = vperm.xlu0 %3322, %v223
        %v3324 = vpop.permute.xlu0 %3323
        %v3326 = vadd.f32 %v3270, %v3300
        %v3327 = vadd.f32 %v3271, %v3300
        %v3328 = vadd.f32 %v3272, %v3300
        %v3329 = vadd.f32 %v3273, %v3300
        %v3330 = vadd.f32 %v3274, %v3304
        %v3331 = vadd.f32 %v3275, %v3304
        %v3332 = vadd.f32 %v3276, %v3304
        %v3333 = vadd.f32 %v3277, %v3304
        %v3334 = vadd.f32 %v3278, %v3308
        %v3335 = vadd.f32 %v3279, %v3308
        %v3336 = vadd.f32 %v3280, %v3308
        %v3337 = vadd.f32 %v3281, %v3308
        %v3338 = vadd.f32 %v3282, %v3312
        %v3339 = vadd.f32 %v3283, %v3312
        %v3340 = vadd.f32 %v3284, %v3312
        %v3341 = vadd.f32 %v3285, %v3312
        %v3342 = vadd.f32 %v3286, %v3316
        %v3343 = vadd.f32 %v3287, %v3316
        %v3344 = vadd.f32 %v3288, %v3316
        %v3345 = vadd.f32 %v3289, %v3316
        %v3346 = vadd.f32 %v3290, %v3320
        %v3347 = vadd.f32 %v3291, %v3320
        %v3348 = vadd.f32 %v3292, %v3320
        %v3349 = vadd.f32 %v3293, %v3320
        %v3350 = vadd.f32 %v3294, %v3324
        %v3351 = vadd.f32 %v3295, %v3324
        %v3352 = vadd.f32 %v3296, %v3324
        %v3353 = vadd.f32 %v3297, %v3324
        %v3354 = vtanh.pop %v3326
        %v3355 = vtanh.pop %v3327
        %v3356 = vtanh.pop %v3328
        %v3357 = vtanh.pop %v3329
        %v3358 = vtanh.pop %v3330
        %v3359 = vtanh.pop %v3331
        %v3360 = vtanh.pop %v3332
        %v3361 = vtanh.pop %v3333
        %v3362 = vtanh.pop %v3334
        %v3363 = vtanh.pop %v3335
        %v3364 = vtanh.pop %v3336
        %v3365 = vtanh.pop %v3337
        %v3366 = vtanh.pop %v3338
        %v3367 = vtanh.pop %v3339
        %v3368 = vtanh.pop %v3340
        %v3369 = vtanh.pop %v3341
        %v3370 = vtanh.pop %v3342
        %v3371 = vtanh.pop %v3343
        %v3372 = vtanh.pop %v3344
        %v3373 = vtanh.pop %v3345
        %v3374 = vtanh.pop %v3346
        %v3375 = vtanh.pop %v3347
        %v3376 = vtanh.pop %v3348
        %v3377 = vtanh.pop %v3349
        %v3378 = vtanh.pop %v3350
        %v3379 = vtanh.pop %v3351
        %v3380 = vtanh.pop %v3352
        %v3381 = vtanh.pop %v3353
        %3382 = vset.pattern.permute.xlu0 17
        %3383 = vperm.xlu0 %3382, %v217
        %v3384 = vpop.permute.xlu0 %3383
        %3386 = vset.pattern.permute.xlu0 17
        %3387 = vperm.xlu0 %3386, %v218
        %v3388 = vpop.permute.xlu0 %3387
        %3390 = vset.pattern.permute.xlu0 17
        %3391 = vperm.xlu0 %3390, %v219
        %v3392 = vpop.permute.xlu0 %3391
        %3394 = vset.pattern.permute.xlu0 17
        %3395 = vperm.xlu0 %3394, %v220
        %v3396 = vpop.permute.xlu0 %3395
        %3398 = vset.pattern.permute.xlu0 17
        %3399 = vperm.xlu0 %3398, %v221
        %v3400 = vpop.permute.xlu0 %3399
        %3402 = vset.pattern.permute.xlu0 17
        %3403 = vperm.xlu0 %3402, %v222
        %v3404 = vpop.permute.xlu0 %3403
        %3406 = vset.pattern.permute.xlu0 17
        %3407 = vperm.xlu0 %3406, %v223
        %v3408 = vpop.permute.xlu0 %3407
        %v3410 = vmul.f32 %v3354, %v3384
        %v3411 = vmul.f32 %v3355, %v3384
        %v3412 = vmul.f32 %v3356, %v3384
        %v3413 = vmul.f32 %v3357, %v3384
        %v3414 = vmul.f32 %v3358, %v3388
        %v3415 = vmul.f32 %v3359, %v3388
        %v3416 = vmul.f32 %v3360, %v3388
        %v3417 = vmul.f32 %v3361, %v3388
        %v3418 = vmul.f32 %v3362, %v3392
        %v3419 = vmul.f32 %v3363, %v3392
        %v3420 = vmul.f32 %v3364, %v3392
        %v3421 = vmul.f32 %v3365, %v3392
        %v3422 = vmul.f32 %v3366, %v3396
        %v3423 = vmul.f32 %v3367, %v3396
        %v3424 = vmul.f32 %v3368, %v3396
        %v3425 = vmul.f32 %v3369, %v3396
        %v3426 = vmul.f32 %v3370, %v3400
        %v3427 = vmul.f32 %v3371, %v3400
        %v3428 = vmul.f32 %v3372, %v3400
        %v3429 = vmul.f32 %v3373, %v3400
        %v3430 = vmul.f32 %v3374, %v3404
        %v3431 = vmul.f32 %v3375, %v3404
        %v3432 = vmul.f32 %v3376, %v3404
        %v3433 = vmul.f32 %v3377, %v3404
        %v3434 = vmul.f32 %v3378, %v3408
        %v3435 = vmul.f32 %v3379, %v3408
        %v3436 = vmul.f32 %v3380, %v3408
        %v3437 = vmul.f32 %v3381, %v3408
        %v3438 = vadd.f32 %v3410, %v3414
        %v3439 = vadd.f32 %v3438, %v3418
        %v3440 = vadd.f32 %v3439, %v3422
        %v3441 = vadd.f32 %v3440, %v3426
        %v3442 = vadd.f32 %v3441, %v3430
        %v3443 = vsel %vm474, %v3434, 0.0
        %v3444 = vadd.f32 %v3442, %v3443
        %v3445 = vrot.slane %v3444, 4
        %v3446 = vadd.f32 %v3444, %v3445
        %v3447 = vrot.slane %v3446, 2
        %v3448 = vadd.f32 %v3446, %v3447
        %v3449 = vrot.slane %v3448, 1
        %v3450 = vadd.f32 %v3448, %v3449
        %v3451 = vadd.f32 %v3411, %v3415
        %v3452 = vadd.f32 %v3451, %v3419
        %v3453 = vadd.f32 %v3452, %v3423
        %v3454 = vadd.f32 %v3453, %v3427
        %v3455 = vadd.f32 %v3454, %v3431
        %v3456 = vsel %vm474, %v3435, 0.0
        %v3457 = vadd.f32 %v3455, %v3456
        %v3458 = vrot.slane %v3457, 4
        %v3459 = vadd.f32 %v3457, %v3458
        %v3460 = vrot.slane %v3459, 2
        %v3461 = vadd.f32 %v3459, %v3460
        %v3462 = vrot.slane %v3461, 1
        %v3463 = vadd.f32 %v3461, %v3462
        %v3464 = vadd.f32 %v3412, %v3416
        %v3465 = vadd.f32 %v3464, %v3420
        %v3466 = vadd.f32 %v3465, %v3424
        %v3467 = vadd.f32 %v3466, %v3428
        %v3468 = vadd.f32 %v3467, %v3432
        %v3469 = vsel %vm474, %v3436, 0.0
        %v3470 = vadd.f32 %v3468, %v3469
        %v3471 = vrot.slane %v3470, 4
        %v3472 = vadd.f32 %v3470, %v3471
        %v3473 = vrot.slane %v3472, 2
        %v3474 = vadd.f32 %v3472, %v3473
        %v3475 = vrot.slane %v3474, 1
        %v3476 = vadd.f32 %v3474, %v3475
        %v3477 = vadd.f32 %v3413, %v3417
        %v3478 = vadd.f32 %v3477, %v3421
        %v3479 = vadd.f32 %v3478, %v3425
        %v3480 = vadd.f32 %v3479, %v3429
        %v3481 = vadd.f32 %v3480, %v3433
        %v3482 = vsel %vm474, %v3437, 0.0
        %v3483 = vadd.f32 %v3481, %v3482
        %v3484 = vrot.slane %v3483, 4
        %v3485 = vadd.f32 %v3483, %v3484
        %v3486 = vrot.slane %v3485, 2
        %v3487 = vadd.f32 %v3485, %v3486
        %v3488 = vrot.slane %v3487, 1
        %v3489 = vadd.f32 %v3487, %v3488
        %3490 = vset.pattern.permute.xlu0 18
        %3491 = vperm.xlu0 %3490, %v217
        %v3492 = vpop.permute.xlu0 %3491
        %v3494 = vadd.f32 %v3450, %v3492
        %v3495 = vadd.f32 %v3463, %v3492
        %v3496 = vadd.f32 %v3476, %v3492
        %v3497 = vadd.f32 %v3489, %v3492
        %v3502 = vcombine.low %v3494, %v3495
        %v3503 = vcombine.low %v3496, %v3497
        %v3505 = vunpack.c.l.s4 1966171168
        %v3506 = vunpack.c.0.s8 %v3505
        %v3507 = vlaneseq
        %v3508 = vshrl.u32 %v3507, 7
        %v3509 = vsub.s32 %v3506, %v3508
        %v3510 = vrot.slane %v3502, %v3509
        %v3512 = vunpack.c.l.s4 1966171168
        %v3513 = vunpack.c.0.s8 %v3512
        %v3514 = vlaneseq
        %v3515 = vshrl.u32 %v3514, 7
        %v3516 = vsub.s32 %v3513, %v3515
        %v3517 = vrot.slane %v3503, %v3516
        %v3518 = vcombine.low %v3510, %v3517
        %v3520 = vunpack.c.l.s4 1966171168
        %v3521 = vunpack.c.0.s8 %v3520
        %v3522 = vlaneseq
        %v3523 = vshrl.u32 %v3522, 7
        %v3524 = vsub.s32 %v3521, %v3523
        %v3525 = vrot.slane %v3518, %v3524
        %v3527 = vlaneseq
        %vm3528 = vcmp.ge.s32.totalorder %v3527, 0
        %vm3529 = vcmp.lt.s32.totalorder %v3527, 512
        %vm3530 = vmand %vm3528, %vm3529
        %3531 = vst.msk [vmem:[%s203] sm:$0xf] %vm3530, %v3525
        %s3532 = sand.u32 %s120, 1
        %s3533 = scalar_lea.sflag [#allocation3], %s3532
        %s3534 = sand.u32 %s120, 1
        %s3535 = smul.addr %s3534, 4
        %s3536 = scalar_lea.vmem [#allocation2], %s3535
        // Predicated region
        $region37: #{tpu_custom_call.1} parent=35 // pred_check
          %p3537 = pneg %p130
        $region38: #{tpu_custom_call.1} parent=35 // pred_check_branch
          %3539 = sbr.rel (%p3537) target = $region40
        $region39: #{tpu_custom_call.1} parent=35 // pred_region
          %s3540 = smul.u32 4, %s18
          %s3542 = ssub.s32 64, 64
          %3543 = vsyncadd %s3533, %s3542
          %s3544 = smul.addr %s3540, 16
          %s3545 = scalar_lea.hbm %s4, %s3544
          %s3547 = sshll.u32 %s3536, 4
          %s3548 = int_to_ptr.vmem [resolvable:$true] %s3547
          %3550 = dma.vmem_to_hbm [thread:$0]  %s3548, 64, %s3545, %s3533
        $region40: #{tpu_custom_call.1} parent=35 // pred_fallthru
          _
      $region36: #{tpu_custom_call.1} parent=5 // pred_fallthru
        _
      %p3551 = scmp.le.s32.totalorder 2, %s13
      // Predicated region
      $region41: #{tpu_custom_call.1} parent=5 // pred_check
        %p3552 = pneg %p3551
      $region42: #{tpu_custom_call.1} parent=5 // pred_check_branch
        %3554 = sbr.rel (%p3552) target = $region44
      $region43: #{tpu_custom_call.1} parent=5 // pred_region
        %s3555 = ssub.s32 %s13, 2
        // Predicated region
        $region45: #{tpu_custom_call.1} parent=43 // pred_check
          %p3556 = pneg %p136
        $region46: #{tpu_custom_call.1} parent=43 // pred_check_branch
          %3558 = sbr.rel (%p3556) target = $region48
        $region47: #{tpu_custom_call.1} parent=43 // pred_region
          %s3559 = sand.u32 %s121, 1
          %s3560 = scalar_lea.sflag [#allocation3], %s3559
          %s3561 = sand.u32 %s121, 1
          %s3562 = smul.addr %s3561, 4
          %s3563 = scalar_lea.vmem [#allocation2], %s3562
          %3564 = dma.done %s3560, 64
        $region48: #{tpu_custom_call.1} parent=43 // pred_fallthru
          _
      $region44: #{tpu_custom_call.1} parent=5 // pred_fallthru
        _
    $region6: #{tpu_custom_call.1} parent=1 // loop_footer
      %s17 = sadd.s32 1, %s13
    $region7: #{tpu_custom_call.1} parent=1 // loop_footer_branch
      %12 = sbr.rel target = $region3
    $region8: #{tpu_custom_call.1} parent=1 // loop_exit
      _
    %3565 = vsyncpa [#allocation3], 1
    %s3566 = scalar_lea.sflag [#allocation3], 1
    %3567 = vsyncpa %s3566, 1

</llo_original>
